<compile_context>
chip_gen: v7x
topology: tpu7x:2x2x1
jax: 0.10.0
libtpu: 0.0.40
codegen_flags: <defaults>
</compile_context>

<pallas_src>
import functools

import jax
import jax.numpy as jnp
from jax import lax
from jax.experimental import pallas as pl
from jax.experimental.pallas import tpu as pltpu


def _cross_attn_kernel(px_ref, pt_ref, wq_ref, wk_ref, wv_ref, wo_ref, bo_ref,
                       out_ref, *, batch, n_q, n_kv, heads):
    """Single-step fused cross attention over the whole (small) batch.

    px_ref  : (B*N, Dq)     query tokens, batch folded into rows
    pt_ref  : (B*M, Dc)     context tokens, batch folded into rows
    wq_ref  : (H, Dq, d)    to_q.weight, pre-transposed, per-head, scale folded in
    wk_ref  : (H, Dc, d)    to_k.weight, pre-transposed, per-head
    wv_ref  : (H, Dc, d)    to_v.weight, pre-transposed, per-head
    wo_ref  : (H, d, Dq)    to_out[0].weight, pre-transposed, per-head
    bo_ref  : (1, Dq)       to_out[0].bias
    out_ref : (B*N, Dq)
    """
    px = px_ref[...]                        # (B*N, Dq)  native dtype
    pt = pt_ref[...]                        # (B*M, Dc)
    in_dtype = px.dtype

    # Output accumulator starts as the broadcast bias (f32).
    proj = jnp.broadcast_to(bo_ref[...].astype(jnp.float32),
                            (px.shape[0], out_ref.shape[-1]))

    for h in range(heads):                  # small static unroll (H = 4)
        wq_h = wq_ref[h]                    # (Dq, d)   scale already folded in
        wk_h = wk_ref[h]                    # (Dc, d)
        wv_h = wv_ref[h]                    # (Dc, d)
        wo_h = wo_ref[h]                    # (d, Dq)

        # Whole-batch per-head projections (f32 accumulation on MXU, results
        # kept in the input dtype so the attention dots stay narrow).
        q_h = jnp.dot(px, wq_h, preferred_element_type=jnp.float32).astype(in_dtype)  # (B*N, d)
        k_h = jnp.dot(pt, wk_h, preferred_element_type=jnp.float32).astype(in_dtype)  # (B*M, d)
        v_h = jnp.dot(pt, wv_h, preferred_element_type=jnp.float32).astype(in_dtype)  # (B*M, d)

        head_rows = []
        for b in range(batch):              # static unroll (B = 2)
            # Sublane-aligned static row slices (N, M multiples of 8) — cheap.
            q_b = q_h[b * n_q:(b + 1) * n_q]     # (N, d)
            k_b = k_h[b * n_kv:(b + 1) * n_kv]   # (M, d)
            v_b = v_h[b * n_kv:(b + 1) * n_kv]   # (M, d)

            # sim = einsum('i d, j d -> i j', q, k)  (scale folded into wq);
            # contract last dims -> no materialized k.T.
            sim = lax.dot_general(
                q_b, k_b, (((1,), (1,)), ((), ())),
                preferred_element_type=jnp.float32)               # (N, M) f32

            # Numerically-stable softmax over the context axis (f32).
            sim_max = jnp.max(sim, axis=-1, keepdims=True)
            p = jnp.exp(sim - sim_max)
            denom = jnp.sum(p, axis=-1, keepdims=True)
            attn = p / denom                                      # exact reciprocal

            head_rows.append(jnp.dot(attn.astype(v_b.dtype), v_b,
                                     preferred_element_type=jnp.float32))  # (N, d)

        # Stack batches back along rows (sublane concat, aligned -> free) and
        # accumulate this head's contribution to the output projection.
        out_h = jnp.concatenate(head_rows, axis=0).astype(in_dtype)        # (B*N, d)
        proj = proj + jnp.dot(out_h, wo_h, preferred_element_type=jnp.float32)

    out_ref[...] = proj.astype(out_ref.dtype)


def cross_attention(pixel_embed, patch_embed, params, *, heads, dim_head):
    """JAX wrapper reproducing CrossAttention.forward (mask=None, eval mode)."""
    wq, wk, wv, wo, bo = (params["wq"], params["wk"], params["wv"],
                          params["wo"], params["bo"])
    scale = dim_head ** (-0.5)

    b_pixel, n, _ = pixel_embed.shape
    b_patch, m, _ = patch_embed.shape
    if b_pixel != b_patch:
        # PyTorch: pixel_embed.reshape(real_batch, pixels_per_patch * n, -1)
        pixel_embed = pixel_embed.reshape(b_patch, (b_pixel // b_patch) * n, -1)

    B, N, Dq = pixel_embed.shape
    _, M, Dc = patch_embed.shape
    H, d = heads, dim_head

    # --- trace-time parameter prep (free): transpose, split per head, fold scale ---
    # nn.Linear: y = x @ W.T ; head h of the (h d) lane split is W.T[:, h*d:(h+1)*d].
    wq_s = (wq * scale).T.reshape(Dq, H, d).transpose(1, 0, 2)   # (H, Dq, d)
    wk_s = wk.T.reshape(Dc, H, d).transpose(1, 0, 2)             # (H, Dc, d)
    wv_s = wv.T.reshape(Dc, H, d).transpose(1, 0, 2)             # (H, Dc, d)
    wo_s = wo.T.reshape(H, d, Dq)                                # (H, d, Dq)
    bo_2d = bo.reshape(1, Dq)

    # Fold the batch axis into rows (single kernel step for the whole batch).
    px2 = pixel_embed.reshape(B * N, Dq)
    pt2 = patch_embed.reshape(B * M, Dc)

    kernel = functools.partial(_cross_attn_kernel,
                               batch=B, n_q=N, n_kv=M, heads=H)

    out2d = pl.pallas_call(
        kernel,
        out_shape=jax.ShapeDtypeStruct((B * N, Dq), pixel_embed.dtype),
        grid_spec=pltpu.PrefetchScalarGridSpec(
            num_scalar_prefetch=0,
            grid=(1,),
            in_specs=[
                pl.BlockSpec((B * N, Dq), lambda i: (0, 0)),       # pixel rows
                pl.BlockSpec((B * M, Dc), lambda i: (0, 0)),       # patch rows
                pl.BlockSpec((H, Dq, d),  lambda i: (0, 0, 0)),    # Wq^T per head (scaled)
                pl.BlockSpec((H, Dc, d),  lambda i: (0, 0, 0)),    # Wk^T per head
                pl.BlockSpec((H, Dc, d),  lambda i: (0, 0, 0)),    # Wv^T per head
                pl.BlockSpec((H, d, Dq),  lambda i: (0, 0, 0)),    # Wo^T per head
                pl.BlockSpec((1, Dq),     lambda i: (0, 0)),       # bias
            ],
            out_specs=pl.BlockSpec((B * N, Dq), lambda i: (0, 0)),
        ),
        compiler_params=pltpu.CompilerParams(
            dimension_semantics=("arbitrary",)),
    )(px2, pt2, wq_s, wk_s, wv_s, wo_s, bo_2d)

    return out2d.reshape(B, N, Dq)


def cross_attention_reference(pixel_embed, patch_embed, params, *, heads, dim_head):
    """Pure-jnp reference mirroring the PyTorch forward (mask=None)."""
    wq, wk, wv, wo, bo = (params["wq"], params["wk"], params["wv"],
                          params["wo"], params["bo"])
    scale = dim_head ** (-0.5)
    b_pixel, n, _ = pixel_embed.shape
    b_patch, m, _ = patch_embed.shape
    if b_pixel != b_patch:
        pixel_embed = pixel_embed.reshape(b_patch, (b_pixel // b_patch) * n, -1)
    B, N, Dq = pixel_embed.shape
    H, d = heads, dim_head

    q = pixel_embed @ wq.T          # (B, N, H*d)
    k = patch_embed @ wk.T          # (B, M, H*d)
    v = patch_embed @ wv.T          # (B, M, H*d)

    def split(x):  # 'b seq (h d) -> (b h) seq d'
        Bx, S, _ = x.shape
        return x.reshape(Bx, S, H, d).transpose(0, 2, 1, 3).reshape(Bx * H, S, d)

    q, k, v = split(q), split(k), split(v)
    sim = jnp.einsum('bid,bjd->bij', q, k) * scale
    attn = jax.nn.softmax(sim, axis=-1)
    out = jnp.einsum('bij,bjd->bid', attn, v)
    out = out.reshape(B, H, N, d).transpose(0, 2, 1, 3).reshape(B, N, H * d)
    return out @ wo.T + bo


if __name__ == "__main__":
    # Module config (small): query_dim=32, context_dim=48, heads=4, dim_head=16
    query_dim, context_dim, heads, dim_head = 32, 48, 4, 16
    inner_dim = heads * dim_head
    B, N, M = 2, 16, 8

    key = jax.random.PRNGKey(0)
    ks = jax.random.split(key, 7)
    params = {
        "wq": jax.random.normal(ks[0], (inner_dim, query_dim), jnp.float32) * 0.05,
        "wk": jax.random.normal(ks[1], (inner_dim, context_dim), jnp.float32) * 0.05,
        "wv": jax.random.normal(ks[2], (inner_dim, context_dim), jnp.float32) * 0.05,
        "wo": jax.random.normal(ks[3], (query_dim, inner_dim), jnp.float32) * 0.05,
        "bo": jax.random.normal(ks[4], (query_dim,), jnp.float32) * 0.05,
    }
    pixel_embed = jax.random.normal(ks[5], (B, N, query_dim), jnp.float32)
    patch_embed = jax.random.normal(ks[6], (B, M, context_dim), jnp.float32)

    out = cross_attention(pixel_embed, patch_embed, params,
                          heads=heads, dim_head=dim_head)
    out = jax.block_until_ready(out)

    ref = cross_attention_reference(pixel_embed, patch_embed, params,
                                    heads=heads, dim_head=dim_head)
    assert out.shape == (B, N, query_dim)
    # Remaining difference vs. the XLA reference is matmul precision /
    # accumulation-order only (exact softmax reciprocal now).
    assert jnp.allclose(out, ref, atol=5e-3, rtol=5e-3), "mismatch vs reference"
    print("KERNEL_OK")
</pallas_src>

<mosaic_0001>
module attributes {stable_mosaic.version = 11 : i64} {
  func.func @_cross_attn_kernel(%arg0: i32, %arg1: memref<32x32xf32, #tpu.memory_space<vmem>>, %arg2: memref<16x48xf32, #tpu.memory_space<vmem>>, %arg3: memref<4x32x16xf32, #tpu.memory_space<vmem>>, %arg4: memref<4x48x16xf32, #tpu.memory_space<vmem>>, %arg5: memref<4x48x16xf32, #tpu.memory_space<vmem>>, %arg6: memref<4x16x32xf32, #tpu.memory_space<vmem>>, %arg7: memref<1x32xf32, #tpu.memory_space<vmem>>, %arg8: memref<32x32xf32, #tpu.memory_space<vmem>>) attributes {dimension_semantics = [#tpu.dimension_semantics<arbitrary>], iteration_bounds = array<i64: 1>, scalar_prefetch = 0 : i64, scratch_operands = 0 : i64, tpu.core_type = #tpu.core_type<tc>, window_params = [{pipeline_mode = #tpu.pipeline_mode<synchronous>, transform_indices = @transform_0, window_bounds = array<i64: 32, 32>}, {pipeline_mode = #tpu.pipeline_mode<synchronous>, transform_indices = @transform_1, window_bounds = array<i64: 16, 48>}, {pipeline_mode = #tpu.pipeline_mode<synchronous>, transform_indices = @transform_2, window_bounds = array<i64: 4, 32, 16>}, {pipeline_mode = #tpu.pipeline_mode<synchronous>, transform_indices = @transform_3, window_bounds = array<i64: 4, 48, 16>}, {pipeline_mode = #tpu.pipeline_mode<synchronous>, transform_indices = @transform_4, window_bounds = array<i64: 4, 48, 16>}, {pipeline_mode = #tpu.pipeline_mode<synchronous>, transform_indices = @transform_5, window_bounds = array<i64: 4, 16, 32>}, {pipeline_mode = #tpu.pipeline_mode<synchronous>, transform_indices = @transform_6, window_bounds = array<i64: 1, 32>}, {pipeline_mode = #tpu.pipeline_mode<synchronous>, transform_indices = @transform_7, window_bounds = array<i64: 32, 32>}]} {
    %c0 = arith.constant 0 : index
    %c0_0 = arith.constant 0 : index
    %0 = vector.load %arg1[%c0, %c0_0] : memref<32x32xf32, #tpu.memory_space<vmem>>, vector<32x32xf32>
    %c0_1 = arith.constant 0 : index
    %c0_2 = arith.constant 0 : index
    %1 = vector.load %arg2[%c0_1, %c0_2] : memref<16x48xf32, #tpu.memory_space<vmem>>, vector<16x48xf32>
    %c0_3 = arith.constant 0 : index
    %c0_4 = arith.constant 0 : index
    %2 = vector.load %arg7[%c0_3, %c0_4] : memref<1x32xf32, #tpu.memory_space<vmem>>, vector<1x32xf32>
    %3 = vector.shape_cast %2 : vector<1x32xf32> to vector<1x32xf32>
    %4 = vector.broadcast %3 : vector<1x32xf32> to vector<32x32xf32>
    %c0_5 = arith.constant 0 : index
    %c0_6 = arith.constant 0 : index
    %c0_7 = arith.constant 0 : index
    %5 = vector.load %arg3[%c0_5, %c0_6, %c0_7] : memref<4x32x16xf32, #tpu.memory_space<vmem>>, vector<1x32x16xf32>
    %6 = vector.shape_cast %5 : vector<1x32x16xf32> to vector<32x16xf32>
    %c0_8 = arith.constant 0 : index
    %c0_9 = arith.constant 0 : index
    %c0_10 = arith.constant 0 : index
    %7 = vector.load %arg4[%c0_8, %c0_9, %c0_10] : memref<4x48x16xf32, #tpu.memory_space<vmem>>, vector<1x48x16xf32>
    %8 = vector.shape_cast %7 : vector<1x48x16xf32> to vector<48x16xf32>
    %c0_11 = arith.constant 0 : index
    %c0_12 = arith.constant 0 : index
    %c0_13 = arith.constant 0 : index
    %9 = vector.load %arg5[%c0_11, %c0_12, %c0_13] : memref<4x48x16xf32, #tpu.memory_space<vmem>>, vector<1x48x16xf32>
    %10 = vector.shape_cast %9 : vector<1x48x16xf32> to vector<48x16xf32>
    %c0_14 = arith.constant 0 : index
    %c0_15 = arith.constant 0 : index
    %c0_16 = arith.constant 0 : index
    %11 = vector.load %arg6[%c0_14, %c0_15, %c0_16] : memref<4x16x32xf32, #tpu.memory_space<vmem>>, vector<1x16x32xf32>
    %12 = vector.shape_cast %11 : vector<1x16x32xf32> to vector<16x32xf32>
    %cst = arith.constant dense<0.000000e+00> : vector<32x16xf32>
    %13 = tpu.matmul %0, %6, %cst {dimension_numbers = #tpu.dot_dimension_numbers<[1], [0], [0], [1], [0, 0, 1, 1], [], []>} : vector<32x32xf32>, vector<32x16xf32>, vector<32x16xf32> -> vector<32x16xf32>
    %cst_17 = arith.constant dense<0.000000e+00> : vector<16x16xf32>
    %14 = tpu.matmul %1, %8, %cst_17 {dimension_numbers = #tpu.dot_dimension_numbers<[1], [0], [0], [1], [0, 0, 1, 1], [], []>} : vector<16x48xf32>, vector<48x16xf32>, vector<16x16xf32> -> vector<16x16xf32>
    %cst_18 = arith.constant dense<0.000000e+00> : vector<16x16xf32>
    %15 = tpu.matmul %1, %10, %cst_18 {dimension_numbers = #tpu.dot_dimension_numbers<[1], [0], [0], [1], [0, 0, 1, 1], [], []>} : vector<16x48xf32>, vector<48x16xf32>, vector<16x16xf32> -> vector<16x16xf32>
    %16 = vector.extract_strided_slice %13 {offsets = [0, 0], sizes = [16, 16], strides = [1, 1]} : vector<32x16xf32> to vector<16x16xf32>
    %17 = vector.extract_strided_slice %14 {offsets = [0, 0], sizes = [8, 16], strides = [1, 1]} : vector<16x16xf32> to vector<8x16xf32>
    %18 = vector.extract_strided_slice %15 {offsets = [0, 0], sizes = [8, 16], strides = [1, 1]} : vector<16x16xf32> to vector<8x16xf32>
    %cst_19 = arith.constant dense<0.000000e+00> : vector<16x8xf32>
    %19 = tpu.matmul %16, %17, %cst_19 {dimension_numbers = #tpu.dot_dimension_numbers<[1], [1], [0], [0], [0, 0, 1, 0], [], []>} : vector<16x16xf32>, vector<8x16xf32>, vector<16x8xf32> -> vector<16x8xf32>
    %cst_20 = arith.constant dense<0xFF800000> : vector<16xf32>
    %20 = vector.multi_reduction <maximumf>, %19, %cst_20 [1] : vector<16x8xf32> to vector<16xf32>
    %21 = vector.shape_cast %20 : vector<16xf32> to vector<16x1xf32>
    %22 = vector.broadcast %21 : vector<16x1xf32> to vector<16x8xf32>
    %23 = arith.subf %19, %22 : vector<16x8xf32>
    %24 = math.exp %23 : vector<16x8xf32>
    %cst_21 = arith.constant dense<0.000000e+00> : vector<16xf32>
    %25 = vector.multi_reduction <add>, %24, %cst_21 [1] : vector<16x8xf32> to vector<16xf32>
    %26 = vector.shape_cast %25 : vector<16xf32> to vector<16x1xf32>
    %27 = vector.broadcast %26 : vector<16x1xf32> to vector<16x8xf32>
    %28 = arith.divf %24, %27 : vector<16x8xf32>
    %cst_22 = arith.constant dense<0.000000e+00> : vector<16x16xf32>
    %29 = tpu.matmul %28, %18, %cst_22 {dimension_numbers = #tpu.dot_dimension_numbers<[1], [0], [0], [1], [0, 0, 1, 1], [], []>} : vector<16x8xf32>, vector<8x16xf32>, vector<16x16xf32> -> vector<16x16xf32>
    %30 = vector.extract_strided_slice %13 {offsets = [16, 0], sizes = [16, 16], strides = [1, 1]} : vector<32x16xf32> to vector<16x16xf32>
    %31 = vector.extract_strided_slice %14 {offsets = [8, 0], sizes = [8, 16], strides = [1, 1]} : vector<16x16xf32> to vector<8x16xf32>
    %32 = vector.extract_strided_slice %15 {offsets = [8, 0], sizes = [8, 16], strides = [1, 1]} : vector<16x16xf32> to vector<8x16xf32>
    %cst_23 = arith.constant dense<0.000000e+00> : vector<16x8xf32>
    %33 = tpu.matmul %30, %31, %cst_23 {dimension_numbers = #tpu.dot_dimension_numbers<[1], [1], [0], [0], [0, 0, 1, 0], [], []>} : vector<16x16xf32>, vector<8x16xf32>, vector<16x8xf32> -> vector<16x8xf32>
    %cst_24 = arith.constant dense<0xFF800000> : vector<16xf32>
    %34 = vector.multi_reduction <maximumf>, %33, %cst_24 [1] : vector<16x8xf32> to vector<16xf32>
    %35 = vector.shape_cast %34 : vector<16xf32> to vector<16x1xf32>
    %36 = vector.broadcast %35 : vector<16x1xf32> to vector<16x8xf32>
    %37 = arith.subf %33, %36 : vector<16x8xf32>
    %38 = math.exp %37 : vector<16x8xf32>
    %cst_25 = arith.constant dense<0.000000e+00> : vector<16xf32>
    %39 = vector.multi_reduction <add>, %38, %cst_25 [1] : vector<16x8xf32> to vector<16xf32>
    %40 = vector.shape_cast %39 : vector<16xf32> to vector<16x1xf32>
    %41 = vector.broadcast %40 : vector<16x1xf32> to vector<16x8xf32>
    %42 = arith.divf %38, %41 : vector<16x8xf32>
    %cst_26 = arith.constant dense<0.000000e+00> : vector<16x16xf32>
    %43 = tpu.matmul %42, %32, %cst_26 {dimension_numbers = #tpu.dot_dimension_numbers<[1], [0], [0], [1], [0, 0, 1, 1], [], []>} : vector<16x8xf32>, vector<8x16xf32>, vector<16x16xf32> -> vector<16x16xf32>
    %44 = tpu.concatenate %29, %43 in 0 : vector<16x16xf32>, vector<16x16xf32> -> vector<32x16xf32>
    %cst_27 = arith.constant dense<0.000000e+00> : vector<32x32xf32>
    %45 = tpu.matmul %44, %12, %cst_27 {dimension_numbers = #tpu.dot_dimension_numbers<[1], [0], [0], [1], [0, 0, 1, 1], [], []>} : vector<32x16xf32>, vector<16x32xf32>, vector<32x32xf32> -> vector<32x32xf32>
    %46 = arith.addf %4, %45 : vector<32x32xf32>
    %c1 = arith.constant 1 : index
    %c0_28 = arith.constant 0 : index
    %c0_29 = arith.constant 0 : index
    %47 = vector.load %arg3[%c1, %c0_28, %c0_29] : memref<4x32x16xf32, #tpu.memory_space<vmem>>, vector<1x32x16xf32>
    %48 = vector.shape_cast %47 : vector<1x32x16xf32> to vector<32x16xf32>
    %c1_30 = arith.constant 1 : index
    %c0_31 = arith.constant 0 : index
    %c0_32 = arith.constant 0 : index
    %49 = vector.load %arg4[%c1_30, %c0_31, %c0_32] : memref<4x48x16xf32, #tpu.memory_space<vmem>>, vector<1x48x16xf32>
    %50 = vector.shape_cast %49 : vector<1x48x16xf32> to vector<48x16xf32>
    %c1_33 = arith.constant 1 : index
    %c0_34 = arith.constant 0 : index
    %c0_35 = arith.constant 0 : index
    %51 = vector.load %arg5[%c1_33, %c0_34, %c0_35] : memref<4x48x16xf32, #tpu.memory_space<vmem>>, vector<1x48x16xf32>
    %52 = vector.shape_cast %51 : vector<1x48x16xf32> to vector<48x16xf32>
    %c1_36 = arith.constant 1 : index
    %c0_37 = arith.constant 0 : index
    %c0_38 = arith.constant 0 : index
    %53 = vector.load %arg6[%c1_36, %c0_37, %c0_38] : memref<4x16x32xf32, #tpu.memory_space<vmem>>, vector<1x16x32xf32>
    %54 = vector.shape_cast %53 : vector<1x16x32xf32> to vector<16x32xf32>
    %cst_39 = arith.constant dense<0.000000e+00> : vector<32x16xf32>
    %55 = tpu.matmul %0, %48, %cst_39 {dimension_numbers = #tpu.dot_dimension_numbers<[1], [0], [0], [1], [0, 0, 1, 1], [], []>} : vector<32x32xf32>, vector<32x16xf32>, vector<32x16xf32> -> vector<32x16xf32>
    %cst_40 = arith.constant dense<0.000000e+00> : vector<16x16xf32>
    %56 = tpu.matmul %1, %50, %cst_40 {dimension_numbers = #tpu.dot_dimension_numbers<[1], [0], [0], [1], [0, 0, 1, 1], [], []>} : vector<16x48xf32>, vector<48x16xf32>, vector<16x16xf32> -> vector<16x16xf32>
    %cst_41 = arith.constant dense<0.000000e+00> : vector<16x16xf32>
    %57 = tpu.matmul %1, %52, %cst_41 {dimension_numbers = #tpu.dot_dimension_numbers<[1], [0], [0], [1], [0, 0, 1, 1], [], []>} : vector<16x48xf32>, vector<48x16xf32>, vector<16x16xf32> -> vector<16x16xf32>
    %58 = vector.extract_strided_slice %55 {offsets = [0, 0], sizes = [16, 16], strides = [1, 1]} : vector<32x16xf32> to vector<16x16xf32>
    %59 = vector.extract_strided_slice %56 {offsets = [0, 0], sizes = [8, 16], strides = [1, 1]} : vector<16x16xf32> to vector<8x16xf32>
    %60 = vector.extract_strided_slice %57 {offsets = [0, 0], sizes = [8, 16], strides = [1, 1]} : vector<16x16xf32> to vector<8x16xf32>
    %cst_42 = arith.constant dense<0.000000e+00> : vector<16x8xf32>
    %61 = tpu.matmul %58, %59, %cst_42 {dimension_numbers = #tpu.dot_dimension_numbers<[1], [1], [0], [0], [0, 0, 1, 0], [], []>} : vector<16x16xf32>, vector<8x16xf32>, vector<16x8xf32> -> vector<16x8xf32>
    %cst_43 = arith.constant dense<0xFF800000> : vector<16xf32>
    %62 = vector.multi_reduction <maximumf>, %61, %cst_43 [1] : vector<16x8xf32> to vector<16xf32>
    %63 = vector.shape_cast %62 : vector<16xf32> to vector<16x1xf32>
    %64 = vector.broadcast %63 : vector<16x1xf32> to vector<16x8xf32>
    %65 = arith.subf %61, %64 : vector<16x8xf32>
    %66 = math.exp %65 : vector<16x8xf32>
    %cst_44 = arith.constant dense<0.000000e+00> : vector<16xf32>
    %67 = vector.multi_reduction <add>, %66, %cst_44 [1] : vector<16x8xf32> to vector<16xf32>
    %68 = vector.shape_cast %67 : vector<16xf32> to vector<16x1xf32>
    %69 = vector.broadcast %68 : vector<16x1xf32> to vector<16x8xf32>
    %70 = arith.divf %66, %69 : vector<16x8xf32>
    %cst_45 = arith.constant dense<0.000000e+00> : vector<16x16xf32>
    %71 = tpu.matmul %70, %60, %cst_45 {dimension_numbers = #tpu.dot_dimension_numbers<[1], [0], [0], [1], [0, 0, 1, 1], [], []>} : vector<16x8xf32>, vector<8x16xf32>, vector<16x16xf32> -> vector<16x16xf32>
    %72 = vector.extract_strided_slice %55 {offsets = [16, 0], sizes = [16, 16], strides = [1, 1]} : vector<32x16xf32> to vector<16x16xf32>
    %73 = vector.extract_strided_slice %56 {offsets = [8, 0], sizes = [8, 16], strides = [1, 1]} : vector<16x16xf32> to vector<8x16xf32>
    %74 = vector.extract_strided_slice %57 {offsets = [8, 0], sizes = [8, 16], strides = [1, 1]} : vector<16x16xf32> to vector<8x16xf32>
    %cst_46 = arith.constant dense<0.000000e+00> : vector<16x8xf32>
    %75 = tpu.matmul %72, %73, %cst_46 {dimension_numbers = #tpu.dot_dimension_numbers<[1], [1], [0], [0], [0, 0, 1, 0], [], []>} : vector<16x16xf32>, vector<8x16xf32>, vector<16x8xf32> -> vector<16x8xf32>
    %cst_47 = arith.constant dense<0xFF800000> : vector<16xf32>
    %76 = vector.multi_reduction <maximumf>, %75, %cst_47 [1] : vector<16x8xf32> to vector<16xf32>
    %77 = vector.shape_cast %76 : vector<16xf32> to vector<16x1xf32>
    %78 = vector.broadcast %77 : vector<16x1xf32> to vector<16x8xf32>
    %79 = arith.subf %75, %78 : vector<16x8xf32>
    %80 = math.exp %79 : vector<16x8xf32>
    %cst_48 = arith.constant dense<0.000000e+00> : vector<16xf32>
    %81 = vector.multi_reduction <add>, %80, %cst_48 [1] : vector<16x8xf32> to vector<16xf32>
    %82 = vector.shape_cast %81 : vector<16xf32> to vector<16x1xf32>
    %83 = vector.broadcast %82 : vector<16x1xf32> to vector<16x8xf32>
    %84 = arith.divf %80, %83 : vector<16x8xf32>
    %cst_49 = arith.constant dense<0.000000e+00> : vector<16x16xf32>
    %85 = tpu.matmul %84, %74, %cst_49 {dimension_numbers = #tpu.dot_dimension_numbers<[1], [0], [0], [1], [0, 0, 1, 1], [], []>} : vector<16x8xf32>, vector<8x16xf32>, vector<16x16xf32> -> vector<16x16xf32>
    %86 = tpu.concatenate %71, %85 in 0 : vector<16x16xf32>, vector<16x16xf32> -> vector<32x16xf32>
    %cst_50 = arith.constant dense<0.000000e+00> : vector<32x32xf32>
    %87 = tpu.matmul %86, %54, %cst_50 {dimension_numbers = #tpu.dot_dimension_numbers<[1], [0], [0], [1], [0, 0, 1, 1], [], []>} : vector<32x16xf32>, vector<16x32xf32>, vector<32x32xf32> -> vector<32x32xf32>
    %88 = arith.addf %46, %87 : vector<32x32xf32>
    %c2 = arith.constant 2 : index
    %c0_51 = arith.constant 0 : index
    %c0_52 = arith.constant 0 : index
    %89 = vector.load %arg3[%c2, %c0_51, %c0_52] : memref<4x32x16xf32, #tpu.memory_space<vmem>>, vector<1x32x16xf32>
    %90 = vector.shape_cast %89 : vector<1x32x16xf32> to vector<32x16xf32>
    %c2_53 = arith.constant 2 : index
    %c0_54 = arith.constant 0 : index
    %c0_55 = arith.constant 0 : index
    %91 = vector.load %arg4[%c2_53, %c0_54, %c0_55] : memref<4x48x16xf32, #tpu.memory_space<vmem>>, vector<1x48x16xf32>
    %92 = vector.shape_cast %91 : vector<1x48x16xf32> to vector<48x16xf32>
    %c2_56 = arith.constant 2 : index
    %c0_57 = arith.constant 0 : index
    %c0_58 = arith.constant 0 : index
    %93 = vector.load %arg5[%c2_56, %c0_57, %c0_58] : memref<4x48x16xf32, #tpu.memory_space<vmem>>, vector<1x48x16xf32>
    %94 = vector.shape_cast %93 : vector<1x48x16xf32> to vector<48x16xf32>
    %c2_59 = arith.constant 2 : index
    %c0_60 = arith.constant 0 : index
    %c0_61 = arith.constant 0 : index
    %95 = vector.load %arg6[%c2_59, %c0_60, %c0_61] : memref<4x16x32xf32, #tpu.memory_space<vmem>>, vector<1x16x32xf32>
    %96 = vector.shape_cast %95 : vector<1x16x32xf32> to vector<16x32xf32>
    %cst_62 = arith.constant dense<0.000000e+00> : vector<32x16xf32>
    %97 = tpu.matmul %0, %90, %cst_62 {dimension_numbers = #tpu.dot_dimension_numbers<[1], [0], [0], [1], [0, 0, 1, 1], [], []>} : vector<32x32xf32>, vector<32x16xf32>, vector<32x16xf32> -> vector<32x16xf32>
    %cst_63 = arith.constant dense<0.000000e+00> : vector<16x16xf32>
    %98 = tpu.matmul %1, %92, %cst_63 {dimension_numbers = #tpu.dot_dimension_numbers<[1], [0], [0], [1], [0, 0, 1, 1], [], []>} : vector<16x48xf32>, vector<48x16xf32>, vector<16x16xf32> -> vector<16x16xf32>
    %cst_64 = arith.constant dense<0.000000e+00> : vector<16x16xf32>
    %99 = tpu.matmul %1, %94, %cst_64 {dimension_numbers = #tpu.dot_dimension_numbers<[1], [0], [0], [1], [0, 0, 1, 1], [], []>} : vector<16x48xf32>, vector<48x16xf32>, vector<16x16xf32> -> vector<16x16xf32>
    %100 = vector.extract_strided_slice %97 {offsets = [0, 0], sizes = [16, 16], strides = [1, 1]} : vector<32x16xf32> to vector<16x16xf32>
    %101 = vector.extract_strided_slice %98 {offsets = [0, 0], sizes = [8, 16], strides = [1, 1]} : vector<16x16xf32> to vector<8x16xf32>
    %102 = vector.extract_strided_slice %99 {offsets = [0, 0], sizes = [8, 16], strides = [1, 1]} : vector<16x16xf32> to vector<8x16xf32>
    %cst_65 = arith.constant dense<0.000000e+00> : vector<16x8xf32>
    %103 = tpu.matmul %100, %101, %cst_65 {dimension_numbers = #tpu.dot_dimension_numbers<[1], [1], [0], [0], [0, 0, 1, 0], [], []>} : vector<16x16xf32>, vector<8x16xf32>, vector<16x8xf32> -> vector<16x8xf32>
    %cst_66 = arith.constant dense<0xFF800000> : vector<16xf32>
    %104 = vector.multi_reduction <maximumf>, %103, %cst_66 [1] : vector<16x8xf32> to vector<16xf32>
    %105 = vector.shape_cast %104 : vector<16xf32> to vector<16x1xf32>
    %106 = vector.broadcast %105 : vector<16x1xf32> to vector<16x8xf32>
    %107 = arith.subf %103, %106 : vector<16x8xf32>
    %108 = math.exp %107 : vector<16x8xf32>
    %cst_67 = arith.constant dense<0.000000e+00> : vector<16xf32>
    %109 = vector.multi_reduction <add>, %108, %cst_67 [1] : vector<16x8xf32> to vector<16xf32>
    %110 = vector.shape_cast %109 : vector<16xf32> to vector<16x1xf32>
    %111 = vector.broadcast %110 : vector<16x1xf32> to vector<16x8xf32>
    %112 = arith.divf %108, %111 : vector<16x8xf32>
    %cst_68 = arith.constant dense<0.000000e+00> : vector<16x16xf32>
    %113 = tpu.matmul %112, %102, %cst_68 {dimension_numbers = #tpu.dot_dimension_numbers<[1], [0], [0], [1], [0, 0, 1, 1], [], []>} : vector<16x8xf32>, vector<8x16xf32>, vector<16x16xf32> -> vector<16x16xf32>
    %114 = vector.extract_strided_slice %97 {offsets = [16, 0], sizes = [16, 16], strides = [1, 1]} : vector<32x16xf32> to vector<16x16xf32>
    %115 = vector.extract_strided_slice %98 {offsets = [8, 0], sizes = [8, 16], strides = [1, 1]} : vector<16x16xf32> to vector<8x16xf32>
    %116 = vector.extract_strided_slice %99 {offsets = [8, 0], sizes = [8, 16], strides = [1, 1]} : vector<16x16xf32> to vector<8x16xf32>
    %cst_69 = arith.constant dense<0.000000e+00> : vector<16x8xf32>
    %117 = tpu.matmul %114, %115, %cst_69 {dimension_numbers = #tpu.dot_dimension_numbers<[1], [1], [0], [0], [0, 0, 1, 0], [], []>} : vector<16x16xf32>, vector<8x16xf32>, vector<16x8xf32> -> vector<16x8xf32>
    %cst_70 = arith.constant dense<0xFF800000> : vector<16xf32>
    %118 = vector.multi_reduction <maximumf>, %117, %cst_70 [1] : vector<16x8xf32> to vector<16xf32>
    %119 = vector.shape_cast %118 : vector<16xf32> to vector<16x1xf32>
    %120 = vector.broadcast %119 : vector<16x1xf32> to vector<16x8xf32>
    %121 = arith.subf %117, %120 : vector<16x8xf32>
    %122 = math.exp %121 : vector<16x8xf32>
    %cst_71 = arith.constant dense<0.000000e+00> : vector<16xf32>
    %123 = vector.multi_reduction <add>, %122, %cst_71 [1] : vector<16x8xf32> to vector<16xf32>
    %124 = vector.shape_cast %123 : vector<16xf32> to vector<16x1xf32>
    %125 = vector.broadcast %124 : vector<16x1xf32> to vector<16x8xf32>
    %126 = arith.divf %122, %125 : vector<16x8xf32>
    %cst_72 = arith.constant dense<0.000000e+00> : vector<16x16xf32>
    %127 = tpu.matmul %126, %116, %cst_72 {dimension_numbers = #tpu.dot_dimension_numbers<[1], [0], [0], [1], [0, 0, 1, 1], [], []>} : vector<16x8xf32>, vector<8x16xf32>, vector<16x16xf32> -> vector<16x16xf32>
    %128 = tpu.concatenate %113, %127 in 0 : vector<16x16xf32>, vector<16x16xf32> -> vector<32x16xf32>
    %cst_73 = arith.constant dense<0.000000e+00> : vector<32x32xf32>
    %129 = tpu.matmul %128, %96, %cst_73 {dimension_numbers = #tpu.dot_dimension_numbers<[1], [0], [0], [1], [0, 0, 1, 1], [], []>} : vector<32x16xf32>, vector<16x32xf32>, vector<32x32xf32> -> vector<32x32xf32>
    %130 = arith.addf %88, %129 : vector<32x32xf32>
    %c3 = arith.constant 3 : index
    %c0_74 = arith.constant 0 : index
    %c0_75 = arith.constant 0 : index
    %131 = vector.load %arg3[%c3, %c0_74, %c0_75] : memref<4x32x16xf32, #tpu.memory_space<vmem>>, vector<1x32x16xf32>
    %132 = vector.shape_cast %131 : vector<1x32x16xf32> to vector<32x16xf32>
    %c3_76 = arith.constant 3 : index
    %c0_77 = arith.constant 0 : index
    %c0_78 = arith.constant 0 : index
    %133 = vector.load %arg4[%c3_76, %c0_77, %c0_78] : memref<4x48x16xf32, #tpu.memory_space<vmem>>, vector<1x48x16xf32>
    %134 = vector.shape_cast %133 : vector<1x48x16xf32> to vector<48x16xf32>
    %c3_79 = arith.constant 3 : index
    %c0_80 = arith.constant 0 : index
    %c0_81 = arith.constant 0 : index
    %135 = vector.load %arg5[%c3_79, %c0_80, %c0_81] : memref<4x48x16xf32, #tpu.memory_space<vmem>>, vector<1x48x16xf32>
    %136 = vector.shape_cast %135 : vector<1x48x16xf32> to vector<48x16xf32>
    %c3_82 = arith.constant 3 : index
    %c0_83 = arith.constant 0 : index
    %c0_84 = arith.constant 0 : index
    %137 = vector.load %arg6[%c3_82, %c0_83, %c0_84] : memref<4x16x32xf32, #tpu.memory_space<vmem>>, vector<1x16x32xf32>
    %138 = vector.shape_cast %137 : vector<1x16x32xf32> to vector<16x32xf32>
    %cst_85 = arith.constant dense<0.000000e+00> : vector<32x16xf32>
    %139 = tpu.matmul %0, %132, %cst_85 {dimension_numbers = #tpu.dot_dimension_numbers<[1], [0], [0], [1], [0, 0, 1, 1], [], []>} : vector<32x32xf32>, vector<32x16xf32>, vector<32x16xf32> -> vector<32x16xf32>
    %cst_86 = arith.constant dense<0.000000e+00> : vector<16x16xf32>
    %140 = tpu.matmul %1, %134, %cst_86 {dimension_numbers = #tpu.dot_dimension_numbers<[1], [0], [0], [1], [0, 0, 1, 1], [], []>} : vector<16x48xf32>, vector<48x16xf32>, vector<16x16xf32> -> vector<16x16xf32>
    %cst_87 = arith.constant dense<0.000000e+00> : vector<16x16xf32>
    %141 = tpu.matmul %1, %136, %cst_87 {dimension_numbers = #tpu.dot_dimension_numbers<[1], [0], [0], [1], [0, 0, 1, 1], [], []>} : vector<16x48xf32>, vector<48x16xf32>, vector<16x16xf32> -> vector<16x16xf32>
    %142 = vector.extract_strided_slice %139 {offsets = [0, 0], sizes = [16, 16], strides = [1, 1]} : vector<32x16xf32> to vector<16x16xf32>
    %143 = vector.extract_strided_slice %140 {offsets = [0, 0], sizes = [8, 16], strides = [1, 1]} : vector<16x16xf32> to vector<8x16xf32>
    %144 = vector.extract_strided_slice %141 {offsets = [0, 0], sizes = [8, 16], strides = [1, 1]} : vector<16x16xf32> to vector<8x16xf32>
    %cst_88 = arith.constant dense<0.000000e+00> : vector<16x8xf32>
    %145 = tpu.matmul %142, %143, %cst_88 {dimension_numbers = #tpu.dot_dimension_numbers<[1], [1], [0], [0], [0, 0, 1, 0], [], []>} : vector<16x16xf32>, vector<8x16xf32>, vector<16x8xf32> -> vector<16x8xf32>
    %cst_89 = arith.constant dense<0xFF800000> : vector<16xf32>
    %146 = vector.multi_reduction <maximumf>, %145, %cst_89 [1] : vector<16x8xf32> to vector<16xf32>
    %147 = vector.shape_cast %146 : vector<16xf32> to vector<16x1xf32>
    %148 = vector.broadcast %147 : vector<16x1xf32> to vector<16x8xf32>
    %149 = arith.subf %145, %148 : vector<16x8xf32>
    %150 = math.exp %149 : vector<16x8xf32>
    %cst_90 = arith.constant dense<0.000000e+00> : vector<16xf32>
    %151 = vector.multi_reduction <add>, %150, %cst_90 [1] : vector<16x8xf32> to vector<16xf32>
    %152 = vector.shape_cast %151 : vector<16xf32> to vector<16x1xf32>
    %153 = vector.broadcast %152 : vector<16x1xf32> to vector<16x8xf32>
    %154 = arith.divf %150, %153 : vector<16x8xf32>
    %cst_91 = arith.constant dense<0.000000e+00> : vector<16x16xf32>
    %155 = tpu.matmul %154, %144, %cst_91 {dimension_numbers = #tpu.dot_dimension_numbers<[1], [0], [0], [1], [0, 0, 1, 1], [], []>} : vector<16x8xf32>, vector<8x16xf32>, vector<16x16xf32> -> vector<16x16xf32>
    %156 = vector.extract_strided_slice %139 {offsets = [16, 0], sizes = [16, 16], strides = [1, 1]} : vector<32x16xf32> to vector<16x16xf32>
    %157 = vector.extract_strided_slice %140 {offsets = [8, 0], sizes = [8, 16], strides = [1, 1]} : vector<16x16xf32> to vector<8x16xf32>
    %158 = vector.extract_strided_slice %141 {offsets = [8, 0], sizes = [8, 16], strides = [1, 1]} : vector<16x16xf32> to vector<8x16xf32>
    %cst_92 = arith.constant dense<0.000000e+00> : vector<16x8xf32>
    %159 = tpu.matmul %156, %157, %cst_92 {dimension_numbers = #tpu.dot_dimension_numbers<[1], [1], [0], [0], [0, 0, 1, 0], [], []>} : vector<16x16xf32>, vector<8x16xf32>, vector<16x8xf32> -> vector<16x8xf32>
    %cst_93 = arith.constant dense<0xFF800000> : vector<16xf32>
    %160 = vector.multi_reduction <maximumf>, %159, %cst_93 [1] : vector<16x8xf32> to vector<16xf32>
    %161 = vector.shape_cast %160 : vector<16xf32> to vector<16x1xf32>
    %162 = vector.broadcast %161 : vector<16x1xf32> to vector<16x8xf32>
    %163 = arith.subf %159, %162 : vector<16x8xf32>
    %164 = math.exp %163 : vector<16x8xf32>
    %cst_94 = arith.constant dense<0.000000e+00> : vector<16xf32>
    %165 = vector.multi_reduction <add>, %164, %cst_94 [1] : vector<16x8xf32> to vector<16xf32>
    %166 = vector.shape_cast %165 : vector<16xf32> to vector<16x1xf32>
    %167 = vector.broadcast %166 : vector<16x1xf32> to vector<16x8xf32>
    %168 = arith.divf %164, %167 : vector<16x8xf32>
    %cst_95 = arith.constant dense<0.000000e+00> : vector<16x16xf32>
    %169 = tpu.matmul %168, %158, %cst_95 {dimension_numbers = #tpu.dot_dimension_numbers<[1], [0], [0], [1], [0, 0, 1, 1], [], []>} : vector<16x8xf32>, vector<8x16xf32>, vector<16x16xf32> -> vector<16x16xf32>
    %170 = tpu.concatenate %155, %169 in 0 : vector<16x16xf32>, vector<16x16xf32> -> vector<32x16xf32>
    %cst_96 = arith.constant dense<0.000000e+00> : vector<32x32xf32>
    %171 = tpu.matmul %170, %138, %cst_96 {dimension_numbers = #tpu.dot_dimension_numbers<[1], [0], [0], [1], [0, 0, 1, 1], [], []>} : vector<32x16xf32>, vector<16x32xf32>, vector<32x32xf32> -> vector<32x32xf32>
    %172 = arith.addf %130, %171 : vector<32x32xf32>
    %c0_97 = arith.constant 0 : index
    %c0_98 = arith.constant 0 : index
    %173 = vector.load %arg8[%c0_97, %c0_98] : memref<32x32xf32, #tpu.memory_space<vmem>>, vector<32x32xf32>
    tpu.vector_store %arg8[%c0_97, %c0_98], %172 {strides = array<i32>} : memref<32x32xf32, #tpu.memory_space<vmem>>, vector<32x32xf32>,
    return
  }
  func.func @transform_0(%arg0: i32) -> (i32, i32) {
    %c0_i32 = arith.constant 0 : i32
    %c0_i32_0 = arith.constant 0 : i32
    %c0_i32_1 = arith.constant 0 : i32
    return %c0_i32, %c0_i32_0 : i32, i32
  }
  func.func @transform_1(%arg0: i32) -> (i32, i32) {
    %c0_i32 = arith.constant 0 : i32
    %c0_i32_0 = arith.constant 0 : i32
    %c0_i32_1 = arith.constant 0 : i32
    return %c0_i32, %c0_i32_0 : i32, i32
  }
  func.func @transform_2(%arg0: i32) -> (i32, i32, i32) {
    %c0_i32 = arith.constant 0 : i32
    %c0_i32_0 = arith.constant 0 : i32
    %c0_i32_1 = arith.constant 0 : i32
    %c0_i32_2 = arith.constant 0 : i32
    return %c0_i32, %c0_i32_0, %c0_i32_1 : i32, i32, i32
  }
  func.func @transform_3(%arg0: i32) -> (i32, i32, i32) {
    %c0_i32 = arith.constant 0 : i32
    %c0_i32_0 = arith.constant 0 : i32
    %c0_i32_1 = arith.constant 0 : i32
    %c0_i32_2 = arith.constant 0 : i32
    return %c0_i32, %c0_i32_0, %c0_i32_1 : i32, i32, i32
  }
  func.func @transform_4(%arg0: i32) -> (i32, i32, i32) {
    %c0_i32 = arith.constant 0 : i32
    %c0_i32_0 = arith.constant 0 : i32
    %c0_i32_1 = arith.constant 0 : i32
    %c0_i32_2 = arith.constant 0 : i32
    return %c0_i32, %c0_i32_0, %c0_i32_1 : i32, i32, i32
  }
  func.func @transform_5(%arg0: i32) -> (i32, i32, i32) {
    %c0_i32 = arith.constant 0 : i32
    %c0_i32_0 = arith.constant 0 : i32
    %c0_i32_1 = arith.constant 0 : i32
    %c0_i32_2 = arith.constant 0 : i32
    return %c0_i32, %c0_i32_0, %c0_i32_1 : i32, i32, i32
  }
  func.func @transform_6(%arg0: i32) -> (i32, i32) {
    %c0_i32 = arith.constant 0 : i32
    %c0_i32_0 = arith.constant 0 : i32
    %c0_i32_1 = arith.constant 0 : i32
    return %c0_i32, %c0_i32_0 : i32, i32
  }
  func.func @transform_7(%arg0: i32) -> (i32, i32) {
    %c0_i32 = arith.constant 0 : i32
    %c0_i32_0 = arith.constant 0 : i32
    %c0_i32_1 = arith.constant 0 : i32
    return %c0_i32, %c0_i32_0 : i32, i32
  }
}

</mosaic_0001>

<llo_original>
// kernel: tpu_custom_call.1
$region0: #{tpu_custom_call.1}
  #allocation0 [shape = 'u32[]', space=smem, size = 0x4, offset = 0x4, fixed_abs, tag = 'smem constant byte address 0x4 - core index']
  #allocation1 [shape = 'u32[144,128]{1,0:T(1,128)}', space=vmem, size = 0x12000, scoped, tag = 'internal scratch']
  %s0 = inlined_call_operand.vmem [shape: f32[32,32], index: 0, kind: input, shape index: {}]
  %s1 = inlined_call_operand.vmem [shape: f32[16,48], index: 1, kind: input, shape index: {}]
  %s2 = inlined_call_operand.vmem [shape: f32[4,32,16], index: 2, kind: input, shape index: {}]
  %s3 = inlined_call_operand.vmem [shape: f32[4,48,16], index: 3, kind: input, shape index: {}]
  %s4 = inlined_call_operand.vmem [shape: f32[4,48,16], index: 4, kind: input, shape index: {}]
  %s5 = inlined_call_operand.vmem [shape: f32[4,16,32], index: 5, kind: input, shape index: {}]
  %s6 = inlined_call_operand.vmem [shape: f32[1,32], index: 6, kind: input, shape index: {}]
  %s7 = inlined_call_operand.hbm [shape: f32[32,32], index: 7, kind: output, shape index: {}]
  %s8 = sld [smem:[#allocation0]]
  $region38: #{tpu_custom_call.1} parent=0
    _
  %s10 = ssub.s32 1, %s8
  %s11 = scalar_select 0, %s10, %s8
  $region1: #{tpu_custom_call.1} parent=0
    #allocation2 [shape = 'u8[16384]{0}', space=vmem, size = 0x4000, scoped, tag = 'output window, operand 0, single buffered']
    #allocation3 [shape = 's32[1]{0}', space=sflag, size = 0x4, scoped, tag = 'scoped memory for tpu_custom_call.1']
    %12 = vsyncpa [#allocation3], 0
    // Predicated region
    $region2: #{tpu_custom_call.1} parent=1 // pred_check
      _
    $region3: #{tpu_custom_call.1} parent=1 // pred_check_branch
      %14 = sbr.rel (0) target = $region5
    $region4: #{tpu_custom_call.1} parent=1 // pred_region
      _
    $region5: #{tpu_custom_call.1} parent=1 // pred_fallthru
      _
    // Predicated region
    $region6: #{tpu_custom_call.1} parent=1 // pred_check
      _
    $region7: #{tpu_custom_call.1} parent=1 // pred_check_branch
      %16 = sbr.rel (0) target = $region9
    $region8: #{tpu_custom_call.1} parent=1 // pred_region
      _
    $region9: #{tpu_custom_call.1} parent=1 // pred_fallthru
      _
    // Predicated region
    $region10: #{tpu_custom_call.1} parent=1 // pred_check
      _
    $region11: #{tpu_custom_call.1} parent=1 // pred_check_branch
      %18 = sbr.rel (0) target = $region13
    $region12: #{tpu_custom_call.1} parent=1 // pred_region
      _
    $region13: #{tpu_custom_call.1} parent=1 // pred_fallthru
      _
    // Predicated region
    $region14: #{tpu_custom_call.1} parent=1 // pred_check
      _
    $region15: #{tpu_custom_call.1} parent=1 // pred_check_branch
      %20 = sbr.rel (0) target = $region17
    $region16: #{tpu_custom_call.1} parent=1 // pred_region
      _
    $region17: #{tpu_custom_call.1} parent=1 // pred_fallthru
      _
    // Predicated region
    $region18: #{tpu_custom_call.1} parent=1 // pred_check
      _
    $region19: #{tpu_custom_call.1} parent=1 // pred_check_branch
      %22 = sbr.rel (0) target = $region21
    $region20: #{tpu_custom_call.1} parent=1 // pred_region
      _
    $region21: #{tpu_custom_call.1} parent=1 // pred_fallthru
      _
    // Predicated region
    $region22: #{tpu_custom_call.1} parent=1 // pred_check
      _
    $region23: #{tpu_custom_call.1} parent=1 // pred_check_branch
      %24 = sbr.rel (0) target = $region25
    $region24: #{tpu_custom_call.1} parent=1 // pred_region
      _
    $region25: #{tpu_custom_call.1} parent=1 // pred_fallthru
      _
    // Predicated region
    $region26: #{tpu_custom_call.1} parent=1 // pred_check
      _
    $region27: #{tpu_custom_call.1} parent=1 // pred_check_branch
      %26 = sbr.rel (0) target = $region29
    $region28: #{tpu_custom_call.1} parent=1 // pred_region
      _
    $region29: #{tpu_custom_call.1} parent=1 // pred_fallthru
      _
    %v27 = vld [vmem:[%s0] sm:$0xff]
    %v28 = vld [vmem:[%s0 + $0x8] sm:$0xff]
    %v29 = vld [vmem:[%s0 + $0x10] sm:$0xff]
    %v30 = vld [vmem:[%s0 + $0x18] sm:$0xff]
    %v31 = vld [vmem:[%s1] sm:$0xff]
    %v32 = vld [vmem:[%s1 + $0x8] sm:$0xff]
    %v33 = vld [vmem:[%s6] sm:$0x1]
    %v35 = vlaneseq
    %v36 = vshrl.u32 %v35, 7
    %v37 = vsub.s32 0, %v36
    %v38 = vrot.slane %v33, %v37
    %v40 = vld [vmem:[%s2] sm:$0xff]
    %v41 = vld [vmem:[%s2 + $0x8] sm:$0xff]
    %v42 = vld [vmem:[%s2 + $0x10] sm:$0xff]
    %v43 = vld [vmem:[%s2 + $0x18] sm:$0xff]
    %v44 = vld [vmem:[%s3] sm:$0xff]
    %v45 = vld [vmem:[%s3 + $0x8] sm:$0xff]
    %v46 = vld [vmem:[%s3 + $0x10] sm:$0xff]
    %v47 = vld [vmem:[%s3 + $0x18] sm:$0xff]
    %v48 = vld [vmem:[%s3 + $0x20] sm:$0xff]
    %v49 = vld [vmem:[%s3 + $0x28] sm:$0xff]
    %v50 = vld [vmem:[%s4] sm:$0xff]
    %v51 = vld [vmem:[%s4 + $0x8] sm:$0xff]
    %v52 = vld [vmem:[%s4 + $0x10] sm:$0xff]
    %v53 = vld [vmem:[%s4 + $0x18] sm:$0xff]
    %v54 = vld [vmem:[%s4 + $0x20] sm:$0xff]
    %v55 = vld [vmem:[%s4 + $0x28] sm:$0xff]
    %v56 = vld [vmem:[%s5] sm:$0xff]
    %v57 = vld [vmem:[%s5 + $0x8] sm:$0xff]
    %vm58 = vcmask 261120
    %v60 = vsel %vm58, %v27, 0
    %v63 = vsel %vm58, %v28, 0
    %v66 = vsel %vm58, %v29, 0
    %v69 = vsel %vm58, %v30, 0
    %71 = vmatprep.subr.mxu0 0.0
    %72 = vmatpush1.msra.mxu0 %v40
    %73 = vmatprep.subr.mxu0 0.0
    %74 = vmatpush1.msra.mxu0 %v41
    %75 = vmatprep.subr.mxu0 0.0
    %76 = vmatpush1.msra.mxu0 %v42
    %77 = vmatprep.subr.mxu0 0.0
    %78 = vmatpush1.msra.mxu0 %v43
    %79 = vmatprep.subr.mxu0 0.0
    %80 = vmatpush1.msra.mxu0 0.0
    %81 = vmatprep.subr.mxu0 0.0
    %82 = vmatpush1.msra.mxu0 0.0
    %83 = vmatprep.subr.mxu0 0.0
    %84 = vmatpush1.msra.mxu0 0.0
    %85 = vmatprep.subr.mxu0 0.0
    %86 = vmatpush1.msra.mxu0 0.0
    %87 = vmatprep.subr.mxu0 0.0
    %88 = vmatpush1.msra.mxu0 0.0
    %89 = vmatprep.subr.mxu0 0.0
    %90 = vmatpush1.msra.mxu0 0.0
    %91 = vmatprep.subr.mxu0 0.0
    %92 = vmatpush1.msra.mxu0 0.0
    %93 = vmatprep.subr.mxu0 0.0
    %94 = vmatpush1.msra.mxu0 0.0
    %95 = vmatprep.subr.mxu0 0.0
    %96 = vmatpush1.msra.mxu0 0.0
    %97 = vmatprep.subr.mxu0 0.0
    %98 = vmatpush1.msra.mxu0 0.0
    %99 = vmatprep.subr.mxu0 0.0
    %100 = vmatpush1.msra.mxu0 0.0
    %101 = vmatprep.subr.mxu0 0.0
    %102 = vmatpush1.msra.mxu0 0.0
    %103 = vmatprep.subr.mxu0 0.0
    %104 = vmatpush1.msra.mxu0 0.0
    %105 = vmatprep.subr.mxu0 0.0
    %106 = vmatpush1.msra.mxu0 0.0
    %107 = vmatprep.subr.mxu0 0.0
    %108 = vmatpush1.msra.mxu0 0.0
    %109 = vmatprep.subr.mxu0 0.0
    %110 = vmatpush1.msra.mxu0 0.0
    %111 = vmatprep.subr.mxu0 0.0
    %112 = vmatpush1.msra.mxu0 0.0
    %113 = vmatprep.subr.mxu0 0.0
    %114 = vmatpush1.msra.mxu0 0.0
    %115 = vmatprep.subr.mxu0 0.0
    %116 = vmatpush1.msra.mxu0 0.0
    %117 = vmatprep.subr.mxu0 0.0
    %118 = vmatpush1.msra.mxu0 0.0
    %119 = vmatprep.subr.mxu0 0.0
    %120 = vmatpush1.msra.mxu0 0.0
    %121 = vmatprep.subr.mxu0 0.0
    %122 = vmatpush1.msra.mxu0 0.0
    %123 = vmatprep.subr.mxu0 0.0
    %124 = vmatpush1.msra.mxu0 0.0
    %125 = vmatprep.subr.mxu0 0.0
    %126 = vmatpush1.msra.mxu0 0.0
    %127 = vmatprep.subr.mxu0 0.0
    %128 = vmatpush1.msra.mxu0 0.0
    %129 = vmatprep.subr.mxu0 0.0
    %130 = vmatpush1.msra.mxu0 0.0
    %131 = vmatprep.subr.mxu0 0.0
    %132 = vmatpush1.msra.mxu0 0.0
    %133 = vmatprep.subr.mxu0 0.0
    %134 = vmatpush1.msra.mxu0 0.0
    %135 = vmatprep.mubr.f32.mxu0 0.0
    %136 = vmatmul.mubr.f32.gmra.mrb[0].mxu0 %v60
    %v137 = vpop.f32.mrb[0].mxu0
    %v138 = vadd.f32 0.0, %v137
    %v139 = vpop.f32.mrb[0].mxu0
    %140 = vmatprep.mubr.f32.mxu0 0.0
    %141 = vmatmul.mubr.f32.gmra.mrb[0].mxu0 %v63
    %v142 = vpop.f32.mrb[0].mxu0
    %v143 = vadd.f32 0.0, %v142
    %v144 = vpop.f32.mrb[0].mxu0
    %145 = vmatprep.mubr.f32.mxu0 0.0
    %146 = vmatmul.mubr.f32.gmra.mrb[0].mxu0 %v66
    %v147 = vpop.f32.mrb[0].mxu0
    %v148 = vadd.f32 0.0, %v147
    %v149 = vpop.f32.mrb[0].mxu0
    %150 = vmatprep.mubr.f32.mxu0 0.0
    %151 = vmatmul.mubr.f32.gmra.mrb[0].mxu0 %v69
    %v152 = vpop.f32.mrb[0].mxu0
    %v153 = vadd.f32 0.0, %v152
    %v154 = vpop.f32.mrb[0].mxu0
    %155 = vdwg.mxu0
    %vm156 = vcmask 392192
    %v158 = vsel %vm156, %v31, 0
    %v161 = vsel %vm156, %v32, 0
    %163 = vmatprep.subr.mxu0 0.0
    %164 = vmatpush1.msra.mxu0 %v44
    %165 = vmatprep.subr.mxu0 0.0
    %166 = vmatpush1.msra.mxu0 %v45
    %167 = vmatprep.subr.mxu0 0.0
    %168 = vmatpush1.msra.mxu0 %v46
    %169 = vmatprep.subr.mxu0 0.0
    %170 = vmatpush1.msra.mxu0 %v47
    %171 = vmatprep.subr.mxu0 0.0
    %172 = vmatpush1.msra.mxu0 %v48
    %173 = vmatprep.subr.mxu0 0.0
    %174 = vmatpush1.msra.mxu0 %v49
    %175 = vmatprep.subr.mxu0 0.0
    %176 = vmatpush1.msra.mxu0 0.0
    %177 = vmatprep.subr.mxu0 0.0
    %178 = vmatpush1.msra.mxu0 0.0
    %179 = vmatprep.subr.mxu0 0.0
    %180 = vmatpush1.msra.mxu0 0.0
    %181 = vmatprep.subr.mxu0 0.0
    %182 = vmatpush1.msra.mxu0 0.0
    %183 = vmatprep.subr.mxu0 0.0
    %184 = vmatpush1.msra.mxu0 0.0
    %185 = vmatprep.subr.mxu0 0.0
    %186 = vmatpush1.msra.mxu0 0.0
    %187 = vmatprep.subr.mxu0 0.0
    %188 = vmatpush1.msra.mxu0 0.0
    %189 = vmatprep.subr.mxu0 0.0
    %190 = vmatpush1.msra.mxu0 0.0
    %191 = vmatprep.subr.mxu0 0.0
    %192 = vmatpush1.msra.mxu0 0.0
    %193 = vmatprep.subr.mxu0 0.0
    %194 = vmatpush1.msra.mxu0 0.0
    %195 = vmatprep.subr.mxu0 0.0
    %196 = vmatpush1.msra.mxu0 0.0
    %197 = vmatprep.subr.mxu0 0.0
    %198 = vmatpush1.msra.mxu0 0.0
    %199 = vmatprep.subr.mxu0 0.0
    %200 = vmatpush1.msra.mxu0 0.0
    %201 = vmatprep.subr.mxu0 0.0
    %202 = vmatpush1.msra.mxu0 0.0
    %203 = vmatprep.subr.mxu0 0.0
    %204 = vmatpush1.msra.mxu0 0.0
    %205 = vmatprep.subr.mxu0 0.0
    %206 = vmatpush1.msra.mxu0 0.0
    %207 = vmatprep.subr.mxu0 0.0
    %208 = vmatpush1.msra.mxu0 0.0
    %209 = vmatprep.subr.mxu0 0.0
    %210 = vmatpush1.msra.mxu0 0.0
    %211 = vmatprep.subr.mxu0 0.0
    %212 = vmatpush1.msra.mxu0 0.0
    %213 = vmatprep.subr.mxu0 0.0
    %214 = vmatpush1.msra.mxu0 0.0
    %215 = vmatprep.subr.mxu0 0.0
    %216 = vmatpush1.msra.mxu0 0.0
    %217 = vmatprep.subr.mxu0 0.0
    %218 = vmatpush1.msra.mxu0 0.0
    %219 = vmatprep.subr.mxu0 0.0
    %220 = vmatpush1.msra.mxu0 0.0
    %221 = vmatprep.subr.mxu0 0.0
    %222 = vmatpush1.msra.mxu0 0.0
    %223 = vmatprep.subr.mxu0 0.0
    %224 = vmatpush1.msra.mxu0 0.0
    %225 = vmatprep.subr.mxu0 0.0
    %226 = vmatpush1.msra.mxu0 0.0
    %227 = vmatprep.mubr.f32.mxu0 0.0
    %228 = vmatmul.mubr.f32.gmra.mrb[0].mxu0 %v158
    %v229 = vpop.f32.mrb[0].mxu0
    %v230 = vadd.f32 0.0, %v229
    %v231 = vpop.f32.mrb[0].mxu0
    %232 = vmatprep.mubr.f32.mxu0 0.0
    %233 = vmatmul.mubr.f32.gmra.mrb[0].mxu0 %v161
    %v234 = vpop.f32.mrb[0].mxu0
    %v235 = vadd.f32 0.0, %v234
    %v236 = vpop.f32.mrb[0].mxu0
    %237 = vdwg.mxu0
    %238 = vmatprep.subr.mxu0 0.0
    %239 = vmatpush1.msra.mxu0 %v50
    %240 = vmatprep.subr.mxu0 0.0
    %241 = vmatpush1.msra.mxu0 %v51
    %242 = vmatprep.subr.mxu0 0.0
    %243 = vmatpush1.msra.mxu0 %v52
    %244 = vmatprep.subr.mxu0 0.0
    %245 = vmatpush1.msra.mxu0 %v53
    %246 = vmatprep.subr.mxu0 0.0
    %247 = vmatpush1.msra.mxu0 %v54
    %248 = vmatprep.subr.mxu0 0.0
    %249 = vmatpush1.msra.mxu0 %v55
    %250 = vmatprep.subr.mxu0 0.0
    %251 = vmatpush1.msra.mxu0 0.0
    %252 = vmatprep.subr.mxu0 0.0
    %253 = vmatpush1.msra.mxu0 0.0
    %254 = vmatprep.subr.mxu0 0.0
    %255 = vmatpush1.msra.mxu0 0.0
    %256 = vmatprep.subr.mxu0 0.0
    %257 = vmatpush1.msra.mxu0 0.0
    %258 = vmatprep.subr.mxu0 0.0
    %259 = vmatpush1.msra.mxu0 0.0
    %260 = vmatprep.subr.mxu0 0.0
    %261 = vmatpush1.msra.mxu0 0.0
    %262 = vmatprep.subr.mxu0 0.0
    %263 = vmatpush1.msra.mxu0 0.0
    %264 = vmatprep.subr.mxu0 0.0
    %265 = vmatpush1.msra.mxu0 0.0
    %266 = vmatprep.subr.mxu0 0.0
    %267 = vmatpush1.msra.mxu0 0.0
    %268 = vmatprep.subr.mxu0 0.0
    %269 = vmatpush1.msra.mxu0 0.0
    %270 = vmatprep.subr.mxu0 0.0
    %271 = vmatpush1.msra.mxu0 0.0
    %272 = vmatprep.subr.mxu0 0.0
    %273 = vmatpush1.msra.mxu0 0.0
    %274 = vmatprep.subr.mxu0 0.0
    %275 = vmatpush1.msra.mxu0 0.0
    %276 = vmatprep.subr.mxu0 0.0
    %277 = vmatpush1.msra.mxu0 0.0
    %278 = vmatprep.subr.mxu0 0.0
    %279 = vmatpush1.msra.mxu0 0.0
    %280 = vmatprep.subr.mxu0 0.0
    %281 = vmatpush1.msra.mxu0 0.0
    %282 = vmatprep.subr.mxu0 0.0
    %283 = vmatpush1.msra.mxu0 0.0
    %284 = vmatprep.subr.mxu0 0.0
    %285 = vmatpush1.msra.mxu0 0.0
    %286 = vmatprep.subr.mxu0 0.0
    %287 = vmatpush1.msra.mxu0 0.0
    %288 = vmatprep.subr.mxu0 0.0
    %289 = vmatpush1.msra.mxu0 0.0
    %290 = vmatprep.subr.mxu0 0.0
    %291 = vmatpush1.msra.mxu0 0.0
    %292 = vmatprep.subr.mxu0 0.0
    %293 = vmatpush1.msra.mxu0 0.0
    %294 = vmatprep.subr.mxu0 0.0
    %295 = vmatpush1.msra.mxu0 0.0
    %296 = vmatprep.subr.mxu0 0.0
    %297 = vmatpush1.msra.mxu0 0.0
    %298 = vmatprep.subr.mxu0 0.0
    %299 = vmatpush1.msra.mxu0 0.0
    %300 = vmatprep.subr.mxu0 0.0
    %301 = vmatpush1.msra.mxu0 0.0
    %302 = vmatprep.mubr.f32.mxu0 0.0
    %303 = vmatmul.mubr.f32.gmra.mrb[0].mxu0 %v158
    %v304 = vpop.f32.mrb[0].mxu0
    %v305 = vadd.f32 0.0, %v304
    %v306 = vpop.f32.mrb[0].mxu0
    %307 = vmatprep.mubr.f32.mxu0 0.0
    %308 = vmatmul.mubr.f32.gmra.mrb[0].mxu0 %v161
    %v309 = vpop.f32.mrb[0].mxu0
    %v310 = vadd.f32 0.0, %v309
    %v311 = vpop.f32.mrb[0].mxu0
    %312 = vdwg.mxu0
    %vm313 = vcmask 130048
    %v315 = vsel %vm313, %v138, 0
    %v318 = vsel %vm313, %v143, 0
    %v321 = vsel %vm313, %v230, 0
    %323 = vmatprep.subr.mxu0 0.0
    %324 = vmatpush1.xpose.msra.mxu0 %v321
    %325 = vmatprep.subr.mxu0 0.0
    %326 = vmatpush1.xpose.msra.mxu0 0.0
    %327 = vmatprep.subr.mxu0 0.0
    %328 = vmatpush1.xpose.msra.mxu0 0.0
    %329 = vmatprep.subr.mxu0 0.0
    %330 = vmatpush1.xpose.msra.mxu0 0.0
    %331 = vmatprep.subr.mxu0 0.0
    %332 = vmatpush1.xpose.msra.mxu0 0.0
    %333 = vmatprep.subr.mxu0 0.0
    %334 = vmatpush1.xpose.msra.mxu0 0.0
    %335 = vmatprep.subr.mxu0 0.0
    %336 = vmatpush1.xpose.msra.mxu0 0.0
    %337 = vmatprep.subr.mxu0 0.0
    %338 = vmatpush1.xpose.msra.mxu0 0.0
    %339 = vmatprep.subr.mxu0 0.0
    %340 = vmatpush1.xpose.msra.mxu0 0.0
    %341 = vmatprep.subr.mxu0 0.0
    %342 = vmatpush1.xpose.msra.mxu0 0.0
    %343 = vmatprep.subr.mxu0 0.0
    %344 = vmatpush1.xpose.msra.mxu0 0.0
    %345 = vmatprep.subr.mxu0 0.0
    %346 = vmatpush1.xpose.msra.mxu0 0.0
    %347 = vmatprep.subr.mxu0 0.0
    %348 = vmatpush1.xpose.msra.mxu0 0.0
    %349 = vmatprep.subr.mxu0 0.0
    %350 = vmatpush1.xpose.msra.mxu0 0.0
    %351 = vmatprep.subr.mxu0 0.0
    %352 = vmatpush1.xpose.msra.mxu0 0.0
    %353 = vmatprep.subr.mxu0 0.0
    %354 = vmatpush1.xpose.msra.mxu0 0.0
    %355 = vmatprep.subr.mxu0 0.0
    %356 = vmatpush1.xpose.msra.mxu0 0.0
    %357 = vmatprep.subr.mxu0 0.0
    %358 = vmatpush1.xpose.msra.mxu0 0.0
    %359 = vmatprep.subr.mxu0 0.0
    %360 = vmatpush1.xpose.msra.mxu0 0.0
    %361 = vmatprep.subr.mxu0 0.0
    %362 = vmatpush1.xpose.msra.mxu0 0.0
    %363 = vmatprep.subr.mxu0 0.0
    %364 = vmatpush1.xpose.msra.mxu0 0.0
    %365 = vmatprep.subr.mxu0 0.0
    %366 = vmatpush1.xpose.msra.mxu0 0.0
    %367 = vmatprep.subr.mxu0 0.0
    %368 = vmatpush1.xpose.msra.mxu0 0.0
    %369 = vmatprep.subr.mxu0 0.0
    %370 = vmatpush1.xpose.msra.mxu0 0.0
    %371 = vmatprep.subr.mxu0 0.0
    %372 = vmatpush1.xpose.msra.mxu0 0.0
    %373 = vmatprep.subr.mxu0 0.0
    %374 = vmatpush1.xpose.msra.mxu0 0.0
    %375 = vmatprep.subr.mxu0 0.0
    %376 = vmatpush1.xpose.msra.mxu0 0.0
    %377 = vmatprep.subr.mxu0 0.0
    %378 = vmatpush1.xpose.msra.mxu0 0.0
    %379 = vmatprep.subr.mxu0 0.0
    %380 = vmatpush1.xpose.msra.mxu0 0.0
    %381 = vmatprep.subr.mxu0 0.0
    %382 = vmatpush1.xpose.msra.mxu0 0.0
    %383 = vmatprep.subr.mxu0 0.0
    %384 = vmatpush1.xpose.msra.mxu0 0.0
    %385 = vmatprep.subr.mxu0 0.0
    %386 = vmatpush1.xpose.msra.mxu0 0.0
    %387 = vmatprep.mubr.f32.mxu0 0.0
    %388 = vmatmul.mubr.f32.gmra.mrb[0].mxu0 %v315
    %v389 = vpop.f32.mrb[0].mxu0
    %v390 = vadd.f32 0.0, %v389
    %v391 = vpop.f32.mrb[0].mxu0
    %392 = vmatprep.mubr.f32.mxu0 0.0
    %393 = vmatmul.mubr.f32.gmra.mrb[0].mxu0 %v318
    %v394 = vpop.f32.mrb[0].mxu0
    %v395 = vadd.f32 0.0, %v394
    %v396 = vpop.f32.mrb[0].mxu0
    %397 = vdwg.mxu0
    %vm398 = vcmask 64512
    %v399 = vsel %vm398, %v390, -inf
    %400 = vmax.xlane.f32.xlu0 %v399
    %v401 = vpop.xlane.xlu0 %400
    %v402 = vsel %vm398, %v395, -inf
    %403 = vmax.xlane.f32.xlu0 %v402
    %v404 = vpop.xlane.xlu0 %403
    %v405 = vsub.f32 %v390, %v401
    %v406 = vsub.f32 %v395, %v404
    %v407 = vmul.f32 %v405, 1.442695
    %v408 = vpow.pop %v407
    %v409 = vmul.f32 %v406, 1.442695
    %v410 = vpow.pop %v409
    %v411 = vsel %vm398, %v408, 0.0
    %412 = vadd.xlane.f32.xlu0 %v411
    %v413 = vpop.xlane.xlu0 %412
    %v414 = vsel %vm398, %v410, 0.0
    %415 = vadd.xlane.f32.xlu0 %v414
    %v416 = vpop.xlane.xlu0 %415
    %v417 = vrcp.pop %v413
    %v418 = vmul.f32 %v408, %v417
    %v419 = vrcp.pop %v416
    %v420 = vmul.f32 %v410, %v419
    %v422 = vsel %vm398, %v418, 0
    %v425 = vsel %vm398, %v420, 0
    %427 = vmatprep.subr.mxu0 0.0
    %428 = vmatpush1.msra.mxu0 %v305
    %429 = vmatprep.subr.mxu0 0.0
    %430 = vmatpush1.msra.mxu0 0.0
    %431 = vmatprep.subr.mxu0 0.0
    %432 = vmatpush1.msra.mxu0 0.0
    %433 = vmatprep.subr.mxu0 0.0
    %434 = vmatpush1.msra.mxu0 0.0
    %435 = vmatprep.subr.mxu0 0.0
    %436 = vmatpush1.msra.mxu0 0.0
    %437 = vmatprep.subr.mxu0 0.0
    %438 = vmatpush1.msra.mxu0 0.0
    %439 = vmatprep.subr.mxu0 0.0
    %440 = vmatpush1.msra.mxu0 0.0
    %441 = vmatprep.subr.mxu0 0.0
    %442 = vmatpush1.msra.mxu0 0.0
    %443 = vmatprep.subr.mxu0 0.0
    %444 = vmatpush1.msra.mxu0 0.0
    %445 = vmatprep.subr.mxu0 0.0
    %446 = vmatpush1.msra.mxu0 0.0
    %447 = vmatprep.subr.mxu0 0.0
    %448 = vmatpush1.msra.mxu0 0.0
    %449 = vmatprep.subr.mxu0 0.0
    %450 = vmatpush1.msra.mxu0 0.0
    %451 = vmatprep.subr.mxu0 0.0
    %452 = vmatpush1.msra.mxu0 0.0
    %453 = vmatprep.subr.mxu0 0.0
    %454 = vmatpush1.msra.mxu0 0.0
    %455 = vmatprep.subr.mxu0 0.0
    %456 = vmatpush1.msra.mxu0 0.0
    %457 = vmatprep.subr.mxu0 0.0
    %458 = vmatpush1.msra.mxu0 0.0
    %459 = vmatprep.subr.mxu0 0.0
    %460 = vmatpush1.msra.mxu0 0.0
    %461 = vmatprep.subr.mxu0 0.0
    %462 = vmatpush1.msra.mxu0 0.0
    %463 = vmatprep.subr.mxu0 0.0
    %464 = vmatpush1.msra.mxu0 0.0
    %465 = vmatprep.subr.mxu0 0.0
    %466 = vmatpush1.msra.mxu0 0.0
    %467 = vmatprep.subr.mxu0 0.0
    %468 = vmatpush1.msra.mxu0 0.0
    %469 = vmatprep.subr.mxu0 0.0
    %470 = vmatpush1.msra.mxu0 0.0
    %471 = vmatprep.subr.mxu0 0.0
    %472 = vmatpush1.msra.mxu0 0.0
    %473 = vmatprep.subr.mxu0 0.0
    %474 = vmatpush1.msra.mxu0 0.0
    %475 = vmatprep.subr.mxu0 0.0
    %476 = vmatpush1.msra.mxu0 0.0
    %477 = vmatprep.subr.mxu0 0.0
    %478 = vmatpush1.msra.mxu0 0.0
    %479 = vmatprep.subr.mxu0 0.0
    %480 = vmatpush1.msra.mxu0 0.0
    %481 = vmatprep.subr.mxu0 0.0
    %482 = vmatpush1.msra.mxu0 0.0
    %483 = vmatprep.subr.mxu0 0.0
    %484 = vmatpush1.msra.mxu0 0.0
    %485 = vmatprep.subr.mxu0 0.0
    %486 = vmatpush1.msra.mxu0 0.0
    %487 = vmatprep.subr.mxu0 0.0
    %488 = vmatpush1.msra.mxu0 0.0
    %489 = vmatprep.subr.mxu0 0.0
    %490 = vmatpush1.msra.mxu0 0.0
    %491 = vmatprep.mubr.f32.mxu0 0.0
    %492 = vmatmul.mubr.f32.gmra.mrb[0].mxu0 %v422
    %v493 = vpop.f32.mrb[0].mxu0
    %v494 = vadd.f32 0.0, %v493
    %v495 = vpop.f32.mrb[0].mxu0
    %496 = vmatprep.mubr.f32.mxu0 0.0
    %497 = vmatmul.mubr.f32.gmra.mrb[0].mxu0 %v425
    %v498 = vpop.f32.mrb[0].mxu0
    %v499 = vadd.f32 0.0, %v498
    %v500 = vpop.f32.mrb[0].mxu0
    %501 = vdwg.mxu0
    %v503 = vsel %vm313, %v148, 0
    %v506 = vsel %vm313, %v153, 0
    %v509 = vsel %vm313, %v235, 0
    %511 = vmatprep.subr.mxu0 0.0
    %512 = vmatpush1.xpose.msra.mxu0 %v509
    %513 = vmatprep.subr.mxu0 0.0
    %514 = vmatpush1.xpose.msra.mxu0 0.0
    %515 = vmatprep.subr.mxu0 0.0
    %516 = vmatpush1.xpose.msra.mxu0 0.0
    %517 = vmatprep.subr.mxu0 0.0
    %518 = vmatpush1.xpose.msra.mxu0 0.0
    %519 = vmatprep.subr.mxu0 0.0
    %520 = vmatpush1.xpose.msra.mxu0 0.0
    %521 = vmatprep.subr.mxu0 0.0
    %522 = vmatpush1.xpose.msra.mxu0 0.0
    %523 = vmatprep.subr.mxu0 0.0
    %524 = vmatpush1.xpose.msra.mxu0 0.0
    %525 = vmatprep.subr.mxu0 0.0
    %526 = vmatpush1.xpose.msra.mxu0 0.0
    %527 = vmatprep.subr.mxu0 0.0
    %528 = vmatpush1.xpose.msra.mxu0 0.0
    %529 = vmatprep.subr.mxu0 0.0
    %530 = vmatpush1.xpose.msra.mxu0 0.0
    %531 = vmatprep.subr.mxu0 0.0
    %532 = vmatpush1.xpose.msra.mxu0 0.0
    %533 = vmatprep.subr.mxu0 0.0
    %534 = vmatpush1.xpose.msra.mxu0 0.0
    %535 = vmatprep.subr.mxu0 0.0
    %536 = vmatpush1.xpose.msra.mxu0 0.0
    %537 = vmatprep.subr.mxu0 0.0
    %538 = vmatpush1.xpose.msra.mxu0 0.0
    %539 = vmatprep.subr.mxu0 0.0
    %540 = vmatpush1.xpose.msra.mxu0 0.0
    %541 = vmatprep.subr.mxu0 0.0
    %542 = vmatpush1.xpose.msra.mxu0 0.0
    %543 = vmatprep.subr.mxu0 0.0
    %544 = vmatpush1.xpose.msra.mxu0 0.0
    %545 = vmatprep.subr.mxu0 0.0
    %546 = vmatpush1.xpose.msra.mxu0 0.0
    %547 = vmatprep.subr.mxu0 0.0
    %548 = vmatpush1.xpose.msra.mxu0 0.0
    %549 = vmatprep.subr.mxu0 0.0
    %550 = vmatpush1.xpose.msra.mxu0 0.0
    %551 = vmatprep.subr.mxu0 0.0
    %552 = vmatpush1.xpose.msra.mxu0 0.0
    %553 = vmatprep.subr.mxu0 0.0
    %554 = vmatpush1.xpose.msra.mxu0 0.0
    %555 = vmatprep.subr.mxu0 0.0
    %556 = vmatpush1.xpose.msra.mxu0 0.0
    %557 = vmatprep.subr.mxu0 0.0
    %558 = vmatpush1.xpose.msra.mxu0 0.0
    %559 = vmatprep.subr.mxu0 0.0
    %560 = vmatpush1.xpose.msra.mxu0 0.0
    %561 = vmatprep.subr.mxu0 0.0
    %562 = vmatpush1.xpose.msra.mxu0 0.0
    %563 = vmatprep.subr.mxu0 0.0
    %564 = vmatpush1.xpose.msra.mxu0 0.0
    %565 = vmatprep.subr.mxu0 0.0
    %566 = vmatpush1.xpose.msra.mxu0 0.0
    %567 = vmatprep.subr.mxu0 0.0
    %568 = vmatpush1.xpose.msra.mxu0 0.0
    %569 = vmatprep.subr.mxu0 0.0
    %570 = vmatpush1.xpose.msra.mxu0 0.0
    %571 = vmatprep.subr.mxu0 0.0
    %572 = vmatpush1.xpose.msra.mxu0 0.0
    %573 = vmatprep.subr.mxu0 0.0
    %574 = vmatpush1.xpose.msra.mxu0 0.0
    %575 = vmatprep.mubr.f32.mxu0 0.0
    %576 = vmatmul.mubr.f32.gmra.mrb[0].mxu0 %v503
    %v577 = vpop.f32.mrb[0].mxu0
    %v578 = vadd.f32 0.0, %v577
    %v579 = vpop.f32.mrb[0].mxu0
    %580 = vmatprep.mubr.f32.mxu0 0.0
    %581 = vmatmul.mubr.f32.gmra.mrb[0].mxu0 %v506
    %v582 = vpop.f32.mrb[0].mxu0
    %v583 = vadd.f32 0.0, %v582
    %v584 = vpop.f32.mrb[0].mxu0
    %585 = vdwg.mxu0
    %v586 = vsel %vm398, %v578, -inf
    %587 = vmax.xlane.f32.xlu0 %v586
    %v588 = vpop.xlane.xlu0 %587
    %v589 = vsel %vm398, %v583, -inf
    %590 = vmax.xlane.f32.xlu0 %v589
    %v591 = vpop.xlane.xlu0 %590
    %v592 = vsub.f32 %v578, %v588
    %v593 = vsub.f32 %v583, %v591
    %v594 = vmul.f32 %v592, 1.442695
    %v595 = vpow.pop %v594
    %v596 = vmul.f32 %v593, 1.442695
    %v597 = vpow.pop %v596
    %v598 = vsel %vm398, %v595, 0.0
    %599 = vadd.xlane.f32.xlu0 %v598
    %v600 = vpop.xlane.xlu0 %599
    %v601 = vsel %vm398, %v597, 0.0
    %602 = vadd.xlane.f32.xlu0 %v601
    %v603 = vpop.xlane.xlu0 %602
    %v604 = vrcp.pop %v600
    %v605 = vmul.f32 %v595, %v604
    %v606 = vrcp.pop %v603
    %v607 = vmul.f32 %v597, %v606
    %v609 = vsel %vm398, %v605, 0
    %v612 = vsel %vm398, %v607, 0
    %614 = vmatprep.subr.mxu0 0.0
    %615 = vmatpush1.msra.mxu0 %v310
    %616 = vmatprep.subr.mxu0 0.0
    %617 = vmatpush1.msra.mxu0 0.0
    %618 = vmatprep.subr.mxu0 0.0
    %619 = vmatpush1.msra.mxu0 0.0
    %620 = vmatprep.subr.mxu0 0.0
    %621 = vmatpush1.msra.mxu0 0.0
    %622 = vmatprep.subr.mxu0 0.0
    %623 = vmatpush1.msra.mxu0 0.0
    %624 = vmatprep.subr.mxu0 0.0
    %625 = vmatpush1.msra.mxu0 0.0
    %626 = vmatprep.subr.mxu0 0.0
    %627 = vmatpush1.msra.mxu0 0.0
    %628 = vmatprep.subr.mxu0 0.0
    %629 = vmatpush1.msra.mxu0 0.0
    %630 = vmatprep.subr.mxu0 0.0
    %631 = vmatpush1.msra.mxu0 0.0
    %632 = vmatprep.subr.mxu0 0.0
    %633 = vmatpush1.msra.mxu0 0.0
    %634 = vmatprep.subr.mxu0 0.0
    %635 = vmatpush1.msra.mxu0 0.0
    %636 = vmatprep.subr.mxu0 0.0
    %637 = vmatpush1.msra.mxu0 0.0
    %638 = vmatprep.subr.mxu0 0.0
    %639 = vmatpush1.msra.mxu0 0.0
    %640 = vmatprep.subr.mxu0 0.0
    %641 = vmatpush1.msra.mxu0 0.0
    %642 = vmatprep.subr.mxu0 0.0
    %643 = vmatpush1.msra.mxu0 0.0
    %644 = vmatprep.subr.mxu0 0.0
    %645 = vmatpush1.msra.mxu0 0.0
    %646 = vmatprep.subr.mxu0 0.0
    %647 = vmatpush1.msra.mxu0 0.0
    %648 = vmatprep.subr.mxu0 0.0
    %649 = vmatpush1.msra.mxu0 0.0
    %650 = vmatprep.subr.mxu0 0.0
    %651 = vmatpush1.msra.mxu0 0.0
    %652 = vmatprep.subr.mxu0 0.0
    %653 = vmatpush1.msra.mxu0 0.0
    %654 = vmatprep.subr.mxu0 0.0
    %655 = vmatpush1.msra.mxu0 0.0
    %656 = vmatprep.subr.mxu0 0.0
    %657 = vmatpush1.msra.mxu0 0.0
    %658 = vmatprep.subr.mxu0 0.0
    %659 = vmatpush1.msra.mxu0 0.0
    %660 = vmatprep.subr.mxu0 0.0
    %661 = vmatpush1.msra.mxu0 0.0
    %662 = vmatprep.subr.mxu0 0.0
    %663 = vmatpush1.msra.mxu0 0.0
    %664 = vmatprep.subr.mxu0 0.0
    %665 = vmatpush1.msra.mxu0 0.0
    %666 = vmatprep.subr.mxu0 0.0
    %667 = vmatpush1.msra.mxu0 0.0
    %668 = vmatprep.subr.mxu0 0.0
    %669 = vmatpush1.msra.mxu0 0.0
    %670 = vmatprep.subr.mxu0 0.0
    %671 = vmatpush1.msra.mxu0 0.0
    %672 = vmatprep.subr.mxu0 0.0
    %673 = vmatpush1.msra.mxu0 0.0
    %674 = vmatprep.subr.mxu0 0.0
    %675 = vmatpush1.msra.mxu0 0.0
    %676 = vmatprep.subr.mxu0 0.0
    %677 = vmatpush1.msra.mxu0 0.0
    %678 = vmatprep.mubr.f32.mxu0 0.0
    %679 = vmatmul.mubr.f32.gmra.mrb[0].mxu0 %v609
    %v680 = vpop.f32.mrb[0].mxu0
    %v681 = vadd.f32 0.0, %v680
    %v682 = vpop.f32.mrb[0].mxu0
    %683 = vmatprep.mubr.f32.mxu0 0.0
    %684 = vmatmul.mubr.f32.gmra.mrb[0].mxu0 %v612
    %v685 = vpop.f32.mrb[0].mxu0
    %v686 = vadd.f32 0.0, %v685
    %v687 = vpop.f32.mrb[0].mxu0
    %688 = vdwg.mxu0
    %v690 = vsel %vm313, %v494, 0
    %v693 = vsel %vm313, %v499, 0
    %v696 = vsel %vm313, %v681, 0
    %v699 = vsel %vm313, %v686, 0
    %701 = vmatprep.subr.mxu0 0.0
    %702 = vmatpush1.msra.mxu0 %v56
    %703 = vmatprep.subr.mxu0 0.0
    %704 = vmatpush1.msra.mxu0 %v57
    %705 = vmatprep.subr.mxu0 0.0
    %706 = vmatpush1.msra.mxu0 0.0
    %707 = vmatprep.subr.mxu0 0.0
    %708 = vmatpush1.msra.mxu0 0.0
    %709 = vmatprep.subr.mxu0 0.0
    %710 = vmatpush1.msra.mxu0 0.0
    %711 = vmatprep.subr.mxu0 0.0
    %712 = vmatpush1.msra.mxu0 0.0
    %713 = vmatprep.subr.mxu0 0.0
    %714 = vmatpush1.msra.mxu0 0.0
    %715 = vmatprep.subr.mxu0 0.0
    %716 = vmatpush1.msra.mxu0 0.0
    %717 = vmatprep.subr.mxu0 0.0
    %718 = vmatpush1.msra.mxu0 0.0
    %719 = vmatprep.subr.mxu0 0.0
    %720 = vmatpush1.msra.mxu0 0.0
    %721 = vmatprep.subr.mxu0 0.0
    %722 = vmatpush1.msra.mxu0 0.0
    %723 = vmatprep.subr.mxu0 0.0
    %724 = vmatpush1.msra.mxu0 0.0
    %725 = vmatprep.subr.mxu0 0.0
    %726 = vmatpush1.msra.mxu0 0.0
    %727 = vmatprep.subr.mxu0 0.0
    %728 = vmatpush1.msra.mxu0 0.0
    %729 = vmatprep.subr.mxu0 0.0
    %730 = vmatpush1.msra.mxu0 0.0
    %731 = vmatprep.subr.mxu0 0.0
    %732 = vmatpush1.msra.mxu0 0.0
    %733 = vmatprep.subr.mxu0 0.0
    %734 = vmatpush1.msra.mxu0 0.0
    %735 = vmatprep.subr.mxu0 0.0
    %736 = vmatpush1.msra.mxu0 0.0
    %737 = vmatprep.subr.mxu0 0.0
    %738 = vmatpush1.msra.mxu0 0.0
    %739 = vmatprep.subr.mxu0 0.0
    %740 = vmatpush1.msra.mxu0 0.0
    %741 = vmatprep.subr.mxu0 0.0
    %742 = vmatpush1.msra.mxu0 0.0
    %743 = vmatprep.subr.mxu0 0.0
    %744 = vmatpush1.msra.mxu0 0.0
    %745 = vmatprep.subr.mxu0 0.0
    %746 = vmatpush1.msra.mxu0 0.0
    %747 = vmatprep.subr.mxu0 0.0
    %748 = vmatpush1.msra.mxu0 0.0
    %749 = vmatprep.subr.mxu0 0.0
    %750 = vmatpush1.msra.mxu0 0.0
    %751 = vmatprep.subr.mxu0 0.0
    %752 = vmatpush1.msra.mxu0 0.0
    %753 = vmatprep.subr.mxu0 0.0
    %754 = vmatpush1.msra.mxu0 0.0
    %755 = vmatprep.subr.mxu0 0.0
    %756 = vmatpush1.msra.mxu0 0.0
    %757 = vmatprep.subr.mxu0 0.0
    %758 = vmatpush1.msra.mxu0 0.0
    %759 = vmatprep.subr.mxu0 0.0
    %760 = vmatpush1.msra.mxu0 0.0
    %761 = vmatprep.subr.mxu0 0.0
    %762 = vmatpush1.msra.mxu0 0.0
    %763 = vmatprep.subr.mxu0 0.0
    %764 = vmatpush1.msra.mxu0 0.0
    %765 = vmatprep.mubr.f32.mxu0 0.0
    %766 = vmatmul.mubr.f32.gmra.mrb[0].mxu0 %v690
    %v767 = vpop.f32.mrb[0].mxu0
    %v768 = vadd.f32 0.0, %v767
    %v769 = vpop.f32.mrb[0].mxu0
    %770 = vmatprep.mubr.f32.mxu0 0.0
    %771 = vmatmul.mubr.f32.gmra.mrb[0].mxu0 %v693
    %v772 = vpop.f32.mrb[0].mxu0
    %v773 = vadd.f32 0.0, %v772
    %v774 = vpop.f32.mrb[0].mxu0
    %775 = vmatprep.mubr.f32.mxu0 0.0
    %776 = vmatmul.mubr.f32.gmra.mrb[0].mxu0 %v696
    %v777 = vpop.f32.mrb[0].mxu0
    %v778 = vadd.f32 0.0, %v777
    %v779 = vpop.f32.mrb[0].mxu0
    %780 = vmatprep.mubr.f32.mxu0 0.0
    %781 = vmatmul.mubr.f32.gmra.mrb[0].mxu0 %v699
    %v782 = vpop.f32.mrb[0].mxu0
    %v783 = vadd.f32 0.0, %v782
    %v784 = vpop.f32.mrb[0].mxu0
    %785 = vdwg.mxu0
    %v786 = vadd.f32 %v38, %v768
    %v787 = vadd.f32 %v38, %v773
    %v788 = vadd.f32 %v38, %v778
    %v789 = vadd.f32 %v38, %v783
    %s790 = scalar_lea.vmem %s2, 32
    %v791 = vld [vmem:[%s790] sm:$0xff]
    %v792 = vld [vmem:[%s790 + $0x8] sm:$0xff]
    %v793 = vld [vmem:[%s790 + $0x10] sm:$0xff]
    %v794 = vld [vmem:[%s790 + $0x18] sm:$0xff]
    %s795 = scalar_lea.vmem %s3, 48
    %v796 = vld [vmem:[%s795] sm:$0xff]
    %v797 = vld [vmem:[%s795 + $0x8] sm:$0xff]
    %v798 = vld [vmem:[%s795 + $0x10] sm:$0xff]
    %v799 = vld [vmem:[%s795 + $0x18] sm:$0xff]
    %v800 = vld [vmem:[%s795 + $0x20] sm:$0xff]
    %v801 = vld [vmem:[%s795 + $0x28] sm:$0xff]
    %s802 = scalar_lea.vmem %s4, 48
    %v803 = vld [vmem:[%s802] sm:$0xff]
    %v804 = vld [vmem:[%s802 + $0x8] sm:$0xff]
    %v805 = vld [vmem:[%s802 + $0x10] sm:$0xff]
    %v806 = vld [vmem:[%s802 + $0x18] sm:$0xff]
    %v807 = vld [vmem:[%s802 + $0x20] sm:$0xff]
    %v808 = vld [vmem:[%s802 + $0x28] sm:$0xff]
    %s809 = scalar_lea.vmem %s5, 16
    %v810 = vld [vmem:[%s809] sm:$0xff]
    %v811 = vld [vmem:[%s809 + $0x8] sm:$0xff]
    %812 = vmatprep.subr.mxu0 0.0
    %813 = vmatpush1.msra.mxu0 %v791
    %814 = vmatprep.subr.mxu0 0.0
    %815 = vmatpush1.msra.mxu0 %v792
    %816 = vmatprep.subr.mxu0 0.0
    %817 = vmatpush1.msra.mxu0 %v793
    %818 = vmatprep.subr.mxu0 0.0
    %819 = vmatpush1.msra.mxu0 %v794
    %820 = vmatprep.subr.mxu0 0.0
    %821 = vmatpush1.msra.mxu0 0.0
    %822 = vmatprep.subr.mxu0 0.0
    %823 = vmatpush1.msra.mxu0 0.0
    %824 = vmatprep.subr.mxu0 0.0
    %825 = vmatpush1.msra.mxu0 0.0
    %826 = vmatprep.subr.mxu0 0.0
    %827 = vmatpush1.msra.mxu0 0.0
    %828 = vmatprep.subr.mxu0 0.0
    %829 = vmatpush1.msra.mxu0 0.0
    %830 = vmatprep.subr.mxu0 0.0
    %831 = vmatpush1.msra.mxu0 0.0
    %832 = vmatprep.subr.mxu0 0.0
    %833 = vmatpush1.msra.mxu0 0.0
    %834 = vmatprep.subr.mxu0 0.0
    %835 = vmatpush1.msra.mxu0 0.0
    %836 = vmatprep.subr.mxu0 0.0
    %837 = vmatpush1.msra.mxu0 0.0
    %838 = vmatprep.subr.mxu0 0.0
    %839 = vmatpush1.msra.mxu0 0.0
    %840 = vmatprep.subr.mxu0 0.0
    %841 = vmatpush1.msra.mxu0 0.0
    %842 = vmatprep.subr.mxu0 0.0
    %843 = vmatpush1.msra.mxu0 0.0
    %844 = vmatprep.subr.mxu0 0.0
    %845 = vmatpush1.msra.mxu0 0.0
    %846 = vmatprep.subr.mxu0 0.0
    %847 = vmatpush1.msra.mxu0 0.0
    %848 = vmatprep.subr.mxu0 0.0
    %849 = vmatpush1.msra.mxu0 0.0
    %850 = vmatprep.subr.mxu0 0.0
    %851 = vmatpush1.msra.mxu0 0.0
    %852 = vmatprep.subr.mxu0 0.0
    %853 = vmatpush1.msra.mxu0 0.0
    %854 = vmatprep.subr.mxu0 0.0
    %855 = vmatpush1.msra.mxu0 0.0
    %856 = vmatprep.subr.mxu0 0.0
    %857 = vmatpush1.msra.mxu0 0.0
    %858 = vmatprep.subr.mxu0 0.0
    %859 = vmatpush1.msra.mxu0 0.0
    %860 = vmatprep.subr.mxu0 0.0
    %861 = vmatpush1.msra.mxu0 0.0
    %862 = vmatprep.subr.mxu0 0.0
    %863 = vmatpush1.msra.mxu0 0.0
    %864 = vmatprep.subr.mxu0 0.0
    %865 = vmatpush1.msra.mxu0 0.0
    %866 = vmatprep.subr.mxu0 0.0
    %867 = vmatpush1.msra.mxu0 0.0
    %868 = vmatprep.subr.mxu0 0.0
    %869 = vmatpush1.msra.mxu0 0.0
    %870 = vmatprep.subr.mxu0 0.0
    %871 = vmatpush1.msra.mxu0 0.0
    %872 = vmatprep.subr.mxu0 0.0
    %873 = vmatpush1.msra.mxu0 0.0
    %874 = vmatprep.subr.mxu0 0.0
    %875 = vmatpush1.msra.mxu0 0.0
    %876 = vmatprep.mubr.f32.mxu0 0.0
    %877 = vmatmul.mubr.f32.gmra.mrb[0].mxu0 %v60
    %v878 = vpop.f32.mrb[0].mxu0
    %v879 = vadd.f32 0.0, %v878
    %v880 = vpop.f32.mrb[0].mxu0
    %881 = vmatprep.mubr.f32.mxu0 0.0
    %882 = vmatmul.mubr.f32.gmra.mrb[0].mxu0 %v63
    %v883 = vpop.f32.mrb[0].mxu0
    %v884 = vadd.f32 0.0, %v883
    %v885 = vpop.f32.mrb[0].mxu0
    %886 = vmatprep.mubr.f32.mxu0 0.0
    %887 = vmatmul.mubr.f32.gmra.mrb[0].mxu0 %v66
    %v888 = vpop.f32.mrb[0].mxu0
    %v889 = vadd.f32 0.0, %v888
    %v890 = vpop.f32.mrb[0].mxu0
    %891 = vmatprep.mubr.f32.mxu0 0.0
    %892 = vmatmul.mubr.f32.gmra.mrb[0].mxu0 %v69
    %v893 = vpop.f32.mrb[0].mxu0
    %v894 = vadd.f32 0.0, %v893
    %v895 = vpop.f32.mrb[0].mxu0
    %896 = vdwg.mxu0
    %897 = vmatprep.subr.mxu0 0.0
    %898 = vmatpush1.msra.mxu0 %v796
    %899 = vmatprep.subr.mxu0 0.0
    %900 = vmatpush1.msra.mxu0 %v797
    %901 = vmatprep.subr.mxu0 0.0
    %902 = vmatpush1.msra.mxu0 %v798
    %903 = vmatprep.subr.mxu0 0.0
    %904 = vmatpush1.msra.mxu0 %v799
    %905 = vmatprep.subr.mxu0 0.0
    %906 = vmatpush1.msra.mxu0 %v800
    %907 = vmatprep.subr.mxu0 0.0
    %908 = vmatpush1.msra.mxu0 %v801
    %909 = vmatprep.subr.mxu0 0.0
    %910 = vmatpush1.msra.mxu0 0.0
    %911 = vmatprep.subr.mxu0 0.0
    %912 = vmatpush1.msra.mxu0 0.0
    %913 = vmatprep.subr.mxu0 0.0
    %914 = vmatpush1.msra.mxu0 0.0
    %915 = vmatprep.subr.mxu0 0.0
    %916 = vmatpush1.msra.mxu0 0.0
    %917 = vmatprep.subr.mxu0 0.0
    %918 = vmatpush1.msra.mxu0 0.0
    %919 = vmatprep.subr.mxu0 0.0
    %920 = vmatpush1.msra.mxu0 0.0
    %921 = vmatprep.subr.mxu0 0.0
    %922 = vmatpush1.msra.mxu0 0.0
    %923 = vmatprep.subr.mxu0 0.0
    %924 = vmatpush1.msra.mxu0 0.0
    %925 = vmatprep.subr.mxu0 0.0
    %926 = vmatpush1.msra.mxu0 0.0
    %927 = vmatprep.subr.mxu0 0.0
    %928 = vmatpush1.msra.mxu0 0.0
    %929 = vmatprep.subr.mxu0 0.0
    %930 = vmatpush1.msra.mxu0 0.0
    %931 = vmatprep.subr.mxu0 0.0
    %932 = vmatpush1.msra.mxu0 0.0
    %933 = vmatprep.subr.mxu0 0.0
    %934 = vmatpush1.msra.mxu0 0.0
    %935 = vmatprep.subr.mxu0 0.0
    %936 = vmatpush1.msra.mxu0 0.0
    %937 = vmatprep.subr.mxu0 0.0
    %938 = vmatpush1.msra.mxu0 0.0
    %939 = vmatprep.subr.mxu0 0.0
    %940 = vmatpush1.msra.mxu0 0.0
    %941 = vmatprep.subr.mxu0 0.0
    %942 = vmatpush1.msra.mxu0 0.0
    %943 = vmatprep.subr.mxu0 0.0
    %944 = vmatpush1.msra.mxu0 0.0
    %945 = vmatprep.subr.mxu0 0.0
    %946 = vmatpush1.msra.mxu0 0.0
    %947 = vmatprep.subr.mxu0 0.0
    %948 = vmatpush1.msra.mxu0 0.0
    %949 = vmatprep.subr.mxu0 0.0
    %950 = vmatpush1.msra.mxu0 0.0
    %951 = vmatprep.subr.mxu0 0.0
    %952 = vmatpush1.msra.mxu0 0.0
    %953 = vmatprep.subr.mxu0 0.0
    %954 = vmatpush1.msra.mxu0 0.0
    %955 = vmatprep.subr.mxu0 0.0
    %956 = vmatpush1.msra.mxu0 0.0
    %957 = vmatprep.subr.mxu0 0.0
    %958 = vmatpush1.msra.mxu0 0.0
    %959 = vmatprep.subr.mxu0 0.0
    %960 = vmatpush1.msra.mxu0 0.0
    %961 = vmatprep.mubr.f32.mxu0 0.0
    %962 = vmatmul.mubr.f32.gmra.mrb[0].mxu0 %v158
    %v963 = vpop.f32.mrb[0].mxu0
    %v964 = vadd.f32 0.0, %v963
    %v965 = vpop.f32.mrb[0].mxu0
    %966 = vmatprep.mubr.f32.mxu0 0.0
    %967 = vmatmul.mubr.f32.gmra.mrb[0].mxu0 %v161
    %v968 = vpop.f32.mrb[0].mxu0
    %v969 = vadd.f32 0.0, %v968
    %v970 = vpop.f32.mrb[0].mxu0
    %971 = vdwg.mxu0
    %972 = vmatprep.subr.mxu0 0.0
    %973 = vmatpush1.msra.mxu0 %v803
    %974 = vmatprep.subr.mxu0 0.0
    %975 = vmatpush1.msra.mxu0 %v804
    %976 = vmatprep.subr.mxu0 0.0
    %977 = vmatpush1.msra.mxu0 %v805
    %978 = vmatprep.subr.mxu0 0.0
    %979 = vmatpush1.msra.mxu0 %v806
    %980 = vmatprep.subr.mxu0 0.0
    %981 = vmatpush1.msra.mxu0 %v807
    %982 = vmatprep.subr.mxu0 0.0
    %983 = vmatpush1.msra.mxu0 %v808
    %984 = vmatprep.subr.mxu0 0.0
    %985 = vmatpush1.msra.mxu0 0.0
    %986 = vmatprep.subr.mxu0 0.0
    %987 = vmatpush1.msra.mxu0 0.0
    %988 = vmatprep.subr.mxu0 0.0
    %989 = vmatpush1.msra.mxu0 0.0
    %990 = vmatprep.subr.mxu0 0.0
    %991 = vmatpush1.msra.mxu0 0.0
    %992 = vmatprep.subr.mxu0 0.0
    %993 = vmatpush1.msra.mxu0 0.0
    %994 = vmatprep.subr.mxu0 0.0
    %995 = vmatpush1.msra.mxu0 0.0
    %996 = vmatprep.subr.mxu0 0.0
    %997 = vmatpush1.msra.mxu0 0.0
    %998 = vmatprep.subr.mxu0 0.0
    %999 = vmatpush1.msra.mxu0 0.0
    %1000 = vmatprep.subr.mxu0 0.0
    %1001 = vmatpush1.msra.mxu0 0.0
    %1002 = vmatprep.subr.mxu0 0.0
    %1003 = vmatpush1.msra.mxu0 0.0
    %1004 = vmatprep.subr.mxu0 0.0
    %1005 = vmatpush1.msra.mxu0 0.0
    %1006 = vmatprep.subr.mxu0 0.0
    %1007 = vmatpush1.msra.mxu0 0.0
    %1008 = vmatprep.subr.mxu0 0.0
    %1009 = vmatpush1.msra.mxu0 0.0
    %1010 = vmatprep.subr.mxu0 0.0
    %1011 = vmatpush1.msra.mxu0 0.0
    %1012 = vmatprep.subr.mxu0 0.0
    %1013 = vmatpush1.msra.mxu0 0.0
    %1014 = vmatprep.subr.mxu0 0.0
    %1015 = vmatpush1.msra.mxu0 0.0
    %1016 = vmatprep.subr.mxu0 0.0
    %1017 = vmatpush1.msra.mxu0 0.0
    %1018 = vmatprep.subr.mxu0 0.0
    %1019 = vmatpush1.msra.mxu0 0.0
    %1020 = vmatprep.subr.mxu0 0.0
    %1021 = vmatpush1.msra.mxu0 0.0
    %1022 = vmatprep.subr.mxu0 0.0
    %1023 = vmatpush1.msra.mxu0 0.0
    %1024 = vmatprep.subr.mxu0 0.0
    %1025 = vmatpush1.msra.mxu0 0.0
    %1026 = vmatprep.subr.mxu0 0.0
    %1027 = vmatpush1.msra.mxu0 0.0
    %1028 = vmatprep.subr.mxu0 0.0
    %1029 = vmatpush1.msra.mxu0 0.0
    %1030 = vmatprep.subr.mxu0 0.0
    %1031 = vmatpush1.msra.mxu0 0.0
    %1032 = vmatprep.subr.mxu0 0.0
    %1033 = vmatpush1.msra.mxu0 0.0
    %1034 = vmatprep.subr.mxu0 0.0
    %1035 = vmatpush1.msra.mxu0 0.0
    %1036 = vmatprep.mubr.f32.mxu0 0.0
    %1037 = vmatmul.mubr.f32.gmra.mrb[0].mxu0 %v158
    %v1038 = vpop.f32.mrb[0].mxu0
    %v1039 = vadd.f32 0.0, %v1038
    %v1040 = vpop.f32.mrb[0].mxu0
    %1041 = vmatprep.mubr.f32.mxu0 0.0
    %1042 = vmatmul.mubr.f32.gmra.mrb[0].mxu0 %v161
    %v1043 = vpop.f32.mrb[0].mxu0
    %v1044 = vadd.f32 0.0, %v1043
    %v1045 = vpop.f32.mrb[0].mxu0
    %1046 = vdwg.mxu0
    %v1048 = vsel %vm313, %v879, 0
    %v1051 = vsel %vm313, %v884, 0
    %v1054 = vsel %vm313, %v964, 0
    %1056 = vmatprep.subr.mxu0 0.0
    %1057 = vmatpush1.xpose.msra.mxu0 %v1054
    %1058 = vmatprep.subr.mxu0 0.0
    %1059 = vmatpush1.xpose.msra.mxu0 0.0
    %1060 = vmatprep.subr.mxu0 0.0
    %1061 = vmatpush1.xpose.msra.mxu0 0.0
    %1062 = vmatprep.subr.mxu0 0.0
    %1063 = vmatpush1.xpose.msra.mxu0 0.0
    %1064 = vmatprep.subr.mxu0 0.0
    %1065 = vmatpush1.xpose.msra.mxu0 0.0
    %1066 = vmatprep.subr.mxu0 0.0
    %1067 = vmatpush1.xpose.msra.mxu0 0.0
    %1068 = vmatprep.subr.mxu0 0.0
    %1069 = vmatpush1.xpose.msra.mxu0 0.0
    %1070 = vmatprep.subr.mxu0 0.0
    %1071 = vmatpush1.xpose.msra.mxu0 0.0
    %1072 = vmatprep.subr.mxu0 0.0
    %1073 = vmatpush1.xpose.msra.mxu0 0.0
    %1074 = vmatprep.subr.mxu0 0.0
    %1075 = vmatpush1.xpose.msra.mxu0 0.0
    %1076 = vmatprep.subr.mxu0 0.0
    %1077 = vmatpush1.xpose.msra.mxu0 0.0
    %1078 = vmatprep.subr.mxu0 0.0
    %1079 = vmatpush1.xpose.msra.mxu0 0.0
    %1080 = vmatprep.subr.mxu0 0.0
    %1081 = vmatpush1.xpose.msra.mxu0 0.0
    %1082 = vmatprep.subr.mxu0 0.0
    %1083 = vmatpush1.xpose.msra.mxu0 0.0
    %1084 = vmatprep.subr.mxu0 0.0
    %1085 = vmatpush1.xpose.msra.mxu0 0.0
    %1086 = vmatprep.subr.mxu0 0.0
    %1087 = vmatpush1.xpose.msra.mxu0 0.0
    %1088 = vmatprep.subr.mxu0 0.0
    %1089 = vmatpush1.xpose.msra.mxu0 0.0
    %1090 = vmatprep.subr.mxu0 0.0
    %1091 = vmatpush1.xpose.msra.mxu0 0.0
    %1092 = vmatprep.subr.mxu0 0.0
    %1093 = vmatpush1.xpose.msra.mxu0 0.0
    %1094 = vmatprep.subr.mxu0 0.0
    %1095 = vmatpush1.xpose.msra.mxu0 0.0
    %1096 = vmatprep.subr.mxu0 0.0
    %1097 = vmatpush1.xpose.msra.mxu0 0.0
    %1098 = vmatprep.subr.mxu0 0.0
    %1099 = vmatpush1.xpose.msra.mxu0 0.0
    %1100 = vmatprep.subr.mxu0 0.0
    %1101 = vmatpush1.xpose.msra.mxu0 0.0
    %1102 = vmatprep.subr.mxu0 0.0
    %1103 = vmatpush1.xpose.msra.mxu0 0.0
    %1104 = vmatprep.subr.mxu0 0.0
    %1105 = vmatpush1.xpose.msra.mxu0 0.0
    %1106 = vmatprep.subr.mxu0 0.0
    %1107 = vmatpush1.xpose.msra.mxu0 0.0
    %1108 = vmatprep.subr.mxu0 0.0
    %1109 = vmatpush1.xpose.msra.mxu0 0.0
    %1110 = vmatprep.subr.mxu0 0.0
    %1111 = vmatpush1.xpose.msra.mxu0 0.0
    %1112 = vmatprep.subr.mxu0 0.0
    %1113 = vmatpush1.xpose.msra.mxu0 0.0
    %1114 = vmatprep.subr.mxu0 0.0
    %1115 = vmatpush1.xpose.msra.mxu0 0.0
    %1116 = vmatprep.subr.mxu0 0.0
    %1117 = vmatpush1.xpose.msra.mxu0 0.0
    %1118 = vmatprep.subr.mxu0 0.0
    %1119 = vmatpush1.xpose.msra.mxu0 0.0
    %1120 = vmatprep.mubr.f32.mxu0 0.0
    %1121 = vmatmul.mubr.f32.gmra.mrb[0].mxu0 %v1048
    %v1122 = vpop.f32.mrb[0].mxu0
    %v1123 = vadd.f32 0.0, %v1122
    %v1124 = vpop.f32.mrb[0].mxu0
    %1125 = vmatprep.mubr.f32.mxu0 0.0
    %1126 = vmatmul.mubr.f32.gmra.mrb[0].mxu0 %v1051
    %v1127 = vpop.f32.mrb[0].mxu0
    %v1128 = vadd.f32 0.0, %v1127
    %v1129 = vpop.f32.mrb[0].mxu0
    %1130 = vdwg.mxu0
    %v1131 = vsel %vm398, %v1123, -inf
    %1132 = vmax.xlane.f32.xlu0 %v1131
    %v1133 = vpop.xlane.xlu0 %1132
    %v1134 = vsel %vm398, %v1128, -inf
    %1135 = vmax.xlane.f32.xlu0 %v1134
    %v1136 = vpop.xlane.xlu0 %1135
    %v1137 = vsub.f32 %v1123, %v1133
    %v1138 = vsub.f32 %v1128, %v1136
    %v1139 = vmul.f32 %v1137, 1.442695
    %v1140 = vpow.pop %v1139
    %v1141 = vmul.f32 %v1138, 1.442695
    %v1142 = vpow.pop %v1141
    %v1143 = vsel %vm398, %v1140, 0.0
    %1144 = vadd.xlane.f32.xlu0 %v1143
    %v1145 = vpop.xlane.xlu0 %1144
    %v1146 = vsel %vm398, %v1142, 0.0
    %1147 = vadd.xlane.f32.xlu0 %v1146
    %v1148 = vpop.xlane.xlu0 %1147
    %v1149 = vrcp.pop %v1145
    %v1150 = vmul.f32 %v1140, %v1149
    %v1151 = vrcp.pop %v1148
    %v1152 = vmul.f32 %v1142, %v1151
    %v1154 = vsel %vm398, %v1150, 0
    %v1157 = vsel %vm398, %v1152, 0
    %1159 = vmatprep.subr.mxu0 0.0
    %1160 = vmatpush1.msra.mxu0 %v1039
    %1161 = vmatprep.subr.mxu0 0.0
    %1162 = vmatpush1.msra.mxu0 0.0
    %1163 = vmatprep.subr.mxu0 0.0
    %1164 = vmatpush1.msra.mxu0 0.0
    %1165 = vmatprep.subr.mxu0 0.0
    %1166 = vmatpush1.msra.mxu0 0.0
    %1167 = vmatprep.subr.mxu0 0.0
    %1168 = vmatpush1.msra.mxu0 0.0
    %1169 = vmatprep.subr.mxu0 0.0
    %1170 = vmatpush1.msra.mxu0 0.0
    %1171 = vmatprep.subr.mxu0 0.0
    %1172 = vmatpush1.msra.mxu0 0.0
    %1173 = vmatprep.subr.mxu0 0.0
    %1174 = vmatpush1.msra.mxu0 0.0
    %1175 = vmatprep.subr.mxu0 0.0
    %1176 = vmatpush1.msra.mxu0 0.0
    %1177 = vmatprep.subr.mxu0 0.0
    %1178 = vmatpush1.msra.mxu0 0.0
    %1179 = vmatprep.subr.mxu0 0.0
    %1180 = vmatpush1.msra.mxu0 0.0
    %1181 = vmatprep.subr.mxu0 0.0
    %1182 = vmatpush1.msra.mxu0 0.0
    %1183 = vmatprep.subr.mxu0 0.0
    %1184 = vmatpush1.msra.mxu0 0.0
    %1185 = vmatprep.subr.mxu0 0.0
    %1186 = vmatpush1.msra.mxu0 0.0
    %1187 = vmatprep.subr.mxu0 0.0
    %1188 = vmatpush1.msra.mxu0 0.0
    %1189 = vmatprep.subr.mxu0 0.0
    %1190 = vmatpush1.msra.mxu0 0.0
    %1191 = vmatprep.subr.mxu0 0.0
    %1192 = vmatpush1.msra.mxu0 0.0
    %1193 = vmatprep.subr.mxu0 0.0
    %1194 = vmatpush1.msra.mxu0 0.0
    %1195 = vmatprep.subr.mxu0 0.0
    %1196 = vmatpush1.msra.mxu0 0.0
    %1197 = vmatprep.subr.mxu0 0.0
    %1198 = vmatpush1.msra.mxu0 0.0
    %1199 = vmatprep.subr.mxu0 0.0
    %1200 = vmatpush1.msra.mxu0 0.0
    %1201 = vmatprep.subr.mxu0 0.0
    %1202 = vmatpush1.msra.mxu0 0.0
    %1203 = vmatprep.subr.mxu0 0.0
    %1204 = vmatpush1.msra.mxu0 0.0
    %1205 = vmatprep.subr.mxu0 0.0
    %1206 = vmatpush1.msra.mxu0 0.0
    %1207 = vmatprep.subr.mxu0 0.0
    %1208 = vmatpush1.msra.mxu0 0.0
    %1209 = vmatprep.subr.mxu0 0.0
    %1210 = vmatpush1.msra.mxu0 0.0
    %1211 = vmatprep.subr.mxu0 0.0
    %1212 = vmatpush1.msra.mxu0 0.0
    %1213 = vmatprep.subr.mxu0 0.0
    %1214 = vmatpush1.msra.mxu0 0.0
    %1215 = vmatprep.subr.mxu0 0.0
    %1216 = vmatpush1.msra.mxu0 0.0
    %1217 = vmatprep.subr.mxu0 0.0
    %1218 = vmatpush1.msra.mxu0 0.0
    %1219 = vmatprep.subr.mxu0 0.0
    %1220 = vmatpush1.msra.mxu0 0.0
    %1221 = vmatprep.subr.mxu0 0.0
    %1222 = vmatpush1.msra.mxu0 0.0
    %1223 = vmatprep.mubr.f32.mxu0 0.0
    %1224 = vmatmul.mubr.f32.gmra.mrb[0].mxu0 %v1154
    %v1225 = vpop.f32.mrb[0].mxu0
    %v1226 = vadd.f32 0.0, %v1225
    %v1227 = vpop.f32.mrb[0].mxu0
    %1228 = vmatprep.mubr.f32.mxu0 0.0
    %1229 = vmatmul.mubr.f32.gmra.mrb[0].mxu0 %v1157
    %v1230 = vpop.f32.mrb[0].mxu0
    %v1231 = vadd.f32 0.0, %v1230
    %v1232 = vpop.f32.mrb[0].mxu0
    %1233 = vdwg.mxu0
    %v1235 = vsel %vm313, %v889, 0
    %v1238 = vsel %vm313, %v894, 0
    %v1241 = vsel %vm313, %v969, 0
    %1243 = vmatprep.subr.mxu0 0.0
    %1244 = vmatpush1.xpose.msra.mxu0 %v1241
    %1245 = vmatprep.subr.mxu0 0.0
    %1246 = vmatpush1.xpose.msra.mxu0 0.0
    %1247 = vmatprep.subr.mxu0 0.0
    %1248 = vmatpush1.xpose.msra.mxu0 0.0
    %1249 = vmatprep.subr.mxu0 0.0
    %1250 = vmatpush1.xpose.msra.mxu0 0.0
    %1251 = vmatprep.subr.mxu0 0.0
    %1252 = vmatpush1.xpose.msra.mxu0 0.0
    %1253 = vmatprep.subr.mxu0 0.0
    %1254 = vmatpush1.xpose.msra.mxu0 0.0
    %1255 = vmatprep.subr.mxu0 0.0
    %1256 = vmatpush1.xpose.msra.mxu0 0.0
    %1257 = vmatprep.subr.mxu0 0.0
    %1258 = vmatpush1.xpose.msra.mxu0 0.0
    %1259 = vmatprep.subr.mxu0 0.0
    %1260 = vmatpush1.xpose.msra.mxu0 0.0
    %1261 = vmatprep.subr.mxu0 0.0
    %1262 = vmatpush1.xpose.msra.mxu0 0.0
    %1263 = vmatprep.subr.mxu0 0.0
    %1264 = vmatpush1.xpose.msra.mxu0 0.0
    %1265 = vmatprep.subr.mxu0 0.0
    %1266 = vmatpush1.xpose.msra.mxu0 0.0
    %1267 = vmatprep.subr.mxu0 0.0
    %1268 = vmatpush1.xpose.msra.mxu0 0.0
    %1269 = vmatprep.subr.mxu0 0.0
    %1270 = vmatpush1.xpose.msra.mxu0 0.0
    %1271 = vmatprep.subr.mxu0 0.0
    %1272 = vmatpush1.xpose.msra.mxu0 0.0
    %1273 = vmatprep.subr.mxu0 0.0
    %1274 = vmatpush1.xpose.msra.mxu0 0.0
    %1275 = vmatprep.subr.mxu0 0.0
    %1276 = vmatpush1.xpose.msra.mxu0 0.0
    %1277 = vmatprep.subr.mxu0 0.0
    %1278 = vmatpush1.xpose.msra.mxu0 0.0
    %1279 = vmatprep.subr.mxu0 0.0
    %1280 = vmatpush1.xpose.msra.mxu0 0.0
    %1281 = vmatprep.subr.mxu0 0.0
    %1282 = vmatpush1.xpose.msra.mxu0 0.0
    %1283 = vmatprep.subr.mxu0 0.0
    %1284 = vmatpush1.xpose.msra.mxu0 0.0
    %1285 = vmatprep.subr.mxu0 0.0
    %1286 = vmatpush1.xpose.msra.mxu0 0.0
    %1287 = vmatprep.subr.mxu0 0.0
    %1288 = vmatpush1.xpose.msra.mxu0 0.0
    %1289 = vmatprep.subr.mxu0 0.0
    %1290 = vmatpush1.xpose.msra.mxu0 0.0
    %1291 = vmatprep.subr.mxu0 0.0
    %1292 = vmatpush1.xpose.msra.mxu0 0.0
    %1293 = vmatprep.subr.mxu0 0.0
    %1294 = vmatpush1.xpose.msra.mxu0 0.0
    %1295 = vmatprep.subr.mxu0 0.0
    %1296 = vmatpush1.xpose.msra.mxu0 0.0
    %1297 = vmatprep.subr.mxu0 0.0
    %1298 = vmatpush1.xpose.msra.mxu0 0.0
    %1299 = vmatprep.subr.mxu0 0.0
    %1300 = vmatpush1.xpose.msra.mxu0 0.0
    %1301 = vmatprep.subr.mxu0 0.0
    %1302 = vmatpush1.xpose.msra.mxu0 0.0
    %1303 = vmatprep.subr.mxu0 0.0
    %1304 = vmatpush1.xpose.msra.mxu0 0.0
    %1305 = vmatprep.subr.mxu0 0.0
    %1306 = vmatpush1.xpose.msra.mxu0 0.0
    %1307 = vmatprep.mubr.f32.mxu0 0.0
    %1308 = vmatmul.mubr.f32.gmra.mrb[0].mxu0 %v1235
    %v1309 = vpop.f32.mrb[0].mxu0
    %v1310 = vadd.f32 0.0, %v1309
    %v1311 = vpop.f32.mrb[0].mxu0
    %1312 = vmatprep.mubr.f32.mxu0 0.0
    %1313 = vmatmul.mubr.f32.gmra.mrb[0].mxu0 %v1238
    %v1314 = vpop.f32.mrb[0].mxu0
    %v1315 = vadd.f32 0.0, %v1314
    %v1316 = vpop.f32.mrb[0].mxu0
    %1317 = vdwg.mxu0
    %v1318 = vsel %vm398, %v1310, -inf
    %1319 = vmax.xlane.f32.xlu0 %v1318
    %v1320 = vpop.xlane.xlu0 %1319
    %v1321 = vsel %vm398, %v1315, -inf
    %1322 = vmax.xlane.f32.xlu0 %v1321
    %v1323 = vpop.xlane.xlu0 %1322
    %v1324 = vsub.f32 %v1310, %v1320
    %v1325 = vsub.f32 %v1315, %v1323
    %v1326 = vmul.f32 %v1324, 1.442695
    %v1327 = vpow.pop %v1326
    %v1328 = vmul.f32 %v1325, 1.442695
    %v1329 = vpow.pop %v1328
    %v1330 = vsel %vm398, %v1327, 0.0
    %1331 = vadd.xlane.f32.xlu0 %v1330
    %v1332 = vpop.xlane.xlu0 %1331
    %v1333 = vsel %vm398, %v1329, 0.0
    %1334 = vadd.xlane.f32.xlu0 %v1333
    %v1335 = vpop.xlane.xlu0 %1334
    %v1336 = vrcp.pop %v1332
    %v1337 = vmul.f32 %v1327, %v1336
    %v1338 = vrcp.pop %v1335
    %v1339 = vmul.f32 %v1329, %v1338
    %v1341 = vsel %vm398, %v1337, 0
    %v1344 = vsel %vm398, %v1339, 0
    %1346 = vmatprep.subr.mxu0 0.0
    %1347 = vmatpush1.msra.mxu0 %v1044
    %1348 = vmatprep.subr.mxu0 0.0
    %1349 = vmatpush1.msra.mxu0 0.0
    %1350 = vmatprep.subr.mxu0 0.0
    %1351 = vmatpush1.msra.mxu0 0.0
    %1352 = vmatprep.subr.mxu0 0.0
    %1353 = vmatpush1.msra.mxu0 0.0
    %1354 = vmatprep.subr.mxu0 0.0
    %1355 = vmatpush1.msra.mxu0 0.0
    %1356 = vmatprep.subr.mxu0 0.0
    %1357 = vmatpush1.msra.mxu0 0.0
    %1358 = vmatprep.subr.mxu0 0.0
    %1359 = vmatpush1.msra.mxu0 0.0
    %1360 = vmatprep.subr.mxu0 0.0
    %1361 = vmatpush1.msra.mxu0 0.0
    %1362 = vmatprep.subr.mxu0 0.0
    %1363 = vmatpush1.msra.mxu0 0.0
    %1364 = vmatprep.subr.mxu0 0.0
    %1365 = vmatpush1.msra.mxu0 0.0
    %1366 = vmatprep.subr.mxu0 0.0
    %1367 = vmatpush1.msra.mxu0 0.0
    %1368 = vmatprep.subr.mxu0 0.0
    %1369 = vmatpush1.msra.mxu0 0.0
    %1370 = vmatprep.subr.mxu0 0.0
    %1371 = vmatpush1.msra.mxu0 0.0
    %1372 = vmatprep.subr.mxu0 0.0
    %1373 = vmatpush1.msra.mxu0 0.0
    %1374 = vmatprep.subr.mxu0 0.0
    %1375 = vmatpush1.msra.mxu0 0.0
    %1376 = vmatprep.subr.mxu0 0.0
    %1377 = vmatpush1.msra.mxu0 0.0
    %1378 = vmatprep.subr.mxu0 0.0
    %1379 = vmatpush1.msra.mxu0 0.0
    %1380 = vmatprep.subr.mxu0 0.0
    %1381 = vmatpush1.msra.mxu0 0.0
    %1382 = vmatprep.subr.mxu0 0.0
    %1383 = vmatpush1.msra.mxu0 0.0
    %1384 = vmatprep.subr.mxu0 0.0
    %1385 = vmatpush1.msra.mxu0 0.0
    %1386 = vmatprep.subr.mxu0 0.0
    %1387 = vmatpush1.msra.mxu0 0.0
    %1388 = vmatprep.subr.mxu0 0.0
    %1389 = vmatpush1.msra.mxu0 0.0
    %1390 = vmatprep.subr.mxu0 0.0
    %1391 = vmatpush1.msra.mxu0 0.0
    %1392 = vmatprep.subr.mxu0 0.0
    %1393 = vmatpush1.msra.mxu0 0.0
    %1394 = vmatprep.subr.mxu0 0.0
    %1395 = vmatpush1.msra.mxu0 0.0
    %1396 = vmatprep.subr.mxu0 0.0
    %1397 = vmatpush1.msra.mxu0 0.0
    %1398 = vmatprep.subr.mxu0 0.0
    %1399 = vmatpush1.msra.mxu0 0.0
    %1400 = vmatprep.subr.mxu0 0.0
    %1401 = vmatpush1.msra.mxu0 0.0
    %1402 = vmatprep.subr.mxu0 0.0
    %1403 = vmatpush1.msra.mxu0 0.0
    %1404 = vmatprep.subr.mxu0 0.0
    %1405 = vmatpush1.msra.mxu0 0.0
    %1406 = vmatprep.subr.mxu0 0.0
    %1407 = vmatpush1.msra.mxu0 0.0
    %1408 = vmatprep.subr.mxu0 0.0
    %1409 = vmatpush1.msra.mxu0 0.0
    %1410 = vmatprep.mubr.f32.mxu0 0.0
    %1411 = vmatmul.mubr.f32.gmra.mrb[0].mxu0 %v1341
    %v1412 = vpop.f32.mrb[0].mxu0
    %v1413 = vadd.f32 0.0, %v1412
    %v1414 = vpop.f32.mrb[0].mxu0
    %1415 = vmatprep.mubr.f32.mxu0 0.0
    %1416 = vmatmul.mubr.f32.gmra.mrb[0].mxu0 %v1344
    %v1417 = vpop.f32.mrb[0].mxu0
    %v1418 = vadd.f32 0.0, %v1417
    %v1419 = vpop.f32.mrb[0].mxu0
    %1420 = vdwg.mxu0
    %v1422 = vsel %vm313, %v1226, 0
    %v1425 = vsel %vm313, %v1231, 0
    %v1428 = vsel %vm313, %v1413, 0
    %v1431 = vsel %vm313, %v1418, 0
    %1433 = vmatprep.subr.mxu0 0.0
    %1434 = vmatpush1.msra.mxu0 %v810
    %1435 = vmatprep.subr.mxu0 0.0
    %1436 = vmatpush1.msra.mxu0 %v811
    %1437 = vmatprep.subr.mxu0 0.0
    %1438 = vmatpush1.msra.mxu0 0.0
    %1439 = vmatprep.subr.mxu0 0.0
    %1440 = vmatpush1.msra.mxu0 0.0
    %1441 = vmatprep.subr.mxu0 0.0
    %1442 = vmatpush1.msra.mxu0 0.0
    %1443 = vmatprep.subr.mxu0 0.0
    %1444 = vmatpush1.msra.mxu0 0.0
    %1445 = vmatprep.subr.mxu0 0.0
    %1446 = vmatpush1.msra.mxu0 0.0
    %1447 = vmatprep.subr.mxu0 0.0
    %1448 = vmatpush1.msra.mxu0 0.0
    %1449 = vmatprep.subr.mxu0 0.0
    %1450 = vmatpush1.msra.mxu0 0.0
    %1451 = vmatprep.subr.mxu0 0.0
    %1452 = vmatpush1.msra.mxu0 0.0
    %1453 = vmatprep.subr.mxu0 0.0
    %1454 = vmatpush1.msra.mxu0 0.0
    %1455 = vmatprep.subr.mxu0 0.0
    %1456 = vmatpush1.msra.mxu0 0.0
    %1457 = vmatprep.subr.mxu0 0.0
    %1458 = vmatpush1.msra.mxu0 0.0
    %1459 = vmatprep.subr.mxu0 0.0
    %1460 = vmatpush1.msra.mxu0 0.0
    %1461 = vmatprep.subr.mxu0 0.0
    %1462 = vmatpush1.msra.mxu0 0.0
    %1463 = vmatprep.subr.mxu0 0.0
    %1464 = vmatpush1.msra.mxu0 0.0
    %1465 = vmatprep.subr.mxu0 0.0
    %1466 = vmatpush1.msra.mxu0 0.0
    %1467 = vmatprep.subr.mxu0 0.0
    %1468 = vmatpush1.msra.mxu0 0.0
    %1469 = vmatprep.subr.mxu0 0.0
    %1470 = vmatpush1.msra.mxu0 0.0
    %1471 = vmatprep.subr.mxu0 0.0
    %1472 = vmatpush1.msra.mxu0 0.0
    %1473 = vmatprep.subr.mxu0 0.0
    %1474 = vmatpush1.msra.mxu0 0.0
    %1475 = vmatprep.subr.mxu0 0.0
    %1476 = vmatpush1.msra.mxu0 0.0
    %1477 = vmatprep.subr.mxu0 0.0
    %1478 = vmatpush1.msra.mxu0 0.0
    %1479 = vmatprep.subr.mxu0 0.0
    %1480 = vmatpush1.msra.mxu0 0.0
    %1481 = vmatprep.subr.mxu0 0.0
    %1482 = vmatpush1.msra.mxu0 0.0
    %1483 = vmatprep.subr.mxu0 0.0
    %1484 = vmatpush1.msra.mxu0 0.0
    %1485 = vmatprep.subr.mxu0 0.0
    %1486 = vmatpush1.msra.mxu0 0.0
    %1487 = vmatprep.subr.mxu0 0.0
    %1488 = vmatpush1.msra.mxu0 0.0
    %1489 = vmatprep.subr.mxu0 0.0
    %1490 = vmatpush1.msra.mxu0 0.0
    %1491 = vmatprep.subr.mxu0 0.0
    %1492 = vmatpush1.msra.mxu0 0.0
    %1493 = vmatprep.subr.mxu0 0.0
    %1494 = vmatpush1.msra.mxu0 0.0
    %1495 = vmatprep.subr.mxu0 0.0
    %1496 = vmatpush1.msra.mxu0 0.0
    %1497 = vmatprep.mubr.f32.mxu0 0.0
    %1498 = vmatmul.mubr.f32.gmra.mrb[0].mxu0 %v1422
    %v1499 = vpop.f32.mrb[0].mxu0
    %v1500 = vadd.f32 0.0, %v1499
    %v1501 = vpop.f32.mrb[0].mxu0
    %1502 = vmatprep.mubr.f32.mxu0 0.0
    %1503 = vmatmul.mubr.f32.gmra.mrb[0].mxu0 %v1425
    %v1504 = vpop.f32.mrb[0].mxu0
    %v1505 = vadd.f32 0.0, %v1504
    %v1506 = vpop.f32.mrb[0].mxu0
    %1507 = vmatprep.mubr.f32.mxu0 0.0
    %1508 = vmatmul.mubr.f32.gmra.mrb[0].mxu0 %v1428
    %v1509 = vpop.f32.mrb[0].mxu0
    %v1510 = vadd.f32 0.0, %v1509
    %v1511 = vpop.f32.mrb[0].mxu0
    %1512 = vmatprep.mubr.f32.mxu0 0.0
    %1513 = vmatmul.mubr.f32.gmra.mrb[0].mxu0 %v1431
    %v1514 = vpop.f32.mrb[0].mxu0
    %v1515 = vadd.f32 0.0, %v1514
    %v1516 = vpop.f32.mrb[0].mxu0
    %1517 = vdwg.mxu0
    %v1518 = vadd.f32 %v786, %v1500
    %v1519 = vadd.f32 %v787, %v1505
    %v1520 = vadd.f32 %v788, %v1510
    %v1521 = vadd.f32 %v789, %v1515
    %s1522 = scalar_lea.vmem %s2, 64
    %v1523 = vld [vmem:[%s1522] sm:$0xff]
    %v1524 = vld [vmem:[%s1522 + $0x8] sm:$0xff]
    %v1525 = vld [vmem:[%s1522 + $0x10] sm:$0xff]
    %v1526 = vld [vmem:[%s1522 + $0x18] sm:$0xff]
    %s1527 = scalar_lea.vmem %s3, 96
    %v1528 = vld [vmem:[%s1527] sm:$0xff]
    %v1529 = vld [vmem:[%s1527 + $0x8] sm:$0xff]
    %v1530 = vld [vmem:[%s1527 + $0x10] sm:$0xff]
    %v1531 = vld [vmem:[%s1527 + $0x18] sm:$0xff]
    %v1532 = vld [vmem:[%s1527 + $0x20] sm:$0xff]
    %v1533 = vld [vmem:[%s1527 + $0x28] sm:$0xff]
    %s1534 = scalar_lea.vmem %s4, 96
    %v1535 = vld [vmem:[%s1534] sm:$0xff]
    %v1536 = vld [vmem:[%s1534 + $0x8] sm:$0xff]
    %v1537 = vld [vmem:[%s1534 + $0x10] sm:$0xff]
    %v1538 = vld [vmem:[%s1534 + $0x18] sm:$0xff]
    %v1539 = vld [vmem:[%s1534 + $0x20] sm:$0xff]
    %v1540 = vld [vmem:[%s1534 + $0x28] sm:$0xff]
    %s1541 = scalar_lea.vmem %s5, 32
    %v1542 = vld [vmem:[%s1541] sm:$0xff]
    %v1543 = vld [vmem:[%s1541 + $0x8] sm:$0xff]
    %1544 = vmatprep.subr.mxu0 0.0
    %1545 = vmatpush1.msra.mxu0 %v1523
    %1546 = vmatprep.subr.mxu0 0.0
    %1547 = vmatpush1.msra.mxu0 %v1524
    %1548 = vmatprep.subr.mxu0 0.0
    %1549 = vmatpush1.msra.mxu0 %v1525
    %1550 = vmatprep.subr.mxu0 0.0
    %1551 = vmatpush1.msra.mxu0 %v1526
    %1552 = vmatprep.subr.mxu0 0.0
    %1553 = vmatpush1.msra.mxu0 0.0
    %1554 = vmatprep.subr.mxu0 0.0
    %1555 = vmatpush1.msra.mxu0 0.0
    %1556 = vmatprep.subr.mxu0 0.0
    %1557 = vmatpush1.msra.mxu0 0.0
    %1558 = vmatprep.subr.mxu0 0.0
    %1559 = vmatpush1.msra.mxu0 0.0
    %1560 = vmatprep.subr.mxu0 0.0
    %1561 = vmatpush1.msra.mxu0 0.0
    %1562 = vmatprep.subr.mxu0 0.0
    %1563 = vmatpush1.msra.mxu0 0.0
    %1564 = vmatprep.subr.mxu0 0.0
    %1565 = vmatpush1.msra.mxu0 0.0
    %1566 = vmatprep.subr.mxu0 0.0
    %1567 = vmatpush1.msra.mxu0 0.0
    %1568 = vmatprep.subr.mxu0 0.0
    %1569 = vmatpush1.msra.mxu0 0.0
    %1570 = vmatprep.subr.mxu0 0.0
    %1571 = vmatpush1.msra.mxu0 0.0
    %1572 = vmatprep.subr.mxu0 0.0
    %1573 = vmatpush1.msra.mxu0 0.0
    %1574 = vmatprep.subr.mxu0 0.0
    %1575 = vmatpush1.msra.mxu0 0.0
    %1576 = vmatprep.subr.mxu0 0.0
    %1577 = vmatpush1.msra.mxu0 0.0
    %1578 = vmatprep.subr.mxu0 0.0
    %1579 = vmatpush1.msra.mxu0 0.0
    %1580 = vmatprep.subr.mxu0 0.0
    %1581 = vmatpush1.msra.mxu0 0.0
    %1582 = vmatprep.subr.mxu0 0.0
    %1583 = vmatpush1.msra.mxu0 0.0
    %1584 = vmatprep.subr.mxu0 0.0
    %1585 = vmatpush1.msra.mxu0 0.0
    %1586 = vmatprep.subr.mxu0 0.0
    %1587 = vmatpush1.msra.mxu0 0.0
    %1588 = vmatprep.subr.mxu0 0.0
    %1589 = vmatpush1.msra.mxu0 0.0
    %1590 = vmatprep.subr.mxu0 0.0
    %1591 = vmatpush1.msra.mxu0 0.0
    %1592 = vmatprep.subr.mxu0 0.0
    %1593 = vmatpush1.msra.mxu0 0.0
    %1594 = vmatprep.subr.mxu0 0.0
    %1595 = vmatpush1.msra.mxu0 0.0
    %1596 = vmatprep.subr.mxu0 0.0
    %1597 = vmatpush1.msra.mxu0 0.0
    %1598 = vmatprep.subr.mxu0 0.0
    %1599 = vmatpush1.msra.mxu0 0.0
    %1600 = vmatprep.subr.mxu0 0.0
    %1601 = vmatpush1.msra.mxu0 0.0
    %1602 = vmatprep.subr.mxu0 0.0
    %1603 = vmatpush1.msra.mxu0 0.0
    %1604 = vmatprep.subr.mxu0 0.0
    %1605 = vmatpush1.msra.mxu0 0.0
    %1606 = vmatprep.subr.mxu0 0.0
    %1607 = vmatpush1.msra.mxu0 0.0
    %1608 = vmatprep.mubr.f32.mxu0 0.0
    %1609 = vmatmul.mubr.f32.gmra.mrb[0].mxu0 %v60
    %v1610 = vpop.f32.mrb[0].mxu0
    %v1611 = vadd.f32 0.0, %v1610
    %v1612 = vpop.f32.mrb[0].mxu0
    %1613 = vmatprep.mubr.f32.mxu0 0.0
    %1614 = vmatmul.mubr.f32.gmra.mrb[0].mxu0 %v63
    %v1615 = vpop.f32.mrb[0].mxu0
    %v1616 = vadd.f32 0.0, %v1615
    %v1617 = vpop.f32.mrb[0].mxu0
    %1618 = vmatprep.mubr.f32.mxu0 0.0
    %1619 = vmatmul.mubr.f32.gmra.mrb[0].mxu0 %v66
    %v1620 = vpop.f32.mrb[0].mxu0
    %v1621 = vadd.f32 0.0, %v1620
    %v1622 = vpop.f32.mrb[0].mxu0
    %1623 = vmatprep.mubr.f32.mxu0 0.0
    %1624 = vmatmul.mubr.f32.gmra.mrb[0].mxu0 %v69
    %v1625 = vpop.f32.mrb[0].mxu0
    %v1626 = vadd.f32 0.0, %v1625
    %v1627 = vpop.f32.mrb[0].mxu0
    %1628 = vdwg.mxu0
    %1629 = vmatprep.subr.mxu0 0.0
    %1630 = vmatpush1.msra.mxu0 %v1528
    %1631 = vmatprep.subr.mxu0 0.0
    %1632 = vmatpush1.msra.mxu0 %v1529
    %1633 = vmatprep.subr.mxu0 0.0
    %1634 = vmatpush1.msra.mxu0 %v1530
    %1635 = vmatprep.subr.mxu0 0.0
    %1636 = vmatpush1.msra.mxu0 %v1531
    %1637 = vmatprep.subr.mxu0 0.0
    %1638 = vmatpush1.msra.mxu0 %v1532
    %1639 = vmatprep.subr.mxu0 0.0
    %1640 = vmatpush1.msra.mxu0 %v1533
    %1641 = vmatprep.subr.mxu0 0.0
    %1642 = vmatpush1.msra.mxu0 0.0
    %1643 = vmatprep.subr.mxu0 0.0
    %1644 = vmatpush1.msra.mxu0 0.0
    %1645 = vmatprep.subr.mxu0 0.0
    %1646 = vmatpush1.msra.mxu0 0.0
    %1647 = vmatprep.subr.mxu0 0.0
    %1648 = vmatpush1.msra.mxu0 0.0
    %1649 = vmatprep.subr.mxu0 0.0
    %1650 = vmatpush1.msra.mxu0 0.0
    %1651 = vmatprep.subr.mxu0 0.0
    %1652 = vmatpush1.msra.mxu0 0.0
    %1653 = vmatprep.subr.mxu0 0.0
    %1654 = vmatpush1.msra.mxu0 0.0
    %1655 = vmatprep.subr.mxu0 0.0
    %1656 = vmatpush1.msra.mxu0 0.0
    %1657 = vmatprep.subr.mxu0 0.0
    %1658 = vmatpush1.msra.mxu0 0.0
    %1659 = vmatprep.subr.mxu0 0.0
    %1660 = vmatpush1.msra.mxu0 0.0
    %1661 = vmatprep.subr.mxu0 0.0
    %1662 = vmatpush1.msra.mxu0 0.0
    %1663 = vmatprep.subr.mxu0 0.0
    %1664 = vmatpush1.msra.mxu0 0.0
    %1665 = vmatprep.subr.mxu0 0.0
    %1666 = vmatpush1.msra.mxu0 0.0
    %1667 = vmatprep.subr.mxu0 0.0
    %1668 = vmatpush1.msra.mxu0 0.0
    %1669 = vmatprep.subr.mxu0 0.0
    %1670 = vmatpush1.msra.mxu0 0.0
    %1671 = vmatprep.subr.mxu0 0.0
    %1672 = vmatpush1.msra.mxu0 0.0
    %1673 = vmatprep.subr.mxu0 0.0
    %1674 = vmatpush1.msra.mxu0 0.0
    %1675 = vmatprep.subr.mxu0 0.0
    %1676 = vmatpush1.msra.mxu0 0.0
    %1677 = vmatprep.subr.mxu0 0.0
    %1678 = vmatpush1.msra.mxu0 0.0
    %1679 = vmatprep.subr.mxu0 0.0
    %1680 = vmatpush1.msra.mxu0 0.0
    %1681 = vmatprep.subr.mxu0 0.0
    %1682 = vmatpush1.msra.mxu0 0.0
    %1683 = vmatprep.subr.mxu0 0.0
    %1684 = vmatpush1.msra.mxu0 0.0
    %1685 = vmatprep.subr.mxu0 0.0
    %1686 = vmatpush1.msra.mxu0 0.0
    %1687 = vmatprep.subr.mxu0 0.0
    %1688 = vmatpush1.msra.mxu0 0.0
    %1689 = vmatprep.subr.mxu0 0.0
    %1690 = vmatpush1.msra.mxu0 0.0
    %1691 = vmatprep.subr.mxu0 0.0
    %1692 = vmatpush1.msra.mxu0 0.0
    %1693 = vmatprep.mubr.f32.mxu0 0.0
    %1694 = vmatmul.mubr.f32.gmra.mrb[0].mxu0 %v158
    %v1695 = vpop.f32.mrb[0].mxu0
    %v1696 = vadd.f32 0.0, %v1695
    %v1697 = vpop.f32.mrb[0].mxu0
    %1698 = vmatprep.mubr.f32.mxu0 0.0
    %1699 = vmatmul.mubr.f32.gmra.mrb[0].mxu0 %v161
    %v1700 = vpop.f32.mrb[0].mxu0
    %v1701 = vadd.f32 0.0, %v1700
    %v1702 = vpop.f32.mrb[0].mxu0
    %1703 = vdwg.mxu0
    %1704 = vmatprep.subr.mxu0 0.0
    %1705 = vmatpush1.msra.mxu0 %v1535
    %1706 = vmatprep.subr.mxu0 0.0
    %1707 = vmatpush1.msra.mxu0 %v1536
    %1708 = vmatprep.subr.mxu0 0.0
    %1709 = vmatpush1.msra.mxu0 %v1537
    %1710 = vmatprep.subr.mxu0 0.0
    %1711 = vmatpush1.msra.mxu0 %v1538
    %1712 = vmatprep.subr.mxu0 0.0
    %1713 = vmatpush1.msra.mxu0 %v1539
    %1714 = vmatprep.subr.mxu0 0.0
    %1715 = vmatpush1.msra.mxu0 %v1540
    %1716 = vmatprep.subr.mxu0 0.0
    %1717 = vmatpush1.msra.mxu0 0.0
    %1718 = vmatprep.subr.mxu0 0.0
    %1719 = vmatpush1.msra.mxu0 0.0
    %1720 = vmatprep.subr.mxu0 0.0
    %1721 = vmatpush1.msra.mxu0 0.0
    %1722 = vmatprep.subr.mxu0 0.0
    %1723 = vmatpush1.msra.mxu0 0.0
    %1724 = vmatprep.subr.mxu0 0.0
    %1725 = vmatpush1.msra.mxu0 0.0
    %1726 = vmatprep.subr.mxu0 0.0
    %1727 = vmatpush1.msra.mxu0 0.0
    %1728 = vmatprep.subr.mxu0 0.0
    %1729 = vmatpush1.msra.mxu0 0.0
    %1730 = vmatprep.subr.mxu0 0.0
    %1731 = vmatpush1.msra.mxu0 0.0
    %1732 = vmatprep.subr.mxu0 0.0
    %1733 = vmatpush1.msra.mxu0 0.0
    %1734 = vmatprep.subr.mxu0 0.0
    %1735 = vmatpush1.msra.mxu0 0.0
    %1736 = vmatprep.subr.mxu0 0.0
    %1737 = vmatpush1.msra.mxu0 0.0
    %1738 = vmatprep.subr.mxu0 0.0
    %1739 = vmatpush1.msra.mxu0 0.0
    %1740 = vmatprep.subr.mxu0 0.0
    %1741 = vmatpush1.msra.mxu0 0.0
    %1742 = vmatprep.subr.mxu0 0.0
    %1743 = vmatpush1.msra.mxu0 0.0
    %1744 = vmatprep.subr.mxu0 0.0
    %1745 = vmatpush1.msra.mxu0 0.0
    %1746 = vmatprep.subr.mxu0 0.0
    %1747 = vmatpush1.msra.mxu0 0.0
    %1748 = vmatprep.subr.mxu0 0.0
    %1749 = vmatpush1.msra.mxu0 0.0
    %1750 = vmatprep.subr.mxu0 0.0
    %1751 = vmatpush1.msra.mxu0 0.0
    %1752 = vmatprep.subr.mxu0 0.0
    %1753 = vmatpush1.msra.mxu0 0.0
    %1754 = vmatprep.subr.mxu0 0.0
    %1755 = vmatpush1.msra.mxu0 0.0
    %1756 = vmatprep.subr.mxu0 0.0
    %1757 = vmatpush1.msra.mxu0 0.0
    %1758 = vmatprep.subr.mxu0 0.0
    %1759 = vmatpush1.msra.mxu0 0.0
    %1760 = vmatprep.subr.mxu0 0.0
    %1761 = vmatpush1.msra.mxu0 0.0
    %1762 = vmatprep.subr.mxu0 0.0
    %1763 = vmatpush1.msra.mxu0 0.0
    %1764 = vmatprep.subr.mxu0 0.0
    %1765 = vmatpush1.msra.mxu0 0.0
    %1766 = vmatprep.subr.mxu0 0.0
    %1767 = vmatpush1.msra.mxu0 0.0
    %1768 = vmatprep.mubr.f32.mxu0 0.0
    %1769 = vmatmul.mubr.f32.gmra.mrb[0].mxu0 %v158
    %v1770 = vpop.f32.mrb[0].mxu0
    %v1771 = vadd.f32 0.0, %v1770
    %v1772 = vpop.f32.mrb[0].mxu0
    %1773 = vmatprep.mubr.f32.mxu0 0.0
    %1774 = vmatmul.mubr.f32.gmra.mrb[0].mxu0 %v161
    %v1775 = vpop.f32.mrb[0].mxu0
    %v1776 = vadd.f32 0.0, %v1775
    %v1777 = vpop.f32.mrb[0].mxu0
    %1778 = vdwg.mxu0
    %v1780 = vsel %vm313, %v1611, 0
    %v1783 = vsel %vm313, %v1616, 0
    %v1786 = vsel %vm313, %v1696, 0
    %1788 = vmatprep.subr.mxu0 0.0
    %1789 = vmatpush1.xpose.msra.mxu0 %v1786
    %1790 = vmatprep.subr.mxu0 0.0
    %1791 = vmatpush1.xpose.msra.mxu0 0.0
    %1792 = vmatprep.subr.mxu0 0.0
    %1793 = vmatpush1.xpose.msra.mxu0 0.0
    %1794 = vmatprep.subr.mxu0 0.0
    %1795 = vmatpush1.xpose.msra.mxu0 0.0
    %1796 = vmatprep.subr.mxu0 0.0
    %1797 = vmatpush1.xpose.msra.mxu0 0.0
    %1798 = vmatprep.subr.mxu0 0.0
    %1799 = vmatpush1.xpose.msra.mxu0 0.0
    %1800 = vmatprep.subr.mxu0 0.0
    %1801 = vmatpush1.xpose.msra.mxu0 0.0
    %1802 = vmatprep.subr.mxu0 0.0
    %1803 = vmatpush1.xpose.msra.mxu0 0.0
    %1804 = vmatprep.subr.mxu0 0.0
    %1805 = vmatpush1.xpose.msra.mxu0 0.0
    %1806 = vmatprep.subr.mxu0 0.0
    %1807 = vmatpush1.xpose.msra.mxu0 0.0
    %1808 = vmatprep.subr.mxu0 0.0
    %1809 = vmatpush1.xpose.msra.mxu0 0.0
    %1810 = vmatprep.subr.mxu0 0.0
    %1811 = vmatpush1.xpose.msra.mxu0 0.0
    %1812 = vmatprep.subr.mxu0 0.0
    %1813 = vmatpush1.xpose.msra.mxu0 0.0
    %1814 = vmatprep.subr.mxu0 0.0
    %1815 = vmatpush1.xpose.msra.mxu0 0.0
    %1816 = vmatprep.subr.mxu0 0.0
    %1817 = vmatpush1.xpose.msra.mxu0 0.0
    %1818 = vmatprep.subr.mxu0 0.0
    %1819 = vmatpush1.xpose.msra.mxu0 0.0
    %1820 = vmatprep.subr.mxu0 0.0
    %1821 = vmatpush1.xpose.msra.mxu0 0.0
    %1822 = vmatprep.subr.mxu0 0.0
    %1823 = vmatpush1.xpose.msra.mxu0 0.0
    %1824 = vmatprep.subr.mxu0 0.0
    %1825 = vmatpush1.xpose.msra.mxu0 0.0
    %1826 = vmatprep.subr.mxu0 0.0
    %1827 = vmatpush1.xpose.msra.mxu0 0.0
    %1828 = vmatprep.subr.mxu0 0.0
    %1829 = vmatpush1.xpose.msra.mxu0 0.0
    %1830 = vmatprep.subr.mxu0 0.0
    %1831 = vmatpush1.xpose.msra.mxu0 0.0
    %1832 = vmatprep.subr.mxu0 0.0
    %1833 = vmatpush1.xpose.msra.mxu0 0.0
    %1834 = vmatprep.subr.mxu0 0.0
    %1835 = vmatpush1.xpose.msra.mxu0 0.0
    %1836 = vmatprep.subr.mxu0 0.0
    %1837 = vmatpush1.xpose.msra.mxu0 0.0
    %1838 = vmatprep.subr.mxu0 0.0
    %1839 = vmatpush1.xpose.msra.mxu0 0.0
    %1840 = vmatprep.subr.mxu0 0.0
    %1841 = vmatpush1.xpose.msra.mxu0 0.0
    %1842 = vmatprep.subr.mxu0 0.0
    %1843 = vmatpush1.xpose.msra.mxu0 0.0
    %1844 = vmatprep.subr.mxu0 0.0
    %1845 = vmatpush1.xpose.msra.mxu0 0.0
    %1846 = vmatprep.subr.mxu0 0.0
    %1847 = vmatpush1.xpose.msra.mxu0 0.0
    %1848 = vmatprep.subr.mxu0 0.0
    %1849 = vmatpush1.xpose.msra.mxu0 0.0
    %1850 = vmatprep.subr.mxu0 0.0
    %1851 = vmatpush1.xpose.msra.mxu0 0.0
    %1852 = vmatprep.mubr.f32.mxu0 0.0
    %1853 = vmatmul.mubr.f32.gmra.mrb[0].mxu0 %v1780
    %v1854 = vpop.f32.mrb[0].mxu0
    %v1855 = vadd.f32 0.0, %v1854
    %v1856 = vpop.f32.mrb[0].mxu0
    %1857 = vmatprep.mubr.f32.mxu0 0.0
    %1858 = vmatmul.mubr.f32.gmra.mrb[0].mxu0 %v1783
    %v1859 = vpop.f32.mrb[0].mxu0
    %v1860 = vadd.f32 0.0, %v1859
    %v1861 = vpop.f32.mrb[0].mxu0
    %1862 = vdwg.mxu0
    %v1863 = vsel %vm398, %v1855, -inf
    %1864 = vmax.xlane.f32.xlu0 %v1863
    %v1865 = vpop.xlane.xlu0 %1864
    %v1866 = vsel %vm398, %v1860, -inf
    %1867 = vmax.xlane.f32.xlu0 %v1866
    %v1868 = vpop.xlane.xlu0 %1867
    %v1869 = vsub.f32 %v1855, %v1865
    %v1870 = vsub.f32 %v1860, %v1868
    %v1871 = vmul.f32 %v1869, 1.442695
    %v1872 = vpow.pop %v1871
    %v1873 = vmul.f32 %v1870, 1.442695
    %v1874 = vpow.pop %v1873
    %v1875 = vsel %vm398, %v1872, 0.0
    %1876 = vadd.xlane.f32.xlu0 %v1875
    %v1877 = vpop.xlane.xlu0 %1876
    %v1878 = vsel %vm398, %v1874, 0.0
    %1879 = vadd.xlane.f32.xlu0 %v1878
    %v1880 = vpop.xlane.xlu0 %1879
    %v1881 = vrcp.pop %v1877
    %v1882 = vmul.f32 %v1872, %v1881
    %v1883 = vrcp.pop %v1880
    %v1884 = vmul.f32 %v1874, %v1883
    %v1886 = vsel %vm398, %v1882, 0
    %v1889 = vsel %vm398, %v1884, 0
    %1891 = vmatprep.subr.mxu0 0.0
    %1892 = vmatpush1.msra.mxu0 %v1771
    %1893 = vmatprep.subr.mxu0 0.0
    %1894 = vmatpush1.msra.mxu0 0.0
    %1895 = vmatprep.subr.mxu0 0.0
    %1896 = vmatpush1.msra.mxu0 0.0
    %1897 = vmatprep.subr.mxu0 0.0
    %1898 = vmatpush1.msra.mxu0 0.0
    %1899 = vmatprep.subr.mxu0 0.0
    %1900 = vmatpush1.msra.mxu0 0.0
    %1901 = vmatprep.subr.mxu0 0.0
    %1902 = vmatpush1.msra.mxu0 0.0
    %1903 = vmatprep.subr.mxu0 0.0
    %1904 = vmatpush1.msra.mxu0 0.0
    %1905 = vmatprep.subr.mxu0 0.0
    %1906 = vmatpush1.msra.mxu0 0.0
    %1907 = vmatprep.subr.mxu0 0.0
    %1908 = vmatpush1.msra.mxu0 0.0
    %1909 = vmatprep.subr.mxu0 0.0
    %1910 = vmatpush1.msra.mxu0 0.0
    %1911 = vmatprep.subr.mxu0 0.0
    %1912 = vmatpush1.msra.mxu0 0.0
    %1913 = vmatprep.subr.mxu0 0.0
    %1914 = vmatpush1.msra.mxu0 0.0
    %1915 = vmatprep.subr.mxu0 0.0
    %1916 = vmatpush1.msra.mxu0 0.0
    %1917 = vmatprep.subr.mxu0 0.0
    %1918 = vmatpush1.msra.mxu0 0.0
    %1919 = vmatprep.subr.mxu0 0.0
    %1920 = vmatpush1.msra.mxu0 0.0
    %1921 = vmatprep.subr.mxu0 0.0
    %1922 = vmatpush1.msra.mxu0 0.0
    %1923 = vmatprep.subr.mxu0 0.0
    %1924 = vmatpush1.msra.mxu0 0.0
    %1925 = vmatprep.subr.mxu0 0.0
    %1926 = vmatpush1.msra.mxu0 0.0
    %1927 = vmatprep.subr.mxu0 0.0
    %1928 = vmatpush1.msra.mxu0 0.0
    %1929 = vmatprep.subr.mxu0 0.0
    %1930 = vmatpush1.msra.mxu0 0.0
    %1931 = vmatprep.subr.mxu0 0.0
    %1932 = vmatpush1.msra.mxu0 0.0
    %1933 = vmatprep.subr.mxu0 0.0
    %1934 = vmatpush1.msra.mxu0 0.0
    %1935 = vmatprep.subr.mxu0 0.0
    %1936 = vmatpush1.msra.mxu0 0.0
    %1937 = vmatprep.subr.mxu0 0.0
    %1938 = vmatpush1.msra.mxu0 0.0
    %1939 = vmatprep.subr.mxu0 0.0
    %1940 = vmatpush1.msra.mxu0 0.0
    %1941 = vmatprep.subr.mxu0 0.0
    %1942 = vmatpush1.msra.mxu0 0.0
    %1943 = vmatprep.subr.mxu0 0.0
    %1944 = vmatpush1.msra.mxu0 0.0
    %1945 = vmatprep.subr.mxu0 0.0
    %1946 = vmatpush1.msra.mxu0 0.0
    %1947 = vmatprep.subr.mxu0 0.0
    %1948 = vmatpush1.msra.mxu0 0.0
    %1949 = vmatprep.subr.mxu0 0.0
    %1950 = vmatpush1.msra.mxu0 0.0
    %1951 = vmatprep.subr.mxu0 0.0
    %1952 = vmatpush1.msra.mxu0 0.0
    %1953 = vmatprep.subr.mxu0 0.0
    %1954 = vmatpush1.msra.mxu0 0.0
    %1955 = vmatprep.mubr.f32.mxu0 0.0
    %1956 = vmatmul.mubr.f32.gmra.mrb[0].mxu0 %v1886
    %v1957 = vpop.f32.mrb[0].mxu0
    %v1958 = vadd.f32 0.0, %v1957
    %v1959 = vpop.f32.mrb[0].mxu0
    %1960 = vmatprep.mubr.f32.mxu0 0.0
    %1961 = vmatmul.mubr.f32.gmra.mrb[0].mxu0 %v1889
    %v1962 = vpop.f32.mrb[0].mxu0
    %v1963 = vadd.f32 0.0, %v1962
    %v1964 = vpop.f32.mrb[0].mxu0
    %1965 = vdwg.mxu0
    %v1967 = vsel %vm313, %v1621, 0
    %v1970 = vsel %vm313, %v1626, 0
    %v1973 = vsel %vm313, %v1701, 0
    %1975 = vmatprep.subr.mxu0 0.0
    %1976 = vmatpush1.xpose.msra.mxu0 %v1973
    %1977 = vmatprep.subr.mxu0 0.0
    %1978 = vmatpush1.xpose.msra.mxu0 0.0
    %1979 = vmatprep.subr.mxu0 0.0
    %1980 = vmatpush1.xpose.msra.mxu0 0.0
    %1981 = vmatprep.subr.mxu0 0.0
    %1982 = vmatpush1.xpose.msra.mxu0 0.0
    %1983 = vmatprep.subr.mxu0 0.0
    %1984 = vmatpush1.xpose.msra.mxu0 0.0
    %1985 = vmatprep.subr.mxu0 0.0
    %1986 = vmatpush1.xpose.msra.mxu0 0.0
    %1987 = vmatprep.subr.mxu0 0.0
    %1988 = vmatpush1.xpose.msra.mxu0 0.0
    %1989 = vmatprep.subr.mxu0 0.0
    %1990 = vmatpush1.xpose.msra.mxu0 0.0
    %1991 = vmatprep.subr.mxu0 0.0
    %1992 = vmatpush1.xpose.msra.mxu0 0.0
    %1993 = vmatprep.subr.mxu0 0.0
    %1994 = vmatpush1.xpose.msra.mxu0 0.0
    %1995 = vmatprep.subr.mxu0 0.0
    %1996 = vmatpush1.xpose.msra.mxu0 0.0
    %1997 = vmatprep.subr.mxu0 0.0
    %1998 = vmatpush1.xpose.msra.mxu0 0.0
    %1999 = vmatprep.subr.mxu0 0.0
    %2000 = vmatpush1.xpose.msra.mxu0 0.0
    %2001 = vmatprep.subr.mxu0 0.0
    %2002 = vmatpush1.xpose.msra.mxu0 0.0
    %2003 = vmatprep.subr.mxu0 0.0
    %2004 = vmatpush1.xpose.msra.mxu0 0.0
    %2005 = vmatprep.subr.mxu0 0.0
    %2006 = vmatpush1.xpose.msra.mxu0 0.0
    %2007 = vmatprep.subr.mxu0 0.0
    %2008 = vmatpush1.xpose.msra.mxu0 0.0
    %2009 = vmatprep.subr.mxu0 0.0
    %2010 = vmatpush1.xpose.msra.mxu0 0.0
    %2011 = vmatprep.subr.mxu0 0.0
    %2012 = vmatpush1.xpose.msra.mxu0 0.0
    %2013 = vmatprep.subr.mxu0 0.0
    %2014 = vmatpush1.xpose.msra.mxu0 0.0
    %2015 = vmatprep.subr.mxu0 0.0
    %2016 = vmatpush1.xpose.msra.mxu0 0.0
    %2017 = vmatprep.subr.mxu0 0.0
    %2018 = vmatpush1.xpose.msra.mxu0 0.0
    %2019 = vmatprep.subr.mxu0 0.0
    %2020 = vmatpush1.xpose.msra.mxu0 0.0
    %2021 = vmatprep.subr.mxu0 0.0
    %2022 = vmatpush1.xpose.msra.mxu0 0.0
    %2023 = vmatprep.subr.mxu0 0.0
    %2024 = vmatpush1.xpose.msra.mxu0 0.0
    %2025 = vmatprep.subr.mxu0 0.0
    %2026 = vmatpush1.xpose.msra.mxu0 0.0
    %2027 = vmatprep.subr.mxu0 0.0
    %2028 = vmatpush1.xpose.msra.mxu0 0.0
    %2029 = vmatprep.subr.mxu0 0.0
    %2030 = vmatpush1.xpose.msra.mxu0 0.0
    %2031 = vmatprep.subr.mxu0 0.0
    %2032 = vmatpush1.xpose.msra.mxu0 0.0
    %2033 = vmatprep.subr.mxu0 0.0
    %2034 = vmatpush1.xpose.msra.mxu0 0.0
    %2035 = vmatprep.subr.mxu0 0.0
    %2036 = vmatpush1.xpose.msra.mxu0 0.0
    %2037 = vmatprep.subr.mxu0 0.0
    %2038 = vmatpush1.xpose.msra.mxu0 0.0
    %2039 = vmatprep.mubr.f32.mxu0 0.0
    %2040 = vmatmul.mubr.f32.gmra.mrb[0].mxu0 %v1967
    %v2041 = vpop.f32.mrb[0].mxu0
    %v2042 = vadd.f32 0.0, %v2041
    %v2043 = vpop.f32.mrb[0].mxu0
    %2044 = vmatprep.mubr.f32.mxu0 0.0
    %2045 = vmatmul.mubr.f32.gmra.mrb[0].mxu0 %v1970
    %v2046 = vpop.f32.mrb[0].mxu0
    %v2047 = vadd.f32 0.0, %v2046
    %v2048 = vpop.f32.mrb[0].mxu0
    %2049 = vdwg.mxu0
    %v2050 = vsel %vm398, %v2042, -inf
    %2051 = vmax.xlane.f32.xlu0 %v2050
    %v2052 = vpop.xlane.xlu0 %2051
    %v2053 = vsel %vm398, %v2047, -inf
    %2054 = vmax.xlane.f32.xlu0 %v2053
    %v2055 = vpop.xlane.xlu0 %2054
    %v2056 = vsub.f32 %v2042, %v2052
    %v2057 = vsub.f32 %v2047, %v2055
    %v2058 = vmul.f32 %v2056, 1.442695
    %v2059 = vpow.pop %v2058
    %v2060 = vmul.f32 %v2057, 1.442695
    %v2061 = vpow.pop %v2060
    %v2062 = vsel %vm398, %v2059, 0.0
    %2063 = vadd.xlane.f32.xlu0 %v2062
    %v2064 = vpop.xlane.xlu0 %2063
    %v2065 = vsel %vm398, %v2061, 0.0
    %2066 = vadd.xlane.f32.xlu0 %v2065
    %v2067 = vpop.xlane.xlu0 %2066
    %v2068 = vrcp.pop %v2064
    %v2069 = vmul.f32 %v2059, %v2068
    %v2070 = vrcp.pop %v2067
    %v2071 = vmul.f32 %v2061, %v2070
    %v2073 = vsel %vm398, %v2069, 0
    %v2076 = vsel %vm398, %v2071, 0
    %2078 = vmatprep.subr.mxu0 0.0
    %2079 = vmatpush1.msra.mxu0 %v1776
    %2080 = vmatprep.subr.mxu0 0.0
    %2081 = vmatpush1.msra.mxu0 0.0
    %2082 = vmatprep.subr.mxu0 0.0
    %2083 = vmatpush1.msra.mxu0 0.0
    %2084 = vmatprep.subr.mxu0 0.0
    %2085 = vmatpush1.msra.mxu0 0.0
    %2086 = vmatprep.subr.mxu0 0.0
    %2087 = vmatpush1.msra.mxu0 0.0
    %2088 = vmatprep.subr.mxu0 0.0
    %2089 = vmatpush1.msra.mxu0 0.0
    %2090 = vmatprep.subr.mxu0 0.0
    %2091 = vmatpush1.msra.mxu0 0.0
    %2092 = vmatprep.subr.mxu0 0.0
    %2093 = vmatpush1.msra.mxu0 0.0
    %2094 = vmatprep.subr.mxu0 0.0
    %2095 = vmatpush1.msra.mxu0 0.0
    %2096 = vmatprep.subr.mxu0 0.0
    %2097 = vmatpush1.msra.mxu0 0.0
    %2098 = vmatprep.subr.mxu0 0.0
    %2099 = vmatpush1.msra.mxu0 0.0
    %2100 = vmatprep.subr.mxu0 0.0
    %2101 = vmatpush1.msra.mxu0 0.0
    %2102 = vmatprep.subr.mxu0 0.0
    %2103 = vmatpush1.msra.mxu0 0.0
    %2104 = vmatprep.subr.mxu0 0.0
    %2105 = vmatpush1.msra.mxu0 0.0
    %2106 = vmatprep.subr.mxu0 0.0
    %2107 = vmatpush1.msra.mxu0 0.0
    %2108 = vmatprep.subr.mxu0 0.0
    %2109 = vmatpush1.msra.mxu0 0.0
    %2110 = vmatprep.subr.mxu0 0.0
    %2111 = vmatpush1.msra.mxu0 0.0
    %2112 = vmatprep.subr.mxu0 0.0
    %2113 = vmatpush1.msra.mxu0 0.0
    %2114 = vmatprep.subr.mxu0 0.0
    %2115 = vmatpush1.msra.mxu0 0.0
    %2116 = vmatprep.subr.mxu0 0.0
    %2117 = vmatpush1.msra.mxu0 0.0
    %2118 = vmatprep.subr.mxu0 0.0
    %2119 = vmatpush1.msra.mxu0 0.0
    %2120 = vmatprep.subr.mxu0 0.0
    %2121 = vmatpush1.msra.mxu0 0.0
    %2122 = vmatprep.subr.mxu0 0.0
    %2123 = vmatpush1.msra.mxu0 0.0
    %2124 = vmatprep.subr.mxu0 0.0
    %2125 = vmatpush1.msra.mxu0 0.0
    %2126 = vmatprep.subr.mxu0 0.0
    %2127 = vmatpush1.msra.mxu0 0.0
    %2128 = vmatprep.subr.mxu0 0.0
    %2129 = vmatpush1.msra.mxu0 0.0
    %2130 = vmatprep.subr.mxu0 0.0
    %2131 = vmatpush1.msra.mxu0 0.0
    %2132 = vmatprep.subr.mxu0 0.0
    %2133 = vmatpush1.msra.mxu0 0.0
    %2134 = vmatprep.subr.mxu0 0.0
    %2135 = vmatpush1.msra.mxu0 0.0
    %2136 = vmatprep.subr.mxu0 0.0
    %2137 = vmatpush1.msra.mxu0 0.0
    %2138 = vmatprep.subr.mxu0 0.0
    %2139 = vmatpush1.msra.mxu0 0.0
    %2140 = vmatprep.subr.mxu0 0.0
    %2141 = vmatpush1.msra.mxu0 0.0
    %2142 = vmatprep.mubr.f32.mxu0 0.0
    %2143 = vmatmul.mubr.f32.gmra.mrb[0].mxu0 %v2073
    %v2144 = vpop.f32.mrb[0].mxu0
    %v2145 = vadd.f32 0.0, %v2144
    %v2146 = vpop.f32.mrb[0].mxu0
    %2147 = vmatprep.mubr.f32.mxu0 0.0
    %2148 = vmatmul.mubr.f32.gmra.mrb[0].mxu0 %v2076
    %v2149 = vpop.f32.mrb[0].mxu0
    %v2150 = vadd.f32 0.0, %v2149
    %v2151 = vpop.f32.mrb[0].mxu0
    %2152 = vdwg.mxu0
    %v2154 = vsel %vm313, %v1958, 0
    %v2157 = vsel %vm313, %v1963, 0
    %v2160 = vsel %vm313, %v2145, 0
    %v2163 = vsel %vm313, %v2150, 0
    %2165 = vmatprep.subr.mxu0 0.0
    %2166 = vmatpush1.msra.mxu0 %v1542
    %2167 = vmatprep.subr.mxu0 0.0
    %2168 = vmatpush1.msra.mxu0 %v1543
    %2169 = vmatprep.subr.mxu0 0.0
    %2170 = vmatpush1.msra.mxu0 0.0
    %2171 = vmatprep.subr.mxu0 0.0
    %2172 = vmatpush1.msra.mxu0 0.0
    %2173 = vmatprep.subr.mxu0 0.0
    %2174 = vmatpush1.msra.mxu0 0.0
    %2175 = vmatprep.subr.mxu0 0.0
    %2176 = vmatpush1.msra.mxu0 0.0
    %2177 = vmatprep.subr.mxu0 0.0
    %2178 = vmatpush1.msra.mxu0 0.0
    %2179 = vmatprep.subr.mxu0 0.0
    %2180 = vmatpush1.msra.mxu0 0.0
    %2181 = vmatprep.subr.mxu0 0.0
    %2182 = vmatpush1.msra.mxu0 0.0
    %2183 = vmatprep.subr.mxu0 0.0
    %2184 = vmatpush1.msra.mxu0 0.0
    %2185 = vmatprep.subr.mxu0 0.0
    %2186 = vmatpush1.msra.mxu0 0.0
    %2187 = vmatprep.subr.mxu0 0.0
    %2188 = vmatpush1.msra.mxu0 0.0
    %2189 = vmatprep.subr.mxu0 0.0
    %2190 = vmatpush1.msra.mxu0 0.0
    %2191 = vmatprep.subr.mxu0 0.0
    %2192 = vmatpush1.msra.mxu0 0.0
    %2193 = vmatprep.subr.mxu0 0.0
    %2194 = vmatpush1.msra.mxu0 0.0
    %2195 = vmatprep.subr.mxu0 0.0
    %2196 = vmatpush1.msra.mxu0 0.0
    %2197 = vmatprep.subr.mxu0 0.0
    %2198 = vmatpush1.msra.mxu0 0.0
    %2199 = vmatprep.subr.mxu0 0.0
    %2200 = vmatpush1.msra.mxu0 0.0
    %2201 = vmatprep.subr.mxu0 0.0
    %2202 = vmatpush1.msra.mxu0 0.0
    %2203 = vmatprep.subr.mxu0 0.0
    %2204 = vmatpush1.msra.mxu0 0.0
    %2205 = vmatprep.subr.mxu0 0.0
    %2206 = vmatpush1.msra.mxu0 0.0
    %2207 = vmatprep.subr.mxu0 0.0
    %2208 = vmatpush1.msra.mxu0 0.0
    %2209 = vmatprep.subr.mxu0 0.0
    %2210 = vmatpush1.msra.mxu0 0.0
    %2211 = vmatprep.subr.mxu0 0.0
    %2212 = vmatpush1.msra.mxu0 0.0
    %2213 = vmatprep.subr.mxu0 0.0
    %2214 = vmatpush1.msra.mxu0 0.0
    %2215 = vmatprep.subr.mxu0 0.0
    %2216 = vmatpush1.msra.mxu0 0.0
    %2217 = vmatprep.subr.mxu0 0.0
    %2218 = vmatpush1.msra.mxu0 0.0
    %2219 = vmatprep.subr.mxu0 0.0
    %2220 = vmatpush1.msra.mxu0 0.0
    %2221 = vmatprep.subr.mxu0 0.0
    %2222 = vmatpush1.msra.mxu0 0.0
    %2223 = vmatprep.subr.mxu0 0.0
    %2224 = vmatpush1.msra.mxu0 0.0
    %2225 = vmatprep.subr.mxu0 0.0
    %2226 = vmatpush1.msra.mxu0 0.0
    %2227 = vmatprep.subr.mxu0 0.0
    %2228 = vmatpush1.msra.mxu0 0.0
    %2229 = vmatprep.mubr.f32.mxu0 0.0
    %2230 = vmatmul.mubr.f32.gmra.mrb[0].mxu0 %v2154
    %v2231 = vpop.f32.mrb[0].mxu0
    %v2232 = vadd.f32 0.0, %v2231
    %v2233 = vpop.f32.mrb[0].mxu0
    %2234 = vmatprep.mubr.f32.mxu0 0.0
    %2235 = vmatmul.mubr.f32.gmra.mrb[0].mxu0 %v2157
    %v2236 = vpop.f32.mrb[0].mxu0
    %v2237 = vadd.f32 0.0, %v2236
    %v2238 = vpop.f32.mrb[0].mxu0
    %2239 = vmatprep.mubr.f32.mxu0 0.0
    %2240 = vmatmul.mubr.f32.gmra.mrb[0].mxu0 %v2160
    %v2241 = vpop.f32.mrb[0].mxu0
    %v2242 = vadd.f32 0.0, %v2241
    %v2243 = vpop.f32.mrb[0].mxu0
    %2244 = vmatprep.mubr.f32.mxu0 0.0
    %2245 = vmatmul.mubr.f32.gmra.mrb[0].mxu0 %v2163
    %v2246 = vpop.f32.mrb[0].mxu0
    %v2247 = vadd.f32 0.0, %v2246
    %v2248 = vpop.f32.mrb[0].mxu0
    %2249 = vdwg.mxu0
    %v2250 = vadd.f32 %v1518, %v2232
    %v2251 = vadd.f32 %v1519, %v2237
    %v2252 = vadd.f32 %v1520, %v2242
    %v2253 = vadd.f32 %v1521, %v2247
    %s2254 = scalar_lea.vmem %s2, 96
    %v2255 = vld [vmem:[%s2254] sm:$0xff]
    %v2256 = vld [vmem:[%s2254 + $0x8] sm:$0xff]
    %v2257 = vld [vmem:[%s2254 + $0x10] sm:$0xff]
    %v2258 = vld [vmem:[%s2254 + $0x18] sm:$0xff]
    %s2259 = scalar_lea.vmem %s3, 144
    %v2260 = vld [vmem:[%s2259] sm:$0xff]
    %v2261 = vld [vmem:[%s2259 + $0x8] sm:$0xff]
    %v2262 = vld [vmem:[%s2259 + $0x10] sm:$0xff]
    %v2263 = vld [vmem:[%s2259 + $0x18] sm:$0xff]
    %v2264 = vld [vmem:[%s2259 + $0x20] sm:$0xff]
    %v2265 = vld [vmem:[%s2259 + $0x28] sm:$0xff]
    %s2266 = scalar_lea.vmem %s4, 144
    %v2267 = vld [vmem:[%s2266] sm:$0xff]
    %v2268 = vld [vmem:[%s2266 + $0x8] sm:$0xff]
    %v2269 = vld [vmem:[%s2266 + $0x10] sm:$0xff]
    %v2270 = vld [vmem:[%s2266 + $0x18] sm:$0xff]
    %v2271 = vld [vmem:[%s2266 + $0x20] sm:$0xff]
    %v2272 = vld [vmem:[%s2266 + $0x28] sm:$0xff]
    %s2273 = scalar_lea.vmem %s5, 48
    %v2274 = vld [vmem:[%s2273] sm:$0xff]
    %v2275 = vld [vmem:[%s2273 + $0x8] sm:$0xff]
    %2276 = vmatprep.subr.mxu0 0.0
    %2277 = vmatpush1.msra.mxu0 %v2255
    %2278 = vmatprep.subr.mxu0 0.0
    %2279 = vmatpush1.msra.mxu0 %v2256
    %2280 = vmatprep.subr.mxu0 0.0
    %2281 = vmatpush1.msra.mxu0 %v2257
    %2282 = vmatprep.subr.mxu0 0.0
    %2283 = vmatpush1.msra.mxu0 %v2258
    %2284 = vmatprep.subr.mxu0 0.0
    %2285 = vmatpush1.msra.mxu0 0.0
    %2286 = vmatprep.subr.mxu0 0.0
    %2287 = vmatpush1.msra.mxu0 0.0
    %2288 = vmatprep.subr.mxu0 0.0
    %2289 = vmatpush1.msra.mxu0 0.0
    %2290 = vmatprep.subr.mxu0 0.0
    %2291 = vmatpush1.msra.mxu0 0.0
    %2292 = vmatprep.subr.mxu0 0.0
    %2293 = vmatpush1.msra.mxu0 0.0
    %2294 = vmatprep.subr.mxu0 0.0
    %2295 = vmatpush1.msra.mxu0 0.0
    %2296 = vmatprep.subr.mxu0 0.0
    %2297 = vmatpush1.msra.mxu0 0.0
    %2298 = vmatprep.subr.mxu0 0.0
    %2299 = vmatpush1.msra.mxu0 0.0
    %2300 = vmatprep.subr.mxu0 0.0
    %2301 = vmatpush1.msra.mxu0 0.0
    %2302 = vmatprep.subr.mxu0 0.0
    %2303 = vmatpush1.msra.mxu0 0.0
    %2304 = vmatprep.subr.mxu0 0.0
    %2305 = vmatpush1.msra.mxu0 0.0
    %2306 = vmatprep.subr.mxu0 0.0
    %2307 = vmatpush1.msra.mxu0 0.0
    %2308 = vmatprep.subr.mxu0 0.0
    %2309 = vmatpush1.msra.mxu0 0.0
    %2310 = vmatprep.subr.mxu0 0.0
    %2311 = vmatpush1.msra.mxu0 0.0
    %2312 = vmatprep.subr.mxu0 0.0
    %2313 = vmatpush1.msra.mxu0 0.0
    %2314 = vmatprep.subr.mxu0 0.0
    %2315 = vmatpush1.msra.mxu0 0.0
    %2316 = vmatprep.subr.mxu0 0.0
    %2317 = vmatpush1.msra.mxu0 0.0
    %2318 = vmatprep.subr.mxu0 0.0
    %2319 = vmatpush1.msra.mxu0 0.0
    %2320 = vmatprep.subr.mxu0 0.0
    %2321 = vmatpush1.msra.mxu0 0.0
    %2322 = vmatprep.subr.mxu0 0.0
    %2323 = vmatpush1.msra.mxu0 0.0
    %2324 = vmatprep.subr.mxu0 0.0
    %2325 = vmatpush1.msra.mxu0 0.0
    %2326 = vmatprep.subr.mxu0 0.0
    %2327 = vmatpush1.msra.mxu0 0.0
    %2328 = vmatprep.subr.mxu0 0.0
    %2329 = vmatpush1.msra.mxu0 0.0
    %2330 = vmatprep.subr.mxu0 0.0
    %2331 = vmatpush1.msra.mxu0 0.0
    %2332 = vmatprep.subr.mxu0 0.0
    %2333 = vmatpush1.msra.mxu0 0.0
    %2334 = vmatprep.subr.mxu0 0.0
    %2335 = vmatpush1.msra.mxu0 0.0
    %2336 = vmatprep.subr.mxu0 0.0
    %2337 = vmatpush1.msra.mxu0 0.0
    %2338 = vmatprep.subr.mxu0 0.0
    %2339 = vmatpush1.msra.mxu0 0.0
    %2340 = vmatprep.mubr.f32.mxu0 0.0
    %2341 = vmatmul.mubr.f32.gmra.mrb[0].mxu0 %v60
    %v2342 = vpop.f32.mrb[0].mxu0
    %v2343 = vadd.f32 0.0, %v2342
    %v2344 = vpop.f32.mrb[0].mxu0
    %2345 = vmatprep.mubr.f32.mxu0 0.0
    %2346 = vmatmul.mubr.f32.gmra.mrb[0].mxu0 %v63
    %v2347 = vpop.f32.mrb[0].mxu0
    %v2348 = vadd.f32 0.0, %v2347
    %v2349 = vpop.f32.mrb[0].mxu0
    %2350 = vmatprep.mubr.f32.mxu0 0.0
    %2351 = vmatmul.mubr.f32.gmra.mrb[0].mxu0 %v66
    %v2352 = vpop.f32.mrb[0].mxu0
    %v2353 = vadd.f32 0.0, %v2352
    %v2354 = vpop.f32.mrb[0].mxu0
    %2355 = vmatprep.mubr.f32.mxu0 0.0
    %2356 = vmatmul.mubr.f32.gmra.mrb[0].mxu0 %v69
    %v2357 = vpop.f32.mrb[0].mxu0
    %v2358 = vadd.f32 0.0, %v2357
    %v2359 = vpop.f32.mrb[0].mxu0
    %2360 = vdwg.mxu0
    %2361 = vmatprep.subr.mxu0 0.0
    %2362 = vmatpush1.msra.mxu0 %v2260
    %2363 = vmatprep.subr.mxu0 0.0
    %2364 = vmatpush1.msra.mxu0 %v2261
    %2365 = vmatprep.subr.mxu0 0.0
    %2366 = vmatpush1.msra.mxu0 %v2262
    %2367 = vmatprep.subr.mxu0 0.0
    %2368 = vmatpush1.msra.mxu0 %v2263
    %2369 = vmatprep.subr.mxu0 0.0
    %2370 = vmatpush1.msra.mxu0 %v2264
    %2371 = vmatprep.subr.mxu0 0.0
    %2372 = vmatpush1.msra.mxu0 %v2265
    %2373 = vmatprep.subr.mxu0 0.0
    %2374 = vmatpush1.msra.mxu0 0.0
    %2375 = vmatprep.subr.mxu0 0.0
    %2376 = vmatpush1.msra.mxu0 0.0
    %2377 = vmatprep.subr.mxu0 0.0
    %2378 = vmatpush1.msra.mxu0 0.0
    %2379 = vmatprep.subr.mxu0 0.0
    %2380 = vmatpush1.msra.mxu0 0.0
    %2381 = vmatprep.subr.mxu0 0.0
    %2382 = vmatpush1.msra.mxu0 0.0
    %2383 = vmatprep.subr.mxu0 0.0
    %2384 = vmatpush1.msra.mxu0 0.0
    %2385 = vmatprep.subr.mxu0 0.0
    %2386 = vmatpush1.msra.mxu0 0.0
    %2387 = vmatprep.subr.mxu0 0.0
    %2388 = vmatpush1.msra.mxu0 0.0
    %2389 = vmatprep.subr.mxu0 0.0
    %2390 = vmatpush1.msra.mxu0 0.0
    %2391 = vmatprep.subr.mxu0 0.0
    %2392 = vmatpush1.msra.mxu0 0.0
    %2393 = vmatprep.subr.mxu0 0.0
    %2394 = vmatpush1.msra.mxu0 0.0
    %2395 = vmatprep.subr.mxu0 0.0
    %2396 = vmatpush1.msra.mxu0 0.0
    %2397 = vmatprep.subr.mxu0 0.0
    %2398 = vmatpush1.msra.mxu0 0.0
    %2399 = vmatprep.subr.mxu0 0.0
    %2400 = vmatpush1.msra.mxu0 0.0
    %2401 = vmatprep.subr.mxu0 0.0
    %2402 = vmatpush1.msra.mxu0 0.0
    %2403 = vmatprep.subr.mxu0 0.0
    %2404 = vmatpush1.msra.mxu0 0.0
    %2405 = vmatprep.subr.mxu0 0.0
    %2406 = vmatpush1.msra.mxu0 0.0
    %2407 = vmatprep.subr.mxu0 0.0
    %2408 = vmatpush1.msra.mxu0 0.0
    %2409 = vmatprep.subr.mxu0 0.0
    %2410 = vmatpush1.msra.mxu0 0.0
    %2411 = vmatprep.subr.mxu0 0.0
    %2412 = vmatpush1.msra.mxu0 0.0
    %2413 = vmatprep.subr.mxu0 0.0
    %2414 = vmatpush1.msra.mxu0 0.0
    %2415 = vmatprep.subr.mxu0 0.0
    %2416 = vmatpush1.msra.mxu0 0.0
    %2417 = vmatprep.subr.mxu0 0.0
    %2418 = vmatpush1.msra.mxu0 0.0
    %2419 = vmatprep.subr.mxu0 0.0
    %2420 = vmatpush1.msra.mxu0 0.0
    %2421 = vmatprep.subr.mxu0 0.0
    %2422 = vmatpush1.msra.mxu0 0.0
    %2423 = vmatprep.subr.mxu0 0.0
    %2424 = vmatpush1.msra.mxu0 0.0
    %2425 = vmatprep.mubr.f32.mxu0 0.0
    %2426 = vmatmul.mubr.f32.gmra.mrb[0].mxu0 %v158
    %v2427 = vpop.f32.mrb[0].mxu0
    %v2428 = vadd.f32 0.0, %v2427
    %v2429 = vpop.f32.mrb[0].mxu0
    %2430 = vmatprep.mubr.f32.mxu0 0.0
    %2431 = vmatmul.mubr.f32.gmra.mrb[0].mxu0 %v161
    %v2432 = vpop.f32.mrb[0].mxu0
    %v2433 = vadd.f32 0.0, %v2432
    %v2434 = vpop.f32.mrb[0].mxu0
    %2435 = vdwg.mxu0
    %2436 = vmatprep.subr.mxu0 0.0
    %2437 = vmatpush1.msra.mxu0 %v2267
    %2438 = vmatprep.subr.mxu0 0.0
    %2439 = vmatpush1.msra.mxu0 %v2268
    %2440 = vmatprep.subr.mxu0 0.0
    %2441 = vmatpush1.msra.mxu0 %v2269
    %2442 = vmatprep.subr.mxu0 0.0
    %2443 = vmatpush1.msra.mxu0 %v2270
    %2444 = vmatprep.subr.mxu0 0.0
    %2445 = vmatpush1.msra.mxu0 %v2271
    %2446 = vmatprep.subr.mxu0 0.0
    %2447 = vmatpush1.msra.mxu0 %v2272
    %2448 = vmatprep.subr.mxu0 0.0
    %2449 = vmatpush1.msra.mxu0 0.0
    %2450 = vmatprep.subr.mxu0 0.0
    %2451 = vmatpush1.msra.mxu0 0.0
    %2452 = vmatprep.subr.mxu0 0.0
    %2453 = vmatpush1.msra.mxu0 0.0
    %2454 = vmatprep.subr.mxu0 0.0
    %2455 = vmatpush1.msra.mxu0 0.0
    %2456 = vmatprep.subr.mxu0 0.0
    %2457 = vmatpush1.msra.mxu0 0.0
    %2458 = vmatprep.subr.mxu0 0.0
    %2459 = vmatpush1.msra.mxu0 0.0
    %2460 = vmatprep.subr.mxu0 0.0
    %2461 = vmatpush1.msra.mxu0 0.0
    %2462 = vmatprep.subr.mxu0 0.0
    %2463 = vmatpush1.msra.mxu0 0.0
    %2464 = vmatprep.subr.mxu0 0.0
    %2465 = vmatpush1.msra.mxu0 0.0
    %2466 = vmatprep.subr.mxu0 0.0
    %2467 = vmatpush1.msra.mxu0 0.0
    %2468 = vmatprep.subr.mxu0 0.0
    %2469 = vmatpush1.msra.mxu0 0.0
    %2470 = vmatprep.subr.mxu0 0.0
    %2471 = vmatpush1.msra.mxu0 0.0
    %2472 = vmatprep.subr.mxu0 0.0
    %2473 = vmatpush1.msra.mxu0 0.0
    %2474 = vmatprep.subr.mxu0 0.0
    %2475 = vmatpush1.msra.mxu0 0.0
    %2476 = vmatprep.subr.mxu0 0.0
    %2477 = vmatpush1.msra.mxu0 0.0
    %2478 = vmatprep.subr.mxu0 0.0
    %2479 = vmatpush1.msra.mxu0 0.0
    %2480 = vmatprep.subr.mxu0 0.0
    %2481 = vmatpush1.msra.mxu0 0.0
    %2482 = vmatprep.subr.mxu0 0.0
    %2483 = vmatpush1.msra.mxu0 0.0
    %2484 = vmatprep.subr.mxu0 0.0
    %2485 = vmatpush1.msra.mxu0 0.0
    %2486 = vmatprep.subr.mxu0 0.0
    %2487 = vmatpush1.msra.mxu0 0.0
    %2488 = vmatprep.subr.mxu0 0.0
    %2489 = vmatpush1.msra.mxu0 0.0
    %2490 = vmatprep.subr.mxu0 0.0
    %2491 = vmatpush1.msra.mxu0 0.0
    %2492 = vmatprep.subr.mxu0 0.0
    %2493 = vmatpush1.msra.mxu0 0.0
    %2494 = vmatprep.subr.mxu0 0.0
    %2495 = vmatpush1.msra.mxu0 0.0
    %2496 = vmatprep.subr.mxu0 0.0
    %2497 = vmatpush1.msra.mxu0 0.0
    %2498 = vmatprep.subr.mxu0 0.0
    %2499 = vmatpush1.msra.mxu0 0.0
    %2500 = vmatprep.mubr.f32.mxu0 0.0
    %2501 = vmatmul.mubr.f32.gmra.mrb[0].mxu0 %v158
    %v2502 = vpop.f32.mrb[0].mxu0
    %v2503 = vadd.f32 0.0, %v2502
    %v2504 = vpop.f32.mrb[0].mxu0
    %2505 = vmatprep.mubr.f32.mxu0 0.0
    %2506 = vmatmul.mubr.f32.gmra.mrb[0].mxu0 %v161
    %v2507 = vpop.f32.mrb[0].mxu0
    %v2508 = vadd.f32 0.0, %v2507
    %v2509 = vpop.f32.mrb[0].mxu0
    %2510 = vdwg.mxu0
    %v2512 = vsel %vm313, %v2343, 0
    %v2515 = vsel %vm313, %v2348, 0
    %v2518 = vsel %vm313, %v2428, 0
    %2520 = vmatprep.subr.mxu0 0.0
    %2521 = vmatpush1.xpose.msra.mxu0 %v2518
    %2522 = vmatprep.subr.mxu0 0.0
    %2523 = vmatpush1.xpose.msra.mxu0 0.0
    %2524 = vmatprep.subr.mxu0 0.0
    %2525 = vmatpush1.xpose.msra.mxu0 0.0
    %2526 = vmatprep.subr.mxu0 0.0
    %2527 = vmatpush1.xpose.msra.mxu0 0.0
    %2528 = vmatprep.subr.mxu0 0.0
    %2529 = vmatpush1.xpose.msra.mxu0 0.0
    %2530 = vmatprep.subr.mxu0 0.0
    %2531 = vmatpush1.xpose.msra.mxu0 0.0
    %2532 = vmatprep.subr.mxu0 0.0
    %2533 = vmatpush1.xpose.msra.mxu0 0.0
    %2534 = vmatprep.subr.mxu0 0.0
    %2535 = vmatpush1.xpose.msra.mxu0 0.0
    %2536 = vmatprep.subr.mxu0 0.0
    %2537 = vmatpush1.xpose.msra.mxu0 0.0
    %2538 = vmatprep.subr.mxu0 0.0
    %2539 = vmatpush1.xpose.msra.mxu0 0.0
    %2540 = vmatprep.subr.mxu0 0.0
    %2541 = vmatpush1.xpose.msra.mxu0 0.0
    %2542 = vmatprep.subr.mxu0 0.0
    %2543 = vmatpush1.xpose.msra.mxu0 0.0
    %2544 = vmatprep.subr.mxu0 0.0
    %2545 = vmatpush1.xpose.msra.mxu0 0.0
    %2546 = vmatprep.subr.mxu0 0.0
    %2547 = vmatpush1.xpose.msra.mxu0 0.0
    %2548 = vmatprep.subr.mxu0 0.0
    %2549 = vmatpush1.xpose.msra.mxu0 0.0
    %2550 = vmatprep.subr.mxu0 0.0
    %2551 = vmatpush1.xpose.msra.mxu0 0.0
    %2552 = vmatprep.subr.mxu0 0.0
    %2553 = vmatpush1.xpose.msra.mxu0 0.0
    %2554 = vmatprep.subr.mxu0 0.0
    %2555 = vmatpush1.xpose.msra.mxu0 0.0
    %2556 = vmatprep.subr.mxu0 0.0
    %2557 = vmatpush1.xpose.msra.mxu0 0.0
    %2558 = vmatprep.subr.mxu0 0.0
    %2559 = vmatpush1.xpose.msra.mxu0 0.0
    %2560 = vmatprep.subr.mxu0 0.0
    %2561 = vmatpush1.xpose.msra.mxu0 0.0
    %2562 = vmatprep.subr.mxu0 0.0
    %2563 = vmatpush1.xpose.msra.mxu0 0.0
    %2564 = vmatprep.subr.mxu0 0.0
    %2565 = vmatpush1.xpose.msra.mxu0 0.0
    %2566 = vmatprep.subr.mxu0 0.0
    %2567 = vmatpush1.xpose.msra.mxu0 0.0
    %2568 = vmatprep.subr.mxu0 0.0
    %2569 = vmatpush1.xpose.msra.mxu0 0.0
    %2570 = vmatprep.subr.mxu0 0.0
    %2571 = vmatpush1.xpose.msra.mxu0 0.0
    %2572 = vmatprep.subr.mxu0 0.0
    %2573 = vmatpush1.xpose.msra.mxu0 0.0
    %2574 = vmatprep.subr.mxu0 0.0
    %2575 = vmatpush1.xpose.msra.mxu0 0.0
    %2576 = vmatprep.subr.mxu0 0.0
    %2577 = vmatpush1.xpose.msra.mxu0 0.0
    %2578 = vmatprep.subr.mxu0 0.0
    %2579 = vmatpush1.xpose.msra.mxu0 0.0
    %2580 = vmatprep.subr.mxu0 0.0
    %2581 = vmatpush1.xpose.msra.mxu0 0.0
    %2582 = vmatprep.subr.mxu0 0.0
    %2583 = vmatpush1.xpose.msra.mxu0 0.0
    %2584 = vmatprep.mubr.f32.mxu0 0.0
    %2585 = vmatmul.mubr.f32.gmra.mrb[0].mxu0 %v2512
    %v2586 = vpop.f32.mrb[0].mxu0
    %v2587 = vadd.f32 0.0, %v2586
    %v2588 = vpop.f32.mrb[0].mxu0
    %2589 = vmatprep.mubr.f32.mxu0 0.0
    %2590 = vmatmul.mubr.f32.gmra.mrb[0].mxu0 %v2515
    %v2591 = vpop.f32.mrb[0].mxu0
    %v2592 = vadd.f32 0.0, %v2591
    %v2593 = vpop.f32.mrb[0].mxu0
    %2594 = vdwg.mxu0
    %v2595 = vsel %vm398, %v2587, -inf
    %2596 = vmax.xlane.f32.xlu0 %v2595
    %v2597 = vpop.xlane.xlu0 %2596
    %v2598 = vsel %vm398, %v2592, -inf
    %2599 = vmax.xlane.f32.xlu0 %v2598
    %v2600 = vpop.xlane.xlu0 %2599
    %v2601 = vsub.f32 %v2587, %v2597
    %v2602 = vsub.f32 %v2592, %v2600
    %v2603 = vmul.f32 %v2601, 1.442695
    %v2604 = vpow.pop %v2603
    %v2605 = vmul.f32 %v2602, 1.442695
    %v2606 = vpow.pop %v2605
    %v2607 = vsel %vm398, %v2604, 0.0
    %2608 = vadd.xlane.f32.xlu0 %v2607
    %v2609 = vpop.xlane.xlu0 %2608
    %v2610 = vsel %vm398, %v2606, 0.0
    %2611 = vadd.xlane.f32.xlu0 %v2610
    %v2612 = vpop.xlane.xlu0 %2611
    %v2613 = vrcp.pop %v2609
    %v2614 = vmul.f32 %v2604, %v2613
    %v2615 = vrcp.pop %v2612
    %v2616 = vmul.f32 %v2606, %v2615
    %v2618 = vsel %vm398, %v2614, 0
    %v2621 = vsel %vm398, %v2616, 0
    %2623 = vmatprep.subr.mxu0 0.0
    %2624 = vmatpush1.msra.mxu0 %v2503
    %2625 = vmatprep.subr.mxu0 0.0
    %2626 = vmatpush1.msra.mxu0 0.0
    %2627 = vmatprep.subr.mxu0 0.0
    %2628 = vmatpush1.msra.mxu0 0.0
    %2629 = vmatprep.subr.mxu0 0.0
    %2630 = vmatpush1.msra.mxu0 0.0
    %2631 = vmatprep.subr.mxu0 0.0
    %2632 = vmatpush1.msra.mxu0 0.0
    %2633 = vmatprep.subr.mxu0 0.0
    %2634 = vmatpush1.msra.mxu0 0.0
    %2635 = vmatprep.subr.mxu0 0.0
    %2636 = vmatpush1.msra.mxu0 0.0
    %2637 = vmatprep.subr.mxu0 0.0
    %2638 = vmatpush1.msra.mxu0 0.0
    %2639 = vmatprep.subr.mxu0 0.0
    %2640 = vmatpush1.msra.mxu0 0.0
    %2641 = vmatprep.subr.mxu0 0.0
    %2642 = vmatpush1.msra.mxu0 0.0
    %2643 = vmatprep.subr.mxu0 0.0
    %2644 = vmatpush1.msra.mxu0 0.0
    %2645 = vmatprep.subr.mxu0 0.0
    %2646 = vmatpush1.msra.mxu0 0.0
    %2647 = vmatprep.subr.mxu0 0.0
    %2648 = vmatpush1.msra.mxu0 0.0
    %2649 = vmatprep.subr.mxu0 0.0
    %2650 = vmatpush1.msra.mxu0 0.0
    %2651 = vmatprep.subr.mxu0 0.0
    %2652 = vmatpush1.msra.mxu0 0.0
    %2653 = vmatprep.subr.mxu0 0.0
    %2654 = vmatpush1.msra.mxu0 0.0
    %2655 = vmatprep.subr.mxu0 0.0
    %2656 = vmatpush1.msra.mxu0 0.0
    %2657 = vmatprep.subr.mxu0 0.0
    %2658 = vmatpush1.msra.mxu0 0.0
    %2659 = vmatprep.subr.mxu0 0.0
    %2660 = vmatpush1.msra.mxu0 0.0
    %2661 = vmatprep.subr.mxu0 0.0
    %2662 = vmatpush1.msra.mxu0 0.0
    %2663 = vmatprep.subr.mxu0 0.0
    %2664 = vmatpush1.msra.mxu0 0.0
    %2665 = vmatprep.subr.mxu0 0.0
    %2666 = vmatpush1.msra.mxu0 0.0
    %2667 = vmatprep.subr.mxu0 0.0
    %2668 = vmatpush1.msra.mxu0 0.0
    %2669 = vmatprep.subr.mxu0 0.0
    %2670 = vmatpush1.msra.mxu0 0.0
    %2671 = vmatprep.subr.mxu0 0.0
    %2672 = vmatpush1.msra.mxu0 0.0
    %2673 = vmatprep.subr.mxu0 0.0
    %2674 = vmatpush1.msra.mxu0 0.0
    %2675 = vmatprep.subr.mxu0 0.0
    %2676 = vmatpush1.msra.mxu0 0.0
    %2677 = vmatprep.subr.mxu0 0.0
    %2678 = vmatpush1.msra.mxu0 0.0
    %2679 = vmatprep.subr.mxu0 0.0
    %2680 = vmatpush1.msra.mxu0 0.0
    %2681 = vmatprep.subr.mxu0 0.0
    %2682 = vmatpush1.msra.mxu0 0.0
    %2683 = vmatprep.subr.mxu0 0.0
    %2684 = vmatpush1.msra.mxu0 0.0
    %2685 = vmatprep.subr.mxu0 0.0
    %2686 = vmatpush1.msra.mxu0 0.0
    %2687 = vmatprep.mubr.f32.mxu0 0.0
    %2688 = vmatmul.mubr.f32.gmra.mrb[0].mxu0 %v2618
    %v2689 = vpop.f32.mrb[0].mxu0
    %v2690 = vadd.f32 0.0, %v2689
    %v2691 = vpop.f32.mrb[0].mxu0
    %2692 = vmatprep.mubr.f32.mxu0 0.0
    %2693 = vmatmul.mubr.f32.gmra.mrb[0].mxu0 %v2621
    %v2694 = vpop.f32.mrb[0].mxu0
    %v2695 = vadd.f32 0.0, %v2694
    %v2696 = vpop.f32.mrb[0].mxu0
    %2697 = vdwg.mxu0
    %v2699 = vsel %vm313, %v2353, 0
    %v2702 = vsel %vm313, %v2358, 0
    %v2705 = vsel %vm313, %v2433, 0
    %2707 = vmatprep.subr.mxu0 0.0
    %2708 = vmatpush1.xpose.msra.mxu0 %v2705
    %2709 = vmatprep.subr.mxu0 0.0
    %2710 = vmatpush1.xpose.msra.mxu0 0.0
    %2711 = vmatprep.subr.mxu0 0.0
    %2712 = vmatpush1.xpose.msra.mxu0 0.0
    %2713 = vmatprep.subr.mxu0 0.0
    %2714 = vmatpush1.xpose.msra.mxu0 0.0
    %2715 = vmatprep.subr.mxu0 0.0
    %2716 = vmatpush1.xpose.msra.mxu0 0.0
    %2717 = vmatprep.subr.mxu0 0.0
    %2718 = vmatpush1.xpose.msra.mxu0 0.0
    %2719 = vmatprep.subr.mxu0 0.0
    %2720 = vmatpush1.xpose.msra.mxu0 0.0
    %2721 = vmatprep.subr.mxu0 0.0
    %2722 = vmatpush1.xpose.msra.mxu0 0.0
    %2723 = vmatprep.subr.mxu0 0.0
    %2724 = vmatpush1.xpose.msra.mxu0 0.0
    %2725 = vmatprep.subr.mxu0 0.0
    %2726 = vmatpush1.xpose.msra.mxu0 0.0
    %2727 = vmatprep.subr.mxu0 0.0
    %2728 = vmatpush1.xpose.msra.mxu0 0.0
    %2729 = vmatprep.subr.mxu0 0.0
    %2730 = vmatpush1.xpose.msra.mxu0 0.0
    %2731 = vmatprep.subr.mxu0 0.0
    %2732 = vmatpush1.xpose.msra.mxu0 0.0
    %2733 = vmatprep.subr.mxu0 0.0
    %2734 = vmatpush1.xpose.msra.mxu0 0.0
    %2735 = vmatprep.subr.mxu0 0.0
    %2736 = vmatpush1.xpose.msra.mxu0 0.0
    %2737 = vmatprep.subr.mxu0 0.0
    %2738 = vmatpush1.xpose.msra.mxu0 0.0
    %2739 = vmatprep.subr.mxu0 0.0
    %2740 = vmatpush1.xpose.msra.mxu0 0.0
    %2741 = vmatprep.subr.mxu0 0.0
    %2742 = vmatpush1.xpose.msra.mxu0 0.0
    %2743 = vmatprep.subr.mxu0 0.0
    %2744 = vmatpush1.xpose.msra.mxu0 0.0
    %2745 = vmatprep.subr.mxu0 0.0
    %2746 = vmatpush1.xpose.msra.mxu0 0.0
    %2747 = vmatprep.subr.mxu0 0.0
    %2748 = vmatpush1.xpose.msra.mxu0 0.0
    %2749 = vmatprep.subr.mxu0 0.0
    %2750 = vmatpush1.xpose.msra.mxu0 0.0
    %2751 = vmatprep.subr.mxu0 0.0
    %2752 = vmatpush1.xpose.msra.mxu0 0.0
    %2753 = vmatprep.subr.mxu0 0.0
    %2754 = vmatpush1.xpose.msra.mxu0 0.0
    %2755 = vmatprep.subr.mxu0 0.0
    %2756 = vmatpush1.xpose.msra.mxu0 0.0
    %2757 = vmatprep.subr.mxu0 0.0
    %2758 = vmatpush1.xpose.msra.mxu0 0.0
    %2759 = vmatprep.subr.mxu0 0.0
    %2760 = vmatpush1.xpose.msra.mxu0 0.0
    %2761 = vmatprep.subr.mxu0 0.0
    %2762 = vmatpush1.xpose.msra.mxu0 0.0
    %2763 = vmatprep.subr.mxu0 0.0
    %2764 = vmatpush1.xpose.msra.mxu0 0.0
    %2765 = vmatprep.subr.mxu0 0.0
    %2766 = vmatpush1.xpose.msra.mxu0 0.0
    %2767 = vmatprep.subr.mxu0 0.0
    %2768 = vmatpush1.xpose.msra.mxu0 0.0
    %2769 = vmatprep.subr.mxu0 0.0
    %2770 = vmatpush1.xpose.msra.mxu0 0.0
    %2771 = vmatprep.mubr.f32.mxu0 0.0
    %2772 = vmatmul.mubr.f32.gmra.mrb[0].mxu0 %v2699
    %v2773 = vpop.f32.mrb[0].mxu0
    %v2774 = vadd.f32 0.0, %v2773
    %v2775 = vpop.f32.mrb[0].mxu0
    %2776 = vmatprep.mubr.f32.mxu0 0.0
    %2777 = vmatmul.mubr.f32.gmra.mrb[0].mxu0 %v2702
    %v2778 = vpop.f32.mrb[0].mxu0
    %v2779 = vadd.f32 0.0, %v2778
    %v2780 = vpop.f32.mrb[0].mxu0
    %2781 = vdwg.mxu0
    %v2782 = vsel %vm398, %v2774, -inf
    %2783 = vmax.xlane.f32.xlu0 %v2782
    %v2784 = vpop.xlane.xlu0 %2783
    %v2785 = vsel %vm398, %v2779, -inf
    %2786 = vmax.xlane.f32.xlu0 %v2785
    %v2787 = vpop.xlane.xlu0 %2786
    %v2788 = vsub.f32 %v2774, %v2784
    %v2789 = vsub.f32 %v2779, %v2787
    %v2790 = vmul.f32 %v2788, 1.442695
    %v2791 = vpow.pop %v2790
    %v2792 = vmul.f32 %v2789, 1.442695
    %v2793 = vpow.pop %v2792
    %v2794 = vsel %vm398, %v2791, 0.0
    %2795 = vadd.xlane.f32.xlu0 %v2794
    %v2796 = vpop.xlane.xlu0 %2795
    %v2797 = vsel %vm398, %v2793, 0.0
    %2798 = vadd.xlane.f32.xlu0 %v2797
    %v2799 = vpop.xlane.xlu0 %2798
    %v2800 = vrcp.pop %v2796
    %v2801 = vmul.f32 %v2791, %v2800
    %v2802 = vrcp.pop %v2799
    %v2803 = vmul.f32 %v2793, %v2802
    %v2805 = vsel %vm398, %v2801, 0
    %v2808 = vsel %vm398, %v2803, 0
    %2810 = vmatprep.subr.mxu0 0.0
    %2811 = vmatpush1.msra.mxu0 %v2508
    %2812 = vmatprep.subr.mxu0 0.0
    %2813 = vmatpush1.msra.mxu0 0.0
    %2814 = vmatprep.subr.mxu0 0.0
    %2815 = vmatpush1.msra.mxu0 0.0
    %2816 = vmatprep.subr.mxu0 0.0
    %2817 = vmatpush1.msra.mxu0 0.0
    %2818 = vmatprep.subr.mxu0 0.0
    %2819 = vmatpush1.msra.mxu0 0.0
    %2820 = vmatprep.subr.mxu0 0.0
    %2821 = vmatpush1.msra.mxu0 0.0
    %2822 = vmatprep.subr.mxu0 0.0
    %2823 = vmatpush1.msra.mxu0 0.0
    %2824 = vmatprep.subr.mxu0 0.0
    %2825 = vmatpush1.msra.mxu0 0.0
    %2826 = vmatprep.subr.mxu0 0.0
    %2827 = vmatpush1.msra.mxu0 0.0
    %2828 = vmatprep.subr.mxu0 0.0
    %2829 = vmatpush1.msra.mxu0 0.0
    %2830 = vmatprep.subr.mxu0 0.0
    %2831 = vmatpush1.msra.mxu0 0.0
    %2832 = vmatprep.subr.mxu0 0.0
    %2833 = vmatpush1.msra.mxu0 0.0
    %2834 = vmatprep.subr.mxu0 0.0
    %2835 = vmatpush1.msra.mxu0 0.0
    %2836 = vmatprep.subr.mxu0 0.0
    %2837 = vmatpush1.msra.mxu0 0.0
    %2838 = vmatprep.subr.mxu0 0.0
    %2839 = vmatpush1.msra.mxu0 0.0
    %2840 = vmatprep.subr.mxu0 0.0
    %2841 = vmatpush1.msra.mxu0 0.0
    %2842 = vmatprep.subr.mxu0 0.0
    %2843 = vmatpush1.msra.mxu0 0.0
    %2844 = vmatprep.subr.mxu0 0.0
    %2845 = vmatpush1.msra.mxu0 0.0
    %2846 = vmatprep.subr.mxu0 0.0
    %2847 = vmatpush1.msra.mxu0 0.0
    %2848 = vmatprep.subr.mxu0 0.0
    %2849 = vmatpush1.msra.mxu0 0.0
    %2850 = vmatprep.subr.mxu0 0.0
    %2851 = vmatpush1.msra.mxu0 0.0
    %2852 = vmatprep.subr.mxu0 0.0
    %2853 = vmatpush1.msra.mxu0 0.0
    %2854 = vmatprep.subr.mxu0 0.0
    %2855 = vmatpush1.msra.mxu0 0.0
    %2856 = vmatprep.subr.mxu0 0.0
    %2857 = vmatpush1.msra.mxu0 0.0
    %2858 = vmatprep.subr.mxu0 0.0
    %2859 = vmatpush1.msra.mxu0 0.0
    %2860 = vmatprep.subr.mxu0 0.0
    %2861 = vmatpush1.msra.mxu0 0.0
    %2862 = vmatprep.subr.mxu0 0.0
    %2863 = vmatpush1.msra.mxu0 0.0
    %2864 = vmatprep.subr.mxu0 0.0
    %2865 = vmatpush1.msra.mxu0 0.0
    %2866 = vmatprep.subr.mxu0 0.0
    %2867 = vmatpush1.msra.mxu0 0.0
    %2868 = vmatprep.subr.mxu0 0.0
    %2869 = vmatpush1.msra.mxu0 0.0
    %2870 = vmatprep.subr.mxu0 0.0
    %2871 = vmatpush1.msra.mxu0 0.0
    %2872 = vmatprep.subr.mxu0 0.0
    %2873 = vmatpush1.msra.mxu0 0.0
    %2874 = vmatprep.mubr.f32.mxu0 0.0
    %2875 = vmatmul.mubr.f32.gmra.mrb[0].mxu0 %v2805
    %v2876 = vpop.f32.mrb[0].mxu0
    %v2877 = vadd.f32 0.0, %v2876
    %v2878 = vpop.f32.mrb[0].mxu0
    %2879 = vmatprep.mubr.f32.mxu0 0.0
    %2880 = vmatmul.mubr.f32.gmra.mrb[0].mxu0 %v2808
    %v2881 = vpop.f32.mrb[0].mxu0
    %v2882 = vadd.f32 0.0, %v2881
    %v2883 = vpop.f32.mrb[0].mxu0
    %2884 = vdwg.mxu0
    %v2886 = vsel %vm313, %v2690, 0
    %v2889 = vsel %vm313, %v2695, 0
    %v2892 = vsel %vm313, %v2877, 0
    %v2895 = vsel %vm313, %v2882, 0
    %2897 = vmatprep.subr.mxu0 0.0
    %2898 = vmatpush1.msra.mxu0 %v2274
    %2899 = vmatprep.subr.mxu0 0.0
    %2900 = vmatpush1.msra.mxu0 %v2275
    %2901 = vmatprep.subr.mxu0 0.0
    %2902 = vmatpush1.msra.mxu0 0.0
    %2903 = vmatprep.subr.mxu0 0.0
    %2904 = vmatpush1.msra.mxu0 0.0
    %2905 = vmatprep.subr.mxu0 0.0
    %2906 = vmatpush1.msra.mxu0 0.0
    %2907 = vmatprep.subr.mxu0 0.0
    %2908 = vmatpush1.msra.mxu0 0.0
    %2909 = vmatprep.subr.mxu0 0.0
    %2910 = vmatpush1.msra.mxu0 0.0
    %2911 = vmatprep.subr.mxu0 0.0
    %2912 = vmatpush1.msra.mxu0 0.0
    %2913 = vmatprep.subr.mxu0 0.0
    %2914 = vmatpush1.msra.mxu0 0.0
    %2915 = vmatprep.subr.mxu0 0.0
    %2916 = vmatpush1.msra.mxu0 0.0
    %2917 = vmatprep.subr.mxu0 0.0
    %2918 = vmatpush1.msra.mxu0 0.0
    %2919 = vmatprep.subr.mxu0 0.0
    %2920 = vmatpush1.msra.mxu0 0.0
    %2921 = vmatprep.subr.mxu0 0.0
    %2922 = vmatpush1.msra.mxu0 0.0
    %2923 = vmatprep.subr.mxu0 0.0
    %2924 = vmatpush1.msra.mxu0 0.0
    %2925 = vmatprep.subr.mxu0 0.0
    %2926 = vmatpush1.msra.mxu0 0.0
    %2927 = vmatprep.subr.mxu0 0.0
    %2928 = vmatpush1.msra.mxu0 0.0
    %2929 = vmatprep.subr.mxu0 0.0
    %2930 = vmatpush1.msra.mxu0 0.0
    %2931 = vmatprep.subr.mxu0 0.0
    %2932 = vmatpush1.msra.mxu0 0.0
    %2933 = vmatprep.subr.mxu0 0.0
    %2934 = vmatpush1.msra.mxu0 0.0
    %2935 = vmatprep.subr.mxu0 0.0
    %2936 = vmatpush1.msra.mxu0 0.0
    %2937 = vmatprep.subr.mxu0 0.0
    %2938 = vmatpush1.msra.mxu0 0.0
    %2939 = vmatprep.subr.mxu0 0.0
    %2940 = vmatpush1.msra.mxu0 0.0
    %2941 = vmatprep.subr.mxu0 0.0
    %2942 = vmatpush1.msra.mxu0 0.0
    %2943 = vmatprep.subr.mxu0 0.0
    %2944 = vmatpush1.msra.mxu0 0.0
    %2945 = vmatprep.subr.mxu0 0.0
    %2946 = vmatpush1.msra.mxu0 0.0
    %2947 = vmatprep.subr.mxu0 0.0
    %2948 = vmatpush1.msra.mxu0 0.0
    %2949 = vmatprep.subr.mxu0 0.0
    %2950 = vmatpush1.msra.mxu0 0.0
    %2951 = vmatprep.subr.mxu0 0.0
    %2952 = vmatpush1.msra.mxu0 0.0
    %2953 = vmatprep.subr.mxu0 0.0
    %2954 = vmatpush1.msra.mxu0 0.0
    %2955 = vmatprep.subr.mxu0 0.0
    %2956 = vmatpush1.msra.mxu0 0.0
    %2957 = vmatprep.subr.mxu0 0.0
    %2958 = vmatpush1.msra.mxu0 0.0
    %2959 = vmatprep.subr.mxu0 0.0
    %2960 = vmatpush1.msra.mxu0 0.0
    %2961 = vmatprep.mubr.f32.mxu0 0.0
    %2962 = vmatmul.mubr.f32.gmra.mrb[0].mxu0 %v2886
    %v2963 = vpop.f32.mrb[0].mxu0
    %v2964 = vadd.f32 0.0, %v2963
    %v2965 = vpop.f32.mrb[0].mxu0
    %2966 = vmatprep.mubr.f32.mxu0 0.0
    %2967 = vmatmul.mubr.f32.gmra.mrb[0].mxu0 %v2889
    %v2968 = vpop.f32.mrb[0].mxu0
    %v2969 = vadd.f32 0.0, %v2968
    %v2970 = vpop.f32.mrb[0].mxu0
    %2971 = vmatprep.mubr.f32.mxu0 0.0
    %2972 = vmatmul.mubr.f32.gmra.mrb[0].mxu0 %v2892
    %v2973 = vpop.f32.mrb[0].mxu0
    %v2974 = vadd.f32 0.0, %v2973
    %v2975 = vpop.f32.mrb[0].mxu0
    %2976 = vmatprep.mubr.f32.mxu0 0.0
    %2977 = vmatmul.mubr.f32.gmra.mrb[0].mxu0 %v2895
    %v2978 = vpop.f32.mrb[0].mxu0
    %v2979 = vadd.f32 0.0, %v2978
    %v2980 = vpop.f32.mrb[0].mxu0
    %2981 = vdwg.mxu0
    %v2982 = vadd.f32 %v2250, %v2964
    %v2983 = vadd.f32 %v2251, %v2969
    %v2984 = vadd.f32 %v2252, %v2974
    %v2985 = vadd.f32 %v2253, %v2979
    %2986 = vst.msk [vmem:[#allocation2] sm:$0xff] %vm58, %v2982
    %2987 = vst.msk [vmem:[#allocation2 + $0x8] sm:$0xff] %vm58, %v2983
    %2988 = vst.msk [vmem:[#allocation2 + $0x10] sm:$0xff] %vm58, %v2984
    %2989 = vst.msk [vmem:[#allocation2 + $0x18] sm:$0xff] %vm58, %v2985
    // Predicated region
    $region30: #{tpu_custom_call.1} parent=1 // pred_check
      _
    $region31: #{tpu_custom_call.1} parent=1 // pred_check_branch
      %2991 = sbr.rel (0) target = $region33
    $region32: #{tpu_custom_call.1} parent=1 // pred_region
      %s2993 = ssub.s32 512, 512
      %2994 = vsyncadd [#allocation3], %s2993
      %s2995 = sshll.u32 [#allocation2], 4
      %s2996 = int_to_ptr.vmem [resolvable:$true] %s2995
      %3001 = dma.vmem_to_hbm [thread:$0]  %s2996, 512, %s7, [#allocation3], 128, 128, 8
    $region33: #{tpu_custom_call.1} parent=1 // pred_fallthru
      _
    // Predicated region
    $region34: #{tpu_custom_call.1} parent=1 // pred_check
      _
    $region35: #{tpu_custom_call.1} parent=1 // pred_check_branch
      %3003 = sbr.rel (0) target = $region37
    $region36: #{tpu_custom_call.1} parent=1 // pred_region
      %3004 = dma.done [#allocation3], 512
    $region37: #{tpu_custom_call.1} parent=1 // pred_fallthru
      _
    %3005 = vsyncpa [#allocation3], 1

</llo_original>
